<compile_context>
chip_gen: v7x
topology: tpu7x:2x2x1
jax: 0.10.0
libtpu: 0.0.40
codegen_flags: <defaults>
</compile_context>

<pallas_src>
import jax
import jax.numpy as jnp
import numpy as np
from jax import lax
from jax.experimental import pallas as pl
from jax.experimental.pallas import tpu as pltpu

HIDDEN = 128
GATES = 4 * HIDDEN          # PyTorch gate order: i, f, g, o
NUM_LAYERS = 4
INPUT_SIZE = 55


def _bidir_lstm_kernel(gx_f_ref, gx_b_ref, whh_f_ref, whh_b_ref, y_ref,
                       hf_sc, cf_sc, hb_sc, cb_sc):
    """Fused bidirectional LSTM recurrence over the whole sequence (grid=(1,)).

    gx_*_ref : (T, B, 4H)  pre-projected input gates  x_t @ W_ih^T + (b_ih + b_hh)
    whh_*_ref: (H, 4H)     recurrent weights (transposed)
    y_ref    : (T, B, 2H)  forward half -> [..., :H], backward half -> [..., H:]
    *_sc     : (B, H)      hidden / cell state scratch, one (h, c) pair per direction
    """
    T = gx_f_ref.shape[0]

    hf_sc[...] = jnp.zeros_like(hf_sc)
    cf_sc[...] = jnp.zeros_like(cf_sc)
    hb_sc[...] = jnp.zeros_like(hb_sc)
    cb_sc[...] = jnp.zeros_like(cb_sc)

    whh_f = whh_f_ref[...]
    whh_b = whh_b_ref[...]

    def cell(gates, c_prev):
        # PyTorch gate order i|f|g|o; i and f are lane-contiguous -> one sigmoid call.
        i_f = jax.nn.sigmoid(gates[:, 0:2 * HIDDEN])
        i = i_f[:, 0:HIDDEN]
        f = i_f[:, HIDDEN:2 * HIDDEN]
        g = jnp.tanh(gates[:, 2 * HIDDEN:3 * HIDDEN])
        o = jax.nn.sigmoid(gates[:, 3 * HIDDEN:4 * HIDDEN])
        c = f * c_prev + i * g
        h = o * jnp.tanh(c)
        return h, c

    # T is small and static: fully unrolled time loop -> every index is static.
    for t in range(T):
        tb = T - 1 - t  # backward direction walks the sequence in reverse
        gates_f = gx_f_ref[t] + jnp.dot(hf_sc[...], whh_f,
                                        preferred_element_type=jnp.float32)
        gates_b = gx_b_ref[tb] + jnp.dot(hb_sc[...], whh_b,
                                         preferred_element_type=jnp.float32)
        h_f, c_f = cell(gates_f, cf_sc[...])
        h_b, c_b = cell(gates_b, cb_sc[...])
        hf_sc[...] = h_f
        cf_sc[...] = c_f
        hb_sc[...] = h_b
        cb_sc[...] = c_b
        # Write each direction straight into its 128-aligned half of the output.
        y_ref[pl.ds(t, 1), :, 0:HIDDEN] = h_f[None]
        y_ref[pl.ds(tb, 1), :, HIDDEN:2 * HIDDEN] = h_b[None]


def bidir_lstm_layer_pallas(x_tbd, dir_f, dir_b):
    """One bidirectional LSTM layer. x_tbd: (T, B, D_in) -> (T, B, 2*HIDDEN)."""
    T, B, D = x_tbd.shape
    wih_f, whh_f, b_f = dir_f
    wih_b, whh_b, b_b = dir_b

    # Hoisted input projection: one GEMM over the whole sequence per direction.
    x2 = x_tbd.reshape(T * B, D)
    gx_f = (x2 @ wih_f + b_f).reshape(T, B, GATES)
    gx_b = (x2 @ wih_b + b_b).reshape(T, B, GATES)

    return pl.pallas_call(
        _bidir_lstm_kernel,
        out_shape=jax.ShapeDtypeStruct((T, B, 2 * HIDDEN), jnp.float32),
        grid_spec=pltpu.PrefetchScalarGridSpec(
            num_scalar_prefetch=0,
            grid=(1,),
            in_specs=[
                pl.BlockSpec((T, B, GATES), lambda i: (0, 0, 0)),
                pl.BlockSpec((T, B, GATES), lambda i: (0, 0, 0)),
                pl.BlockSpec((HIDDEN, GATES), lambda i: (0, 0)),
                pl.BlockSpec((HIDDEN, GATES), lambda i: (0, 0)),
            ],
            out_specs=pl.BlockSpec((T, B, 2 * HIDDEN), lambda i: (0, 0, 0)),
            scratch_shapes=[
                pltpu.VMEM((B, HIDDEN), jnp.float32),  # h forward
                pltpu.VMEM((B, HIDDEN), jnp.float32),  # c forward
                pltpu.VMEM((B, HIDDEN), jnp.float32),  # h backward
                pltpu.VMEM((B, HIDDEN), jnp.float32),  # c backward
            ],
        ),
        compiler_params=pltpu.CompilerParams(
            dimension_semantics=("arbitrary",),  # sequential recurrence
        ),
    )(gx_f, gx_b, whh_f, whh_b)


# ------------------------- pure-JAX reference ------------------------------


def _lstm_direction_ref(x_tbd, wih_t, whh_t, bias):
    T, B, D = x_tbd.shape

    def step(carry, x_t):
        h, c = carry
        gates = x_t @ wih_t + h @ whh_t + bias
        i = jax.nn.sigmoid(gates[:, 0 * HIDDEN:1 * HIDDEN])
        f = jax.nn.sigmoid(gates[:, 1 * HIDDEN:2 * HIDDEN])
        g = jnp.tanh(gates[:, 2 * HIDDEN:3 * HIDDEN])
        o = jax.nn.sigmoid(gates[:, 3 * HIDDEN:4 * HIDDEN])
        c = f * c + i * g
        h = o * jnp.tanh(c)
        return (h, c), h

    init = (jnp.zeros((B, HIDDEN), jnp.float32),
            jnp.zeros((B, HIDDEN), jnp.float32))
    _, ys = lax.scan(step, init, x_tbd)
    return ys


def bidir_lstm_layer_ref(x_tbd, dir_f, dir_b):
    y_f = _lstm_direction_ref(x_tbd, *dir_f)
    y_b = _lstm_direction_ref(x_tbd[::-1], *dir_b)[::-1]
    return jnp.concatenate([y_f, y_b], axis=-1)


# ------------------------- params + forward --------------------------------


def init_params(key):
    """Deterministic init mirroring nn.LSTM(55, 128, 4, bidirectional=True) shapes.

    PyTorch init: U(-k, k) with k = 1/sqrt(hidden_size). Weights stored pre-transposed
    (W^T) and with the two biases fused (b_ih + b_hh).
    """
    k = 1.0 / np.sqrt(HIDDEN)
    params = []
    in_dim = INPUT_SIZE
    for _ in range(NUM_LAYERS):
        dirs = []
        for _ in range(2):  # forward, backward
            key, k1, k2, k3, k4 = jax.random.split(key, 5)
            wih = jax.random.uniform(k1, (GATES, in_dim), jnp.float32, -k, k)
            whh = jax.random.uniform(k2, (GATES, HIDDEN), jnp.float32, -k, k)
            bih = jax.random.uniform(k3, (GATES,), jnp.float32, -k, k)
            bhh = jax.random.uniform(k4, (GATES,), jnp.float32, -k, k)
            dirs.append((wih.T, whh.T, (bih + bhh)[None, :]))
        params.append(tuple(dirs))
        in_dim = 2 * HIDDEN
    return params


def record_encoder_forward(x_btd, params, use_ref=False):
    """RecordEncoder.forward: x (B, T, 55) -> last time-step output (B, 256)."""
    layer_fn = bidir_lstm_layer_ref if use_ref else bidir_lstm_layer_pallas
    h = jnp.transpose(x_btd, (1, 0, 2)).astype(jnp.float32)  # time-major (T, B, D)
    for dir_f, dir_b in params:
        h = layer_fn(h, dir_f, dir_b)  # (T, B, 256)
    # PyTorch dense-tensor branch: x[:, -1, :]
    # TODO(synk): PackedSequence / variable-length branch not implemented (dense input only).
    return h[-1]  # (B, 256)


if __name__ == "__main__":
    key = jax.random.PRNGKey(0)
    pkey, xkey = jax.random.split(key)

    params = init_params(pkey)

    B, T = 2, 8
    x = jax.random.normal(xkey, (B, T, INPUT_SIZE), jnp.float32)

    out = jax.block_until_ready(record_encoder_forward(x, params, use_ref=False))
    ref = jax.block_until_ready(record_encoder_forward(x, params, use_ref=True))

    assert out.shape == (B, 2 * HIDDEN), out.shape
    np.testing.assert_allclose(np.asarray(out), np.asarray(ref), rtol=1e-4, atol=1e-4)

    print("KERNEL_OK")
</pallas_src>

<mosaic_0001>
module attributes {stable_mosaic.version = 11 : i64} {
  func.func @_bidir_lstm_kernel(%arg0: i32, %arg1: memref<8x2x512xf32, #tpu.memory_space<vmem>>, %arg2: memref<8x2x512xf32, #tpu.memory_space<vmem>>, %arg3: memref<128x512xf32, #tpu.memory_space<vmem>>, %arg4: memref<128x512xf32, #tpu.memory_space<vmem>>, %arg5: memref<8x2x256xf32, #tpu.memory_space<vmem>>, %arg6: memref<2x128xf32, #tpu.memory_space<vmem>>, %arg7: memref<2x128xf32, #tpu.memory_space<vmem>>, %arg8: memref<2x128xf32, #tpu.memory_space<vmem>>, %arg9: memref<2x128xf32, #tpu.memory_space<vmem>>) attributes {dimension_semantics = [#tpu.dimension_semantics<arbitrary>], iteration_bounds = array<i64: 1>, scalar_prefetch = 0 : i64, scratch_operands = 4 : i64, tpu.core_type = #tpu.core_type<tc>, window_params = [{pipeline_mode = #tpu.pipeline_mode<synchronous>, transform_indices = @transform_0, window_bounds = array<i64: 8, 2, 512>}, {pipeline_mode = #tpu.pipeline_mode<synchronous>, transform_indices = @transform_1, window_bounds = array<i64: 8, 2, 512>}, {pipeline_mode = #tpu.pipeline_mode<synchronous>, transform_indices = @transform_2, window_bounds = array<i64: 128, 512>}, {pipeline_mode = #tpu.pipeline_mode<synchronous>, transform_indices = @transform_3, window_bounds = array<i64: 128, 512>}, {pipeline_mode = #tpu.pipeline_mode<synchronous>, transform_indices = @transform_4, window_bounds = array<i64: 8, 2, 256>}]} {
    %cst = arith.constant 0.000000e+00 : f32
    %0 = vector.broadcast %cst : f32 to vector<2x128xf32>
    %c0 = arith.constant 0 : index
    %c0_0 = arith.constant 0 : index
    %1 = vector.load %arg6[%c0, %c0_0] : memref<2x128xf32, #tpu.memory_space<vmem>>, vector<2x128xf32>
    tpu.vector_store %arg6[%c0, %c0_0], %0 {strides = array<i32>} : memref<2x128xf32, #tpu.memory_space<vmem>>, vector<2x128xf32>,
    %cst_1 = arith.constant 0.000000e+00 : f32
    %2 = vector.broadcast %cst_1 : f32 to vector<2x128xf32>
    %c0_2 = arith.constant 0 : index
    %c0_3 = arith.constant 0 : index
    %3 = vector.load %arg7[%c0_2, %c0_3] : memref<2x128xf32, #tpu.memory_space<vmem>>, vector<2x128xf32>
    tpu.vector_store %arg7[%c0_2, %c0_3], %2 {strides = array<i32>} : memref<2x128xf32, #tpu.memory_space<vmem>>, vector<2x128xf32>,
    %cst_4 = arith.constant 0.000000e+00 : f32
    %4 = vector.broadcast %cst_4 : f32 to vector<2x128xf32>
    %c0_5 = arith.constant 0 : index
    %c0_6 = arith.constant 0 : index
    %5 = vector.load %arg8[%c0_5, %c0_6] : memref<2x128xf32, #tpu.memory_space<vmem>>, vector<2x128xf32>
    tpu.vector_store %arg8[%c0_5, %c0_6], %4 {strides = array<i32>} : memref<2x128xf32, #tpu.memory_space<vmem>>, vector<2x128xf32>,
    %cst_7 = arith.constant 0.000000e+00 : f32
    %6 = vector.broadcast %cst_7 : f32 to vector<2x128xf32>
    %c0_8 = arith.constant 0 : index
    %c0_9 = arith.constant 0 : index
    %7 = vector.load %arg9[%c0_8, %c0_9] : memref<2x128xf32, #tpu.memory_space<vmem>>, vector<2x128xf32>
    tpu.vector_store %arg9[%c0_8, %c0_9], %6 {strides = array<i32>} : memref<2x128xf32, #tpu.memory_space<vmem>>, vector<2x128xf32>,
    %c0_10 = arith.constant 0 : index
    %c0_11 = arith.constant 0 : index
    %8 = vector.load %arg3[%c0_10, %c0_11] : memref<128x512xf32, #tpu.memory_space<vmem>>, vector<128x512xf32>
    %c0_12 = arith.constant 0 : index
    %c0_13 = arith.constant 0 : index
    %9 = vector.load %arg4[%c0_12, %c0_13] : memref<128x512xf32, #tpu.memory_space<vmem>>, vector<128x512xf32>
    %c0_14 = arith.constant 0 : index
    %c0_15 = arith.constant 0 : index
    %c0_16 = arith.constant 0 : index
    %10 = vector.load %arg1[%c0_14, %c0_15, %c0_16] : memref<8x2x512xf32, #tpu.memory_space<vmem>>, vector<1x2x512xf32>
    %11 = vector.shape_cast %10 : vector<1x2x512xf32> to vector<2x512xf32>
    %c0_17 = arith.constant 0 : index
    %c0_18 = arith.constant 0 : index
    %12 = vector.load %arg6[%c0_17, %c0_18] : memref<2x128xf32, #tpu.memory_space<vmem>>, vector<2x128xf32>
    %cst_19 = arith.constant dense<0.000000e+00> : vector<2x512xf32>
    %13 = tpu.matmul %12, %8, %cst_19 {dimension_numbers = #tpu.dot_dimension_numbers<[1], [0], [0], [1], [0, 0, 1, 1], [], []>} : vector<2x128xf32>, vector<128x512xf32>, vector<2x512xf32> -> vector<2x512xf32>
    %14 = arith.addf %11, %13 : vector<2x512xf32>
    %c7 = arith.constant 7 : index
    %c0_20 = arith.constant 0 : index
    %c0_21 = arith.constant 0 : index
    %15 = vector.load %arg2[%c7, %c0_20, %c0_21] : memref<8x2x512xf32, #tpu.memory_space<vmem>>, vector<1x2x512xf32>
    %16 = vector.shape_cast %15 : vector<1x2x512xf32> to vector<2x512xf32>
    %c0_22 = arith.constant 0 : index
    %c0_23 = arith.constant 0 : index
    %17 = vector.load %arg8[%c0_22, %c0_23] : memref<2x128xf32, #tpu.memory_space<vmem>>, vector<2x128xf32>
    %cst_24 = arith.constant dense<0.000000e+00> : vector<2x512xf32>
    %18 = tpu.matmul %17, %9, %cst_24 {dimension_numbers = #tpu.dot_dimension_numbers<[1], [0], [0], [1], [0, 0, 1, 1], [], []>} : vector<2x128xf32>, vector<128x512xf32>, vector<2x512xf32> -> vector<2x512xf32>
    %19 = arith.addf %16, %18 : vector<2x512xf32>
    %c0_25 = arith.constant 0 : index
    %c0_26 = arith.constant 0 : index
    %20 = vector.load %arg7[%c0_25, %c0_26] : memref<2x128xf32, #tpu.memory_space<vmem>>, vector<2x128xf32>
    %21 = vector.extract_strided_slice %14 {offsets = [0, 0], sizes = [2, 256], strides = [1, 1]} : vector<2x512xf32> to vector<2x256xf32>
    %22 = arith.negf %21 : vector<2x256xf32>
    %23 = math.exp %22 : vector<2x256xf32>
    %cst_27 = arith.constant 1.000000e+00 : f32
    %24 = vector.broadcast %cst_27 : f32 to vector<2x256xf32>
    %25 = arith.addf %24, %23 : vector<2x256xf32>
    %26 = arith.divf %24, %25 : vector<2x256xf32>
    %27 = vector.extract_strided_slice %26 {offsets = [0, 0], sizes = [2, 128], strides = [1, 1]} : vector<2x256xf32> to vector<2x128xf32>
    %28 = vector.extract_strided_slice %26 {offsets = [0, 128], sizes = [2, 128], strides = [1, 1]} : vector<2x256xf32> to vector<2x128xf32>
    %29 = vector.extract_strided_slice %14 {offsets = [0, 256], sizes = [2, 128], strides = [1, 1]} : vector<2x512xf32> to vector<2x128xf32>
    %30 = math.tanh %29 : vector<2x128xf32>
    %31 = vector.extract_strided_slice %14 {offsets = [0, 384], sizes = [2, 128], strides = [1, 1]} : vector<2x512xf32> to vector<2x128xf32>
    %32 = arith.negf %31 : vector<2x128xf32>
    %33 = math.exp %32 : vector<2x128xf32>
    %cst_28 = arith.constant 1.000000e+00 : f32
    %34 = vector.broadcast %cst_28 : f32 to vector<2x128xf32>
    %35 = arith.addf %34, %33 : vector<2x128xf32>
    %36 = arith.divf %34, %35 : vector<2x128xf32>
    %37 = arith.mulf %28, %20 : vector<2x128xf32>
    %38 = arith.mulf %27, %30 : vector<2x128xf32>
    %39 = arith.addf %37, %38 : vector<2x128xf32>
    %40 = math.tanh %39 : vector<2x128xf32>
    %41 = arith.mulf %36, %40 : vector<2x128xf32>
    %c0_29 = arith.constant 0 : index
    %c0_30 = arith.constant 0 : index
    %42 = vector.load %arg9[%c0_29, %c0_30] : memref<2x128xf32, #tpu.memory_space<vmem>>, vector<2x128xf32>
    %43 = vector.extract_strided_slice %19 {offsets = [0, 0], sizes = [2, 256], strides = [1, 1]} : vector<2x512xf32> to vector<2x256xf32>
    %44 = arith.negf %43 : vector<2x256xf32>
    %45 = math.exp %44 : vector<2x256xf32>
    %cst_31 = arith.constant 1.000000e+00 : f32
    %46 = vector.broadcast %cst_31 : f32 to vector<2x256xf32>
    %47 = arith.addf %46, %45 : vector<2x256xf32>
    %48 = arith.divf %46, %47 : vector<2x256xf32>
    %49 = vector.extract_strided_slice %48 {offsets = [0, 0], sizes = [2, 128], strides = [1, 1]} : vector<2x256xf32> to vector<2x128xf32>
    %50 = vector.extract_strided_slice %48 {offsets = [0, 128], sizes = [2, 128], strides = [1, 1]} : vector<2x256xf32> to vector<2x128xf32>
    %51 = vector.extract_strided_slice %19 {offsets = [0, 256], sizes = [2, 128], strides = [1, 1]} : vector<2x512xf32> to vector<2x128xf32>
    %52 = math.tanh %51 : vector<2x128xf32>
    %53 = vector.extract_strided_slice %19 {offsets = [0, 384], sizes = [2, 128], strides = [1, 1]} : vector<2x512xf32> to vector<2x128xf32>
    %54 = arith.negf %53 : vector<2x128xf32>
    %55 = math.exp %54 : vector<2x128xf32>
    %cst_32 = arith.constant 1.000000e+00 : f32
    %56 = vector.broadcast %cst_32 : f32 to vector<2x128xf32>
    %57 = arith.addf %56, %55 : vector<2x128xf32>
    %58 = arith.divf %56, %57 : vector<2x128xf32>
    %59 = arith.mulf %50, %42 : vector<2x128xf32>
    %60 = arith.mulf %49, %52 : vector<2x128xf32>
    %61 = arith.addf %59, %60 : vector<2x128xf32>
    %62 = math.tanh %61 : vector<2x128xf32>
    %63 = arith.mulf %58, %62 : vector<2x128xf32>
    %c0_33 = arith.constant 0 : index
    %c0_34 = arith.constant 0 : index
    %64 = vector.load %arg6[%c0_33, %c0_34] : memref<2x128xf32, #tpu.memory_space<vmem>>, vector<2x128xf32>
    tpu.vector_store %arg6[%c0_33, %c0_34], %41 {strides = array<i32>} : memref<2x128xf32, #tpu.memory_space<vmem>>, vector<2x128xf32>,
    %c0_35 = arith.constant 0 : index
    %c0_36 = arith.constant 0 : index
    %65 = vector.load %arg7[%c0_35, %c0_36] : memref<2x128xf32, #tpu.memory_space<vmem>>, vector<2x128xf32>
    tpu.vector_store %arg7[%c0_35, %c0_36], %39 {strides = array<i32>} : memref<2x128xf32, #tpu.memory_space<vmem>>, vector<2x128xf32>,
    %c0_37 = arith.constant 0 : index
    %c0_38 = arith.constant 0 : index
    %66 = vector.load %arg8[%c0_37, %c0_38] : memref<2x128xf32, #tpu.memory_space<vmem>>, vector<2x128xf32>
    tpu.vector_store %arg8[%c0_37, %c0_38], %63 {strides = array<i32>} : memref<2x128xf32, #tpu.memory_space<vmem>>, vector<2x128xf32>,
    %c0_39 = arith.constant 0 : index
    %c0_40 = arith.constant 0 : index
    %67 = vector.load %arg9[%c0_39, %c0_40] : memref<2x128xf32, #tpu.memory_space<vmem>>, vector<2x128xf32>
    tpu.vector_store %arg9[%c0_39, %c0_40], %61 {strides = array<i32>} : memref<2x128xf32, #tpu.memory_space<vmem>>, vector<2x128xf32>,
    %68 = vector.shape_cast %41 : vector<2x128xf32> to vector<1x2x128xf32>
    %c0_41 = arith.constant 0 : index
    %c0_42 = arith.constant 0 : index
    %c0_43 = arith.constant 0 : index
    %69 = vector.load %arg5[%c0_41, %c0_42, %c0_43] : memref<8x2x256xf32, #tpu.memory_space<vmem>>, vector<1x2x128xf32>
    tpu.vector_store %arg5[%c0_41, %c0_42, %c0_43], %68 {strides = array<i32>} : memref<8x2x256xf32, #tpu.memory_space<vmem>>, vector<1x2x128xf32>,
    %70 = vector.shape_cast %63 : vector<2x128xf32> to vector<1x2x128xf32>
    %c7_44 = arith.constant 7 : index
    %c0_45 = arith.constant 0 : index
    %c128 = arith.constant 128 : index
    %71 = vector.load %arg5[%c7_44, %c0_45, %c128] : memref<8x2x256xf32, #tpu.memory_space<vmem>>, vector<1x2x128xf32>
    tpu.vector_store %arg5[%c7_44, %c0_45, %c128], %70 {strides = array<i32>} : memref<8x2x256xf32, #tpu.memory_space<vmem>>, vector<1x2x128xf32>,
    %c1 = arith.constant 1 : index
    %c0_46 = arith.constant 0 : index
    %c0_47 = arith.constant 0 : index
    %72 = vector.load %arg1[%c1, %c0_46, %c0_47] : memref<8x2x512xf32, #tpu.memory_space<vmem>>, vector<1x2x512xf32>
    %73 = vector.shape_cast %72 : vector<1x2x512xf32> to vector<2x512xf32>
    %c0_48 = arith.constant 0 : index
    %c0_49 = arith.constant 0 : index
    %74 = vector.load %arg6[%c0_48, %c0_49] : memref<2x128xf32, #tpu.memory_space<vmem>>, vector<2x128xf32>
    %cst_50 = arith.constant dense<0.000000e+00> : vector<2x512xf32>
    %75 = tpu.matmul %74, %8, %cst_50 {dimension_numbers = #tpu.dot_dimension_numbers<[1], [0], [0], [1], [0, 0, 1, 1], [], []>} : vector<2x128xf32>, vector<128x512xf32>, vector<2x512xf32> -> vector<2x512xf32>
    %76 = arith.addf %73, %75 : vector<2x512xf32>
    %c6 = arith.constant 6 : index
    %c0_51 = arith.constant 0 : index
    %c0_52 = arith.constant 0 : index
    %77 = vector.load %arg2[%c6, %c0_51, %c0_52] : memref<8x2x512xf32, #tpu.memory_space<vmem>>, vector<1x2x512xf32>
    %78 = vector.shape_cast %77 : vector<1x2x512xf32> to vector<2x512xf32>
    %c0_53 = arith.constant 0 : index
    %c0_54 = arith.constant 0 : index
    %79 = vector.load %arg8[%c0_53, %c0_54] : memref<2x128xf32, #tpu.memory_space<vmem>>, vector<2x128xf32>
    %cst_55 = arith.constant dense<0.000000e+00> : vector<2x512xf32>
    %80 = tpu.matmul %79, %9, %cst_55 {dimension_numbers = #tpu.dot_dimension_numbers<[1], [0], [0], [1], [0, 0, 1, 1], [], []>} : vector<2x128xf32>, vector<128x512xf32>, vector<2x512xf32> -> vector<2x512xf32>
    %81 = arith.addf %78, %80 : vector<2x512xf32>
    %c0_56 = arith.constant 0 : index
    %c0_57 = arith.constant 0 : index
    %82 = vector.load %arg7[%c0_56, %c0_57] : memref<2x128xf32, #tpu.memory_space<vmem>>, vector<2x128xf32>
    %83 = vector.extract_strided_slice %76 {offsets = [0, 0], sizes = [2, 256], strides = [1, 1]} : vector<2x512xf32> to vector<2x256xf32>
    %84 = arith.negf %83 : vector<2x256xf32>
    %85 = math.exp %84 : vector<2x256xf32>
    %cst_58 = arith.constant 1.000000e+00 : f32
    %86 = vector.broadcast %cst_58 : f32 to vector<2x256xf32>
    %87 = arith.addf %86, %85 : vector<2x256xf32>
    %88 = arith.divf %86, %87 : vector<2x256xf32>
    %89 = vector.extract_strided_slice %88 {offsets = [0, 0], sizes = [2, 128], strides = [1, 1]} : vector<2x256xf32> to vector<2x128xf32>
    %90 = vector.extract_strided_slice %88 {offsets = [0, 128], sizes = [2, 128], strides = [1, 1]} : vector<2x256xf32> to vector<2x128xf32>
    %91 = vector.extract_strided_slice %76 {offsets = [0, 256], sizes = [2, 128], strides = [1, 1]} : vector<2x512xf32> to vector<2x128xf32>
    %92 = math.tanh %91 : vector<2x128xf32>
    %93 = vector.extract_strided_slice %76 {offsets = [0, 384], sizes = [2, 128], strides = [1, 1]} : vector<2x512xf32> to vector<2x128xf32>
    %94 = arith.negf %93 : vector<2x128xf32>
    %95 = math.exp %94 : vector<2x128xf32>
    %cst_59 = arith.constant 1.000000e+00 : f32
    %96 = vector.broadcast %cst_59 : f32 to vector<2x128xf32>
    %97 = arith.addf %96, %95 : vector<2x128xf32>
    %98 = arith.divf %96, %97 : vector<2x128xf32>
    %99 = arith.mulf %90, %82 : vector<2x128xf32>
    %100 = arith.mulf %89, %92 : vector<2x128xf32>
    %101 = arith.addf %99, %100 : vector<2x128xf32>
    %102 = math.tanh %101 : vector<2x128xf32>
    %103 = arith.mulf %98, %102 : vector<2x128xf32>
    %c0_60 = arith.constant 0 : index
    %c0_61 = arith.constant 0 : index
    %104 = vector.load %arg9[%c0_60, %c0_61] : memref<2x128xf32, #tpu.memory_space<vmem>>, vector<2x128xf32>
    %105 = vector.extract_strided_slice %81 {offsets = [0, 0], sizes = [2, 256], strides = [1, 1]} : vector<2x512xf32> to vector<2x256xf32>
    %106 = arith.negf %105 : vector<2x256xf32>
    %107 = math.exp %106 : vector<2x256xf32>
    %cst_62 = arith.constant 1.000000e+00 : f32
    %108 = vector.broadcast %cst_62 : f32 to vector<2x256xf32>
    %109 = arith.addf %108, %107 : vector<2x256xf32>
    %110 = arith.divf %108, %109 : vector<2x256xf32>
    %111 = vector.extract_strided_slice %110 {offsets = [0, 0], sizes = [2, 128], strides = [1, 1]} : vector<2x256xf32> to vector<2x128xf32>
    %112 = vector.extract_strided_slice %110 {offsets = [0, 128], sizes = [2, 128], strides = [1, 1]} : vector<2x256xf32> to vector<2x128xf32>
    %113 = vector.extract_strided_slice %81 {offsets = [0, 256], sizes = [2, 128], strides = [1, 1]} : vector<2x512xf32> to vector<2x128xf32>
    %114 = math.tanh %113 : vector<2x128xf32>
    %115 = vector.extract_strided_slice %81 {offsets = [0, 384], sizes = [2, 128], strides = [1, 1]} : vector<2x512xf32> to vector<2x128xf32>
    %116 = arith.negf %115 : vector<2x128xf32>
    %117 = math.exp %116 : vector<2x128xf32>
    %cst_63 = arith.constant 1.000000e+00 : f32
    %118 = vector.broadcast %cst_63 : f32 to vector<2x128xf32>
    %119 = arith.addf %118, %117 : vector<2x128xf32>
    %120 = arith.divf %118, %119 : vector<2x128xf32>
    %121 = arith.mulf %112, %104 : vector<2x128xf32>
    %122 = arith.mulf %111, %114 : vector<2x128xf32>
    %123 = arith.addf %121, %122 : vector<2x128xf32>
    %124 = math.tanh %123 : vector<2x128xf32>
    %125 = arith.mulf %120, %124 : vector<2x128xf32>
    %c0_64 = arith.constant 0 : index
    %c0_65 = arith.constant 0 : index
    %126 = vector.load %arg6[%c0_64, %c0_65] : memref<2x128xf32, #tpu.memory_space<vmem>>, vector<2x128xf32>
    tpu.vector_store %arg6[%c0_64, %c0_65], %103 {strides = array<i32>} : memref<2x128xf32, #tpu.memory_space<vmem>>, vector<2x128xf32>,
    %c0_66 = arith.constant 0 : index
    %c0_67 = arith.constant 0 : index
    %127 = vector.load %arg7[%c0_66, %c0_67] : memref<2x128xf32, #tpu.memory_space<vmem>>, vector<2x128xf32>
    tpu.vector_store %arg7[%c0_66, %c0_67], %101 {strides = array<i32>} : memref<2x128xf32, #tpu.memory_space<vmem>>, vector<2x128xf32>,
    %c0_68 = arith.constant 0 : index
    %c0_69 = arith.constant 0 : index
    %128 = vector.load %arg8[%c0_68, %c0_69] : memref<2x128xf32, #tpu.memory_space<vmem>>, vector<2x128xf32>
    tpu.vector_store %arg8[%c0_68, %c0_69], %125 {strides = array<i32>} : memref<2x128xf32, #tpu.memory_space<vmem>>, vector<2x128xf32>,
    %c0_70 = arith.constant 0 : index
    %c0_71 = arith.constant 0 : index
    %129 = vector.load %arg9[%c0_70, %c0_71] : memref<2x128xf32, #tpu.memory_space<vmem>>, vector<2x128xf32>
    tpu.vector_store %arg9[%c0_70, %c0_71], %123 {strides = array<i32>} : memref<2x128xf32, #tpu.memory_space<vmem>>, vector<2x128xf32>,
    %130 = vector.shape_cast %103 : vector<2x128xf32> to vector<1x2x128xf32>
    %c1_72 = arith.constant 1 : index
    %c0_73 = arith.constant 0 : index
    %c0_74 = arith.constant 0 : index
    %131 = vector.load %arg5[%c1_72, %c0_73, %c0_74] : memref<8x2x256xf32, #tpu.memory_space<vmem>>, vector<1x2x128xf32>
    tpu.vector_store %arg5[%c1_72, %c0_73, %c0_74], %130 {strides = array<i32>} : memref<8x2x256xf32, #tpu.memory_space<vmem>>, vector<1x2x128xf32>,
    %132 = vector.shape_cast %125 : vector<2x128xf32> to vector<1x2x128xf32>
    %c6_75 = arith.constant 6 : index
    %c0_76 = arith.constant 0 : index
    %c128_77 = arith.constant 128 : index
    %133 = vector.load %arg5[%c6_75, %c0_76, %c128_77] : memref<8x2x256xf32, #tpu.memory_space<vmem>>, vector<1x2x128xf32>
    tpu.vector_store %arg5[%c6_75, %c0_76, %c128_77], %132 {strides = array<i32>} : memref<8x2x256xf32, #tpu.memory_space<vmem>>, vector<1x2x128xf32>,
    %c2 = arith.constant 2 : index
    %c0_78 = arith.constant 0 : index
    %c0_79 = arith.constant 0 : index
    %134 = vector.load %arg1[%c2, %c0_78, %c0_79] : memref<8x2x512xf32, #tpu.memory_space<vmem>>, vector<1x2x512xf32>
    %135 = vector.shape_cast %134 : vector<1x2x512xf32> to vector<2x512xf32>
    %c0_80 = arith.constant 0 : index
    %c0_81 = arith.constant 0 : index
    %136 = vector.load %arg6[%c0_80, %c0_81] : memref<2x128xf32, #tpu.memory_space<vmem>>, vector<2x128xf32>
    %cst_82 = arith.constant dense<0.000000e+00> : vector<2x512xf32>
    %137 = tpu.matmul %136, %8, %cst_82 {dimension_numbers = #tpu.dot_dimension_numbers<[1], [0], [0], [1], [0, 0, 1, 1], [], []>} : vector<2x128xf32>, vector<128x512xf32>, vector<2x512xf32> -> vector<2x512xf32>
    %138 = arith.addf %135, %137 : vector<2x512xf32>
    %c5 = arith.constant 5 : index
    %c0_83 = arith.constant 0 : index
    %c0_84 = arith.constant 0 : index
    %139 = vector.load %arg2[%c5, %c0_83, %c0_84] : memref<8x2x512xf32, #tpu.memory_space<vmem>>, vector<1x2x512xf32>
    %140 = vector.shape_cast %139 : vector<1x2x512xf32> to vector<2x512xf32>
    %c0_85 = arith.constant 0 : index
    %c0_86 = arith.constant 0 : index
    %141 = vector.load %arg8[%c0_85, %c0_86] : memref<2x128xf32, #tpu.memory_space<vmem>>, vector<2x128xf32>
    %cst_87 = arith.constant dense<0.000000e+00> : vector<2x512xf32>
    %142 = tpu.matmul %141, %9, %cst_87 {dimension_numbers = #tpu.dot_dimension_numbers<[1], [0], [0], [1], [0, 0, 1, 1], [], []>} : vector<2x128xf32>, vector<128x512xf32>, vector<2x512xf32> -> vector<2x512xf32>
    %143 = arith.addf %140, %142 : vector<2x512xf32>
    %c0_88 = arith.constant 0 : index
    %c0_89 = arith.constant 0 : index
    %144 = vector.load %arg7[%c0_88, %c0_89] : memref<2x128xf32, #tpu.memory_space<vmem>>, vector<2x128xf32>
    %145 = vector.extract_strided_slice %138 {offsets = [0, 0], sizes = [2, 256], strides = [1, 1]} : vector<2x512xf32> to vector<2x256xf32>
    %146 = arith.negf %145 : vector<2x256xf32>
    %147 = math.exp %146 : vector<2x256xf32>
    %cst_90 = arith.constant 1.000000e+00 : f32
    %148 = vector.broadcast %cst_90 : f32 to vector<2x256xf32>
    %149 = arith.addf %148, %147 : vector<2x256xf32>
    %150 = arith.divf %148, %149 : vector<2x256xf32>
    %151 = vector.extract_strided_slice %150 {offsets = [0, 0], sizes = [2, 128], strides = [1, 1]} : vector<2x256xf32> to vector<2x128xf32>
    %152 = vector.extract_strided_slice %150 {offsets = [0, 128], sizes = [2, 128], strides = [1, 1]} : vector<2x256xf32> to vector<2x128xf32>
    %153 = vector.extract_strided_slice %138 {offsets = [0, 256], sizes = [2, 128], strides = [1, 1]} : vector<2x512xf32> to vector<2x128xf32>
    %154 = math.tanh %153 : vector<2x128xf32>
    %155 = vector.extract_strided_slice %138 {offsets = [0, 384], sizes = [2, 128], strides = [1, 1]} : vector<2x512xf32> to vector<2x128xf32>
    %156 = arith.negf %155 : vector<2x128xf32>
    %157 = math.exp %156 : vector<2x128xf32>
    %cst_91 = arith.constant 1.000000e+00 : f32
    %158 = vector.broadcast %cst_91 : f32 to vector<2x128xf32>
    %159 = arith.addf %158, %157 : vector<2x128xf32>
    %160 = arith.divf %158, %159 : vector<2x128xf32>
    %161 = arith.mulf %152, %144 : vector<2x128xf32>
    %162 = arith.mulf %151, %154 : vector<2x128xf32>
    %163 = arith.addf %161, %162 : vector<2x128xf32>
    %164 = math.tanh %163 : vector<2x128xf32>
    %165 = arith.mulf %160, %164 : vector<2x128xf32>
    %c0_92 = arith.constant 0 : index
    %c0_93 = arith.constant 0 : index
    %166 = vector.load %arg9[%c0_92, %c0_93] : memref<2x128xf32, #tpu.memory_space<vmem>>, vector<2x128xf32>
    %167 = vector.extract_strided_slice %143 {offsets = [0, 0], sizes = [2, 256], strides = [1, 1]} : vector<2x512xf32> to vector<2x256xf32>
    %168 = arith.negf %167 : vector<2x256xf32>
    %169 = math.exp %168 : vector<2x256xf32>
    %cst_94 = arith.constant 1.000000e+00 : f32
    %170 = vector.broadcast %cst_94 : f32 to vector<2x256xf32>
    %171 = arith.addf %170, %169 : vector<2x256xf32>
    %172 = arith.divf %170, %171 : vector<2x256xf32>
    %173 = vector.extract_strided_slice %172 {offsets = [0, 0], sizes = [2, 128], strides = [1, 1]} : vector<2x256xf32> to vector<2x128xf32>
    %174 = vector.extract_strided_slice %172 {offsets = [0, 128], sizes = [2, 128], strides = [1, 1]} : vector<2x256xf32> to vector<2x128xf32>
    %175 = vector.extract_strided_slice %143 {offsets = [0, 256], sizes = [2, 128], strides = [1, 1]} : vector<2x512xf32> to vector<2x128xf32>
    %176 = math.tanh %175 : vector<2x128xf32>
    %177 = vector.extract_strided_slice %143 {offsets = [0, 384], sizes = [2, 128], strides = [1, 1]} : vector<2x512xf32> to vector<2x128xf32>
    %178 = arith.negf %177 : vector<2x128xf32>
    %179 = math.exp %178 : vector<2x128xf32>
    %cst_95 = arith.constant 1.000000e+00 : f32
    %180 = vector.broadcast %cst_95 : f32 to vector<2x128xf32>
    %181 = arith.addf %180, %179 : vector<2x128xf32>
    %182 = arith.divf %180, %181 : vector<2x128xf32>
    %183 = arith.mulf %174, %166 : vector<2x128xf32>
    %184 = arith.mulf %173, %176 : vector<2x128xf32>
    %185 = arith.addf %183, %184 : vector<2x128xf32>
    %186 = math.tanh %185 : vector<2x128xf32>
    %187 = arith.mulf %182, %186 : vector<2x128xf32>
    %c0_96 = arith.constant 0 : index
    %c0_97 = arith.constant 0 : index
    %188 = vector.load %arg6[%c0_96, %c0_97] : memref<2x128xf32, #tpu.memory_space<vmem>>, vector<2x128xf32>
    tpu.vector_store %arg6[%c0_96, %c0_97], %165 {strides = array<i32>} : memref<2x128xf32, #tpu.memory_space<vmem>>, vector<2x128xf32>,
    %c0_98 = arith.constant 0 : index
    %c0_99 = arith.constant 0 : index
    %189 = vector.load %arg7[%c0_98, %c0_99] : memref<2x128xf32, #tpu.memory_space<vmem>>, vector<2x128xf32>
    tpu.vector_store %arg7[%c0_98, %c0_99], %163 {strides = array<i32>} : memref<2x128xf32, #tpu.memory_space<vmem>>, vector<2x128xf32>,
    %c0_100 = arith.constant 0 : index
    %c0_101 = arith.constant 0 : index
    %190 = vector.load %arg8[%c0_100, %c0_101] : memref<2x128xf32, #tpu.memory_space<vmem>>, vector<2x128xf32>
    tpu.vector_store %arg8[%c0_100, %c0_101], %187 {strides = array<i32>} : memref<2x128xf32, #tpu.memory_space<vmem>>, vector<2x128xf32>,
    %c0_102 = arith.constant 0 : index
    %c0_103 = arith.constant 0 : index
    %191 = vector.load %arg9[%c0_102, %c0_103] : memref<2x128xf32, #tpu.memory_space<vmem>>, vector<2x128xf32>
    tpu.vector_store %arg9[%c0_102, %c0_103], %185 {strides = array<i32>} : memref<2x128xf32, #tpu.memory_space<vmem>>, vector<2x128xf32>,
    %192 = vector.shape_cast %165 : vector<2x128xf32> to vector<1x2x128xf32>
    %c2_104 = arith.constant 2 : index
    %c0_105 = arith.constant 0 : index
    %c0_106 = arith.constant 0 : index
    %193 = vector.load %arg5[%c2_104, %c0_105, %c0_106] : memref<8x2x256xf32, #tpu.memory_space<vmem>>, vector<1x2x128xf32>
    tpu.vector_store %arg5[%c2_104, %c0_105, %c0_106], %192 {strides = array<i32>} : memref<8x2x256xf32, #tpu.memory_space<vmem>>, vector<1x2x128xf32>,
    %194 = vector.shape_cast %187 : vector<2x128xf32> to vector<1x2x128xf32>
    %c5_107 = arith.constant 5 : index
    %c0_108 = arith.constant 0 : index
    %c128_109 = arith.constant 128 : index
    %195 = vector.load %arg5[%c5_107, %c0_108, %c128_109] : memref<8x2x256xf32, #tpu.memory_space<vmem>>, vector<1x2x128xf32>
    tpu.vector_store %arg5[%c5_107, %c0_108, %c128_109], %194 {strides = array<i32>} : memref<8x2x256xf32, #tpu.memory_space<vmem>>, vector<1x2x128xf32>,
    %c3 = arith.constant 3 : index
    %c0_110 = arith.constant 0 : index
    %c0_111 = arith.constant 0 : index
    %196 = vector.load %arg1[%c3, %c0_110, %c0_111] : memref<8x2x512xf32, #tpu.memory_space<vmem>>, vector<1x2x512xf32>
    %197 = vector.shape_cast %196 : vector<1x2x512xf32> to vector<2x512xf32>
    %c0_112 = arith.constant 0 : index
    %c0_113 = arith.constant 0 : index
    %198 = vector.load %arg6[%c0_112, %c0_113] : memref<2x128xf32, #tpu.memory_space<vmem>>, vector<2x128xf32>
    %cst_114 = arith.constant dense<0.000000e+00> : vector<2x512xf32>
    %199 = tpu.matmul %198, %8, %cst_114 {dimension_numbers = #tpu.dot_dimension_numbers<[1], [0], [0], [1], [0, 0, 1, 1], [], []>} : vector<2x128xf32>, vector<128x512xf32>, vector<2x512xf32> -> vector<2x512xf32>
    %200 = arith.addf %197, %199 : vector<2x512xf32>
    %c4 = arith.constant 4 : index
    %c0_115 = arith.constant 0 : index
    %c0_116 = arith.constant 0 : index
    %201 = vector.load %arg2[%c4, %c0_115, %c0_116] : memref<8x2x512xf32, #tpu.memory_space<vmem>>, vector<1x2x512xf32>
    %202 = vector.shape_cast %201 : vector<1x2x512xf32> to vector<2x512xf32>
    %c0_117 = arith.constant 0 : index
    %c0_118 = arith.constant 0 : index
    %203 = vector.load %arg8[%c0_117, %c0_118] : memref<2x128xf32, #tpu.memory_space<vmem>>, vector<2x128xf32>
    %cst_119 = arith.constant dense<0.000000e+00> : vector<2x512xf32>
    %204 = tpu.matmul %203, %9, %cst_119 {dimension_numbers = #tpu.dot_dimension_numbers<[1], [0], [0], [1], [0, 0, 1, 1], [], []>} : vector<2x128xf32>, vector<128x512xf32>, vector<2x512xf32> -> vector<2x512xf32>
    %205 = arith.addf %202, %204 : vector<2x512xf32>
    %c0_120 = arith.constant 0 : index
    %c0_121 = arith.constant 0 : index
    %206 = vector.load %arg7[%c0_120, %c0_121] : memref<2x128xf32, #tpu.memory_space<vmem>>, vector<2x128xf32>
    %207 = vector.extract_strided_slice %200 {offsets = [0, 0], sizes = [2, 256], strides = [1, 1]} : vector<2x512xf32> to vector<2x256xf32>
    %208 = arith.negf %207 : vector<2x256xf32>
    %209 = math.exp %208 : vector<2x256xf32>
    %cst_122 = arith.constant 1.000000e+00 : f32
    %210 = vector.broadcast %cst_122 : f32 to vector<2x256xf32>
    %211 = arith.addf %210, %209 : vector<2x256xf32>
    %212 = arith.divf %210, %211 : vector<2x256xf32>
    %213 = vector.extract_strided_slice %212 {offsets = [0, 0], sizes = [2, 128], strides = [1, 1]} : vector<2x256xf32> to vector<2x128xf32>
    %214 = vector.extract_strided_slice %212 {offsets = [0, 128], sizes = [2, 128], strides = [1, 1]} : vector<2x256xf32> to vector<2x128xf32>
    %215 = vector.extract_strided_slice %200 {offsets = [0, 256], sizes = [2, 128], strides = [1, 1]} : vector<2x512xf32> to vector<2x128xf32>
    %216 = math.tanh %215 : vector<2x128xf32>
    %217 = vector.extract_strided_slice %200 {offsets = [0, 384], sizes = [2, 128], strides = [1, 1]} : vector<2x512xf32> to vector<2x128xf32>
    %218 = arith.negf %217 : vector<2x128xf32>
    %219 = math.exp %218 : vector<2x128xf32>
    %cst_123 = arith.constant 1.000000e+00 : f32
    %220 = vector.broadcast %cst_123 : f32 to vector<2x128xf32>
    %221 = arith.addf %220, %219 : vector<2x128xf32>
    %222 = arith.divf %220, %221 : vector<2x128xf32>
    %223 = arith.mulf %214, %206 : vector<2x128xf32>
    %224 = arith.mulf %213, %216 : vector<2x128xf32>
    %225 = arith.addf %223, %224 : vector<2x128xf32>
    %226 = math.tanh %225 : vector<2x128xf32>
    %227 = arith.mulf %222, %226 : vector<2x128xf32>
    %c0_124 = arith.constant 0 : index
    %c0_125 = arith.constant 0 : index
    %228 = vector.load %arg9[%c0_124, %c0_125] : memref<2x128xf32, #tpu.memory_space<vmem>>, vector<2x128xf32>
    %229 = vector.extract_strided_slice %205 {offsets = [0, 0], sizes = [2, 256], strides = [1, 1]} : vector<2x512xf32> to vector<2x256xf32>
    %230 = arith.negf %229 : vector<2x256xf32>
    %231 = math.exp %230 : vector<2x256xf32>
    %cst_126 = arith.constant 1.000000e+00 : f32
    %232 = vector.broadcast %cst_126 : f32 to vector<2x256xf32>
    %233 = arith.addf %232, %231 : vector<2x256xf32>
    %234 = arith.divf %232, %233 : vector<2x256xf32>
    %235 = vector.extract_strided_slice %234 {offsets = [0, 0], sizes = [2, 128], strides = [1, 1]} : vector<2x256xf32> to vector<2x128xf32>
    %236 = vector.extract_strided_slice %234 {offsets = [0, 128], sizes = [2, 128], strides = [1, 1]} : vector<2x256xf32> to vector<2x128xf32>
    %237 = vector.extract_strided_slice %205 {offsets = [0, 256], sizes = [2, 128], strides = [1, 1]} : vector<2x512xf32> to vector<2x128xf32>
    %238 = math.tanh %237 : vector<2x128xf32>
    %239 = vector.extract_strided_slice %205 {offsets = [0, 384], sizes = [2, 128], strides = [1, 1]} : vector<2x512xf32> to vector<2x128xf32>
    %240 = arith.negf %239 : vector<2x128xf32>
    %241 = math.exp %240 : vector<2x128xf32>
    %cst_127 = arith.constant 1.000000e+00 : f32
    %242 = vector.broadcast %cst_127 : f32 to vector<2x128xf32>
    %243 = arith.addf %242, %241 : vector<2x128xf32>
    %244 = arith.divf %242, %243 : vector<2x128xf32>
    %245 = arith.mulf %236, %228 : vector<2x128xf32>
    %246 = arith.mulf %235, %238 : vector<2x128xf32>
    %247 = arith.addf %245, %246 : vector<2x128xf32>
    %248 = math.tanh %247 : vector<2x128xf32>
    %249 = arith.mulf %244, %248 : vector<2x128xf32>
    %c0_128 = arith.constant 0 : index
    %c0_129 = arith.constant 0 : index
    %250 = vector.load %arg6[%c0_128, %c0_129] : memref<2x128xf32, #tpu.memory_space<vmem>>, vector<2x128xf32>
    tpu.vector_store %arg6[%c0_128, %c0_129], %227 {strides = array<i32>} : memref<2x128xf32, #tpu.memory_space<vmem>>, vector<2x128xf32>,
    %c0_130 = arith.constant 0 : index
    %c0_131 = arith.constant 0 : index
    %251 = vector.load %arg7[%c0_130, %c0_131] : memref<2x128xf32, #tpu.memory_space<vmem>>, vector<2x128xf32>
    tpu.vector_store %arg7[%c0_130, %c0_131], %225 {strides = array<i32>} : memref<2x128xf32, #tpu.memory_space<vmem>>, vector<2x128xf32>,
    %c0_132 = arith.constant 0 : index
    %c0_133 = arith.constant 0 : index
    %252 = vector.load %arg8[%c0_132, %c0_133] : memref<2x128xf32, #tpu.memory_space<vmem>>, vector<2x128xf32>
    tpu.vector_store %arg8[%c0_132, %c0_133], %249 {strides = array<i32>} : memref<2x128xf32, #tpu.memory_space<vmem>>, vector<2x128xf32>,
    %c0_134 = arith.constant 0 : index
    %c0_135 = arith.constant 0 : index
    %253 = vector.load %arg9[%c0_134, %c0_135] : memref<2x128xf32, #tpu.memory_space<vmem>>, vector<2x128xf32>
    tpu.vector_store %arg9[%c0_134, %c0_135], %247 {strides = array<i32>} : memref<2x128xf32, #tpu.memory_space<vmem>>, vector<2x128xf32>,
    %254 = vector.shape_cast %227 : vector<2x128xf32> to vector<1x2x128xf32>
    %c3_136 = arith.constant 3 : index
    %c0_137 = arith.constant 0 : index
    %c0_138 = arith.constant 0 : index
    %255 = vector.load %arg5[%c3_136, %c0_137, %c0_138] : memref<8x2x256xf32, #tpu.memory_space<vmem>>, vector<1x2x128xf32>
    tpu.vector_store %arg5[%c3_136, %c0_137, %c0_138], %254 {strides = array<i32>} : memref<8x2x256xf32, #tpu.memory_space<vmem>>, vector<1x2x128xf32>,
    %256 = vector.shape_cast %249 : vector<2x128xf32> to vector<1x2x128xf32>
    %c4_139 = arith.constant 4 : index
    %c0_140 = arith.constant 0 : index
    %c128_141 = arith.constant 128 : index
    %257 = vector.load %arg5[%c4_139, %c0_140, %c128_141] : memref<8x2x256xf32, #tpu.memory_space<vmem>>, vector<1x2x128xf32>
    tpu.vector_store %arg5[%c4_139, %c0_140, %c128_141], %256 {strides = array<i32>} : memref<8x2x256xf32, #tpu.memory_space<vmem>>, vector<1x2x128xf32>,
    %c4_142 = arith.constant 4 : index
    %c0_143 = arith.constant 0 : index
    %c0_144 = arith.constant 0 : index
    %258 = vector.load %arg1[%c4_142, %c0_143, %c0_144] : memref<8x2x512xf32, #tpu.memory_space<vmem>>, vector<1x2x512xf32>
    %259 = vector.shape_cast %258 : vector<1x2x512xf32> to vector<2x512xf32>
    %c0_145 = arith.constant 0 : index
    %c0_146 = arith.constant 0 : index
    %260 = vector.load %arg6[%c0_145, %c0_146] : memref<2x128xf32, #tpu.memory_space<vmem>>, vector<2x128xf32>
    %cst_147 = arith.constant dense<0.000000e+00> : vector<2x512xf32>
    %261 = tpu.matmul %260, %8, %cst_147 {dimension_numbers = #tpu.dot_dimension_numbers<[1], [0], [0], [1], [0, 0, 1, 1], [], []>} : vector<2x128xf32>, vector<128x512xf32>, vector<2x512xf32> -> vector<2x512xf32>
    %262 = arith.addf %259, %261 : vector<2x512xf32>
    %c3_148 = arith.constant 3 : index
    %c0_149 = arith.constant 0 : index
    %c0_150 = arith.constant 0 : index
    %263 = vector.load %arg2[%c3_148, %c0_149, %c0_150] : memref<8x2x512xf32, #tpu.memory_space<vmem>>, vector<1x2x512xf32>
    %264 = vector.shape_cast %263 : vector<1x2x512xf32> to vector<2x512xf32>
    %c0_151 = arith.constant 0 : index
    %c0_152 = arith.constant 0 : index
    %265 = vector.load %arg8[%c0_151, %c0_152] : memref<2x128xf32, #tpu.memory_space<vmem>>, vector<2x128xf32>
    %cst_153 = arith.constant dense<0.000000e+00> : vector<2x512xf32>
    %266 = tpu.matmul %265, %9, %cst_153 {dimension_numbers = #tpu.dot_dimension_numbers<[1], [0], [0], [1], [0, 0, 1, 1], [], []>} : vector<2x128xf32>, vector<128x512xf32>, vector<2x512xf32> -> vector<2x512xf32>
    %267 = arith.addf %264, %266 : vector<2x512xf32>
    %c0_154 = arith.constant 0 : index
    %c0_155 = arith.constant 0 : index
    %268 = vector.load %arg7[%c0_154, %c0_155] : memref<2x128xf32, #tpu.memory_space<vmem>>, vector<2x128xf32>
    %269 = vector.extract_strided_slice %262 {offsets = [0, 0], sizes = [2, 256], strides = [1, 1]} : vector<2x512xf32> to vector<2x256xf32>
    %270 = arith.negf %269 : vector<2x256xf32>
    %271 = math.exp %270 : vector<2x256xf32>
    %cst_156 = arith.constant 1.000000e+00 : f32
    %272 = vector.broadcast %cst_156 : f32 to vector<2x256xf32>
    %273 = arith.addf %272, %271 : vector<2x256xf32>
    %274 = arith.divf %272, %273 : vector<2x256xf32>
    %275 = vector.extract_strided_slice %274 {offsets = [0, 0], sizes = [2, 128], strides = [1, 1]} : vector<2x256xf32> to vector<2x128xf32>
    %276 = vector.extract_strided_slice %274 {offsets = [0, 128], sizes = [2, 128], strides = [1, 1]} : vector<2x256xf32> to vector<2x128xf32>
    %277 = vector.extract_strided_slice %262 {offsets = [0, 256], sizes = [2, 128], strides = [1, 1]} : vector<2x512xf32> to vector<2x128xf32>
    %278 = math.tanh %277 : vector<2x128xf32>
    %279 = vector.extract_strided_slice %262 {offsets = [0, 384], sizes = [2, 128], strides = [1, 1]} : vector<2x512xf32> to vector<2x128xf32>
    %280 = arith.negf %279 : vector<2x128xf32>
    %281 = math.exp %280 : vector<2x128xf32>
    %cst_157 = arith.constant 1.000000e+00 : f32
    %282 = vector.broadcast %cst_157 : f32 to vector<2x128xf32>
    %283 = arith.addf %282, %281 : vector<2x128xf32>
    %284 = arith.divf %282, %283 : vector<2x128xf32>
    %285 = arith.mulf %276, %268 : vector<2x128xf32>
    %286 = arith.mulf %275, %278 : vector<2x128xf32>
    %287 = arith.addf %285, %286 : vector<2x128xf32>
    %288 = math.tanh %287 : vector<2x128xf32>
    %289 = arith.mulf %284, %288 : vector<2x128xf32>
    %c0_158 = arith.constant 0 : index
    %c0_159 = arith.constant 0 : index
    %290 = vector.load %arg9[%c0_158, %c0_159] : memref<2x128xf32, #tpu.memory_space<vmem>>, vector<2x128xf32>
    %291 = vector.extract_strided_slice %267 {offsets = [0, 0], sizes = [2, 256], strides = [1, 1]} : vector<2x512xf32> to vector<2x256xf32>
    %292 = arith.negf %291 : vector<2x256xf32>
    %293 = math.exp %292 : vector<2x256xf32>
    %cst_160 = arith.constant 1.000000e+00 : f32
    %294 = vector.broadcast %cst_160 : f32 to vector<2x256xf32>
    %295 = arith.addf %294, %293 : vector<2x256xf32>
    %296 = arith.divf %294, %295 : vector<2x256xf32>
    %297 = vector.extract_strided_slice %296 {offsets = [0, 0], sizes = [2, 128], strides = [1, 1]} : vector<2x256xf32> to vector<2x128xf32>
    %298 = vector.extract_strided_slice %296 {offsets = [0, 128], sizes = [2, 128], strides = [1, 1]} : vector<2x256xf32> to vector<2x128xf32>
    %299 = vector.extract_strided_slice %267 {offsets = [0, 256], sizes = [2, 128], strides = [1, 1]} : vector<2x512xf32> to vector<2x128xf32>
    %300 = math.tanh %299 : vector<2x128xf32>
    %301 = vector.extract_strided_slice %267 {offsets = [0, 384], sizes = [2, 128], strides = [1, 1]} : vector<2x512xf32> to vector<2x128xf32>
    %302 = arith.negf %301 : vector<2x128xf32>
    %303 = math.exp %302 : vector<2x128xf32>
    %cst_161 = arith.constant 1.000000e+00 : f32
    %304 = vector.broadcast %cst_161 : f32 to vector<2x128xf32>
    %305 = arith.addf %304, %303 : vector<2x128xf32>
    %306 = arith.divf %304, %305 : vector<2x128xf32>
    %307 = arith.mulf %298, %290 : vector<2x128xf32>
    %308 = arith.mulf %297, %300 : vector<2x128xf32>
    %309 = arith.addf %307, %308 : vector<2x128xf32>
    %310 = math.tanh %309 : vector<2x128xf32>
    %311 = arith.mulf %306, %310 : vector<2x128xf32>
    %c0_162 = arith.constant 0 : index
    %c0_163 = arith.constant 0 : index
    %312 = vector.load %arg6[%c0_162, %c0_163] : memref<2x128xf32, #tpu.memory_space<vmem>>, vector<2x128xf32>
    tpu.vector_store %arg6[%c0_162, %c0_163], %289 {strides = array<i32>} : memref<2x128xf32, #tpu.memory_space<vmem>>, vector<2x128xf32>,
    %c0_164 = arith.constant 0 : index
    %c0_165 = arith.constant 0 : index
    %313 = vector.load %arg7[%c0_164, %c0_165] : memref<2x128xf32, #tpu.memory_space<vmem>>, vector<2x128xf32>
    tpu.vector_store %arg7[%c0_164, %c0_165], %287 {strides = array<i32>} : memref<2x128xf32, #tpu.memory_space<vmem>>, vector<2x128xf32>,
    %c0_166 = arith.constant 0 : index
    %c0_167 = arith.constant 0 : index
    %314 = vector.load %arg8[%c0_166, %c0_167] : memref<2x128xf32, #tpu.memory_space<vmem>>, vector<2x128xf32>
    tpu.vector_store %arg8[%c0_166, %c0_167], %311 {strides = array<i32>} : memref<2x128xf32, #tpu.memory_space<vmem>>, vector<2x128xf32>,
    %c0_168 = arith.constant 0 : index
    %c0_169 = arith.constant 0 : index
    %315 = vector.load %arg9[%c0_168, %c0_169] : memref<2x128xf32, #tpu.memory_space<vmem>>, vector<2x128xf32>
    tpu.vector_store %arg9[%c0_168, %c0_169], %309 {strides = array<i32>} : memref<2x128xf32, #tpu.memory_space<vmem>>, vector<2x128xf32>,
    %316 = vector.shape_cast %289 : vector<2x128xf32> to vector<1x2x128xf32>
    %c4_170 = arith.constant 4 : index
    %c0_171 = arith.constant 0 : index
    %c0_172 = arith.constant 0 : index
    %317 = vector.load %arg5[%c4_170, %c0_171, %c0_172] : memref<8x2x256xf32, #tpu.memory_space<vmem>>, vector<1x2x128xf32>
    tpu.vector_store %arg5[%c4_170, %c0_171, %c0_172], %316 {strides = array<i32>} : memref<8x2x256xf32, #tpu.memory_space<vmem>>, vector<1x2x128xf32>,
    %318 = vector.shape_cast %311 : vector<2x128xf32> to vector<1x2x128xf32>
    %c3_173 = arith.constant 3 : index
    %c0_174 = arith.constant 0 : index
    %c128_175 = arith.constant 128 : index
    %319 = vector.load %arg5[%c3_173, %c0_174, %c128_175] : memref<8x2x256xf32, #tpu.memory_space<vmem>>, vector<1x2x128xf32>
    tpu.vector_store %arg5[%c3_173, %c0_174, %c128_175], %318 {strides = array<i32>} : memref<8x2x256xf32, #tpu.memory_space<vmem>>, vector<1x2x128xf32>,
    %c5_176 = arith.constant 5 : index
    %c0_177 = arith.constant 0 : index
    %c0_178 = arith.constant 0 : index
    %320 = vector.load %arg1[%c5_176, %c0_177, %c0_178] : memref<8x2x512xf32, #tpu.memory_space<vmem>>, vector<1x2x512xf32>
    %321 = vector.shape_cast %320 : vector<1x2x512xf32> to vector<2x512xf32>
    %c0_179 = arith.constant 0 : index
    %c0_180 = arith.constant 0 : index
    %322 = vector.load %arg6[%c0_179, %c0_180] : memref<2x128xf32, #tpu.memory_space<vmem>>, vector<2x128xf32>
    %cst_181 = arith.constant dense<0.000000e+00> : vector<2x512xf32>
    %323 = tpu.matmul %322, %8, %cst_181 {dimension_numbers = #tpu.dot_dimension_numbers<[1], [0], [0], [1], [0, 0, 1, 1], [], []>} : vector<2x128xf32>, vector<128x512xf32>, vector<2x512xf32> -> vector<2x512xf32>
    %324 = arith.addf %321, %323 : vector<2x512xf32>
    %c2_182 = arith.constant 2 : index
    %c0_183 = arith.constant 0 : index
    %c0_184 = arith.constant 0 : index
    %325 = vector.load %arg2[%c2_182, %c0_183, %c0_184] : memref<8x2x512xf32, #tpu.memory_space<vmem>>, vector<1x2x512xf32>
    %326 = vector.shape_cast %325 : vector<1x2x512xf32> to vector<2x512xf32>
    %c0_185 = arith.constant 0 : index
    %c0_186 = arith.constant 0 : index
    %327 = vector.load %arg8[%c0_185, %c0_186] : memref<2x128xf32, #tpu.memory_space<vmem>>, vector<2x128xf32>
    %cst_187 = arith.constant dense<0.000000e+00> : vector<2x512xf32>
    %328 = tpu.matmul %327, %9, %cst_187 {dimension_numbers = #tpu.dot_dimension_numbers<[1], [0], [0], [1], [0, 0, 1, 1], [], []>} : vector<2x128xf32>, vector<128x512xf32>, vector<2x512xf32> -> vector<2x512xf32>
    %329 = arith.addf %326, %328 : vector<2x512xf32>
    %c0_188 = arith.constant 0 : index
    %c0_189 = arith.constant 0 : index
    %330 = vector.load %arg7[%c0_188, %c0_189] : memref<2x128xf32, #tpu.memory_space<vmem>>, vector<2x128xf32>
    %331 = vector.extract_strided_slice %324 {offsets = [0, 0], sizes = [2, 256], strides = [1, 1]} : vector<2x512xf32> to vector<2x256xf32>
    %332 = arith.negf %331 : vector<2x256xf32>
    %333 = math.exp %332 : vector<2x256xf32>
    %cst_190 = arith.constant 1.000000e+00 : f32
    %334 = vector.broadcast %cst_190 : f32 to vector<2x256xf32>
    %335 = arith.addf %334, %333 : vector<2x256xf32>
    %336 = arith.divf %334, %335 : vector<2x256xf32>
    %337 = vector.extract_strided_slice %336 {offsets = [0, 0], sizes = [2, 128], strides = [1, 1]} : vector<2x256xf32> to vector<2x128xf32>
    %338 = vector.extract_strided_slice %336 {offsets = [0, 128], sizes = [2, 128], strides = [1, 1]} : vector<2x256xf32> to vector<2x128xf32>
    %339 = vector.extract_strided_slice %324 {offsets = [0, 256], sizes = [2, 128], strides = [1, 1]} : vector<2x512xf32> to vector<2x128xf32>
    %340 = math.tanh %339 : vector<2x128xf32>
    %341 = vector.extract_strided_slice %324 {offsets = [0, 384], sizes = [2, 128], strides = [1, 1]} : vector<2x512xf32> to vector<2x128xf32>
    %342 = arith.negf %341 : vector<2x128xf32>
    %343 = math.exp %342 : vector<2x128xf32>
    %cst_191 = arith.constant 1.000000e+00 : f32
    %344 = vector.broadcast %cst_191 : f32 to vector<2x128xf32>
    %345 = arith.addf %344, %343 : vector<2x128xf32>
    %346 = arith.divf %344, %345 : vector<2x128xf32>
    %347 = arith.mulf %338, %330 : vector<2x128xf32>
    %348 = arith.mulf %337, %340 : vector<2x128xf32>
    %349 = arith.addf %347, %348 : vector<2x128xf32>
    %350 = math.tanh %349 : vector<2x128xf32>
    %351 = arith.mulf %346, %350 : vector<2x128xf32>
    %c0_192 = arith.constant 0 : index
    %c0_193 = arith.constant 0 : index
    %352 = vector.load %arg9[%c0_192, %c0_193] : memref<2x128xf32, #tpu.memory_space<vmem>>, vector<2x128xf32>
    %353 = vector.extract_strided_slice %329 {offsets = [0, 0], sizes = [2, 256], strides = [1, 1]} : vector<2x512xf32> to vector<2x256xf32>
    %354 = arith.negf %353 : vector<2x256xf32>
    %355 = math.exp %354 : vector<2x256xf32>
    %cst_194 = arith.constant 1.000000e+00 : f32
    %356 = vector.broadcast %cst_194 : f32 to vector<2x256xf32>
    %357 = arith.addf %356, %355 : vector<2x256xf32>
    %358 = arith.divf %356, %357 : vector<2x256xf32>
    %359 = vector.extract_strided_slice %358 {offsets = [0, 0], sizes = [2, 128], strides = [1, 1]} : vector<2x256xf32> to vector<2x128xf32>
    %360 = vector.extract_strided_slice %358 {offsets = [0, 128], sizes = [2, 128], strides = [1, 1]} : vector<2x256xf32> to vector<2x128xf32>
    %361 = vector.extract_strided_slice %329 {offsets = [0, 256], sizes = [2, 128], strides = [1, 1]} : vector<2x512xf32> to vector<2x128xf32>
    %362 = math.tanh %361 : vector<2x128xf32>
    %363 = vector.extract_strided_slice %329 {offsets = [0, 384], sizes = [2, 128], strides = [1, 1]} : vector<2x512xf32> to vector<2x128xf32>
    %364 = arith.negf %363 : vector<2x128xf32>
    %365 = math.exp %364 : vector<2x128xf32>
    %cst_195 = arith.constant 1.000000e+00 : f32
    %366 = vector.broadcast %cst_195 : f32 to vector<2x128xf32>
    %367 = arith.addf %366, %365 : vector<2x128xf32>
    %368 = arith.divf %366, %367 : vector<2x128xf32>
    %369 = arith.mulf %360, %352 : vector<2x128xf32>
    %370 = arith.mulf %359, %362 : vector<2x128xf32>
    %371 = arith.addf %369, %370 : vector<2x128xf32>
    %372 = math.tanh %371 : vector<2x128xf32>
    %373 = arith.mulf %368, %372 : vector<2x128xf32>
    %c0_196 = arith.constant 0 : index
    %c0_197 = arith.constant 0 : index
    %374 = vector.load %arg6[%c0_196, %c0_197] : memref<2x128xf32, #tpu.memory_space<vmem>>, vector<2x128xf32>
    tpu.vector_store %arg6[%c0_196, %c0_197], %351 {strides = array<i32>} : memref<2x128xf32, #tpu.memory_space<vmem>>, vector<2x128xf32>,
    %c0_198 = arith.constant 0 : index
    %c0_199 = arith.constant 0 : index
    %375 = vector.load %arg7[%c0_198, %c0_199] : memref<2x128xf32, #tpu.memory_space<vmem>>, vector<2x128xf32>
    tpu.vector_store %arg7[%c0_198, %c0_199], %349 {strides = array<i32>} : memref<2x128xf32, #tpu.memory_space<vmem>>, vector<2x128xf32>,
    %c0_200 = arith.constant 0 : index
    %c0_201 = arith.constant 0 : index
    %376 = vector.load %arg8[%c0_200, %c0_201] : memref<2x128xf32, #tpu.memory_space<vmem>>, vector<2x128xf32>
    tpu.vector_store %arg8[%c0_200, %c0_201], %373 {strides = array<i32>} : memref<2x128xf32, #tpu.memory_space<vmem>>, vector<2x128xf32>,
    %c0_202 = arith.constant 0 : index
    %c0_203 = arith.constant 0 : index
    %377 = vector.load %arg9[%c0_202, %c0_203] : memref<2x128xf32, #tpu.memory_space<vmem>>, vector<2x128xf32>
    tpu.vector_store %arg9[%c0_202, %c0_203], %371 {strides = array<i32>} : memref<2x128xf32, #tpu.memory_space<vmem>>, vector<2x128xf32>,
    %378 = vector.shape_cast %351 : vector<2x128xf32> to vector<1x2x128xf32>
    %c5_204 = arith.constant 5 : index
    %c0_205 = arith.constant 0 : index
    %c0_206 = arith.constant 0 : index
    %379 = vector.load %arg5[%c5_204, %c0_205, %c0_206] : memref<8x2x256xf32, #tpu.memory_space<vmem>>, vector<1x2x128xf32>
    tpu.vector_store %arg5[%c5_204, %c0_205, %c0_206], %378 {strides = array<i32>} : memref<8x2x256xf32, #tpu.memory_space<vmem>>, vector<1x2x128xf32>,
    %380 = vector.shape_cast %373 : vector<2x128xf32> to vector<1x2x128xf32>
    %c2_207 = arith.constant 2 : index
    %c0_208 = arith.constant 0 : index
    %c128_209 = arith.constant 128 : index
    %381 = vector.load %arg5[%c2_207, %c0_208, %c128_209] : memref<8x2x256xf32, #tpu.memory_space<vmem>>, vector<1x2x128xf32>
    tpu.vector_store %arg5[%c2_207, %c0_208, %c128_209], %380 {strides = array<i32>} : memref<8x2x256xf32, #tpu.memory_space<vmem>>, vector<1x2x128xf32>,
    %c6_210 = arith.constant 6 : index
    %c0_211 = arith.constant 0 : index
    %c0_212 = arith.constant 0 : index
    %382 = vector.load %arg1[%c6_210, %c0_211, %c0_212] : memref<8x2x512xf32, #tpu.memory_space<vmem>>, vector<1x2x512xf32>
    %383 = vector.shape_cast %382 : vector<1x2x512xf32> to vector<2x512xf32>
    %c0_213 = arith.constant 0 : index
    %c0_214 = arith.constant 0 : index
    %384 = vector.load %arg6[%c0_213, %c0_214] : memref<2x128xf32, #tpu.memory_space<vmem>>, vector<2x128xf32>
    %cst_215 = arith.constant dense<0.000000e+00> : vector<2x512xf32>
    %385 = tpu.matmul %384, %8, %cst_215 {dimension_numbers = #tpu.dot_dimension_numbers<[1], [0], [0], [1], [0, 0, 1, 1], [], []>} : vector<2x128xf32>, vector<128x512xf32>, vector<2x512xf32> -> vector<2x512xf32>
    %386 = arith.addf %383, %385 : vector<2x512xf32>
    %c1_216 = arith.constant 1 : index
    %c0_217 = arith.constant 0 : index
    %c0_218 = arith.constant 0 : index
    %387 = vector.load %arg2[%c1_216, %c0_217, %c0_218] : memref<8x2x512xf32, #tpu.memory_space<vmem>>, vector<1x2x512xf32>
    %388 = vector.shape_cast %387 : vector<1x2x512xf32> to vector<2x512xf32>
    %c0_219 = arith.constant 0 : index
    %c0_220 = arith.constant 0 : index
    %389 = vector.load %arg8[%c0_219, %c0_220] : memref<2x128xf32, #tpu.memory_space<vmem>>, vector<2x128xf32>
    %cst_221 = arith.constant dense<0.000000e+00> : vector<2x512xf32>
    %390 = tpu.matmul %389, %9, %cst_221 {dimension_numbers = #tpu.dot_dimension_numbers<[1], [0], [0], [1], [0, 0, 1, 1], [], []>} : vector<2x128xf32>, vector<128x512xf32>, vector<2x512xf32> -> vector<2x512xf32>
    %391 = arith.addf %388, %390 : vector<2x512xf32>
    %c0_222 = arith.constant 0 : index
    %c0_223 = arith.constant 0 : index
    %392 = vector.load %arg7[%c0_222, %c0_223] : memref<2x128xf32, #tpu.memory_space<vmem>>, vector<2x128xf32>
    %393 = vector.extract_strided_slice %386 {offsets = [0, 0], sizes = [2, 256], strides = [1, 1]} : vector<2x512xf32> to vector<2x256xf32>
    %394 = arith.negf %393 : vector<2x256xf32>
    %395 = math.exp %394 : vector<2x256xf32>
    %cst_224 = arith.constant 1.000000e+00 : f32
    %396 = vector.broadcast %cst_224 : f32 to vector<2x256xf32>
    %397 = arith.addf %396, %395 : vector<2x256xf32>
    %398 = arith.divf %396, %397 : vector<2x256xf32>
    %399 = vector.extract_strided_slice %398 {offsets = [0, 0], sizes = [2, 128], strides = [1, 1]} : vector<2x256xf32> to vector<2x128xf32>
    %400 = vector.extract_strided_slice %398 {offsets = [0, 128], sizes = [2, 128], strides = [1, 1]} : vector<2x256xf32> to vector<2x128xf32>
    %401 = vector.extract_strided_slice %386 {offsets = [0, 256], sizes = [2, 128], strides = [1, 1]} : vector<2x512xf32> to vector<2x128xf32>
    %402 = math.tanh %401 : vector<2x128xf32>
    %403 = vector.extract_strided_slice %386 {offsets = [0, 384], sizes = [2, 128], strides = [1, 1]} : vector<2x512xf32> to vector<2x128xf32>
    %404 = arith.negf %403 : vector<2x128xf32>
    %405 = math.exp %404 : vector<2x128xf32>
    %cst_225 = arith.constant 1.000000e+00 : f32
    %406 = vector.broadcast %cst_225 : f32 to vector<2x128xf32>
    %407 = arith.addf %406, %405 : vector<2x128xf32>
    %408 = arith.divf %406, %407 : vector<2x128xf32>
    %409 = arith.mulf %400, %392 : vector<2x128xf32>
    %410 = arith.mulf %399, %402 : vector<2x128xf32>
    %411 = arith.addf %409, %410 : vector<2x128xf32>
    %412 = math.tanh %411 : vector<2x128xf32>
    %413 = arith.mulf %408, %412 : vector<2x128xf32>
    %c0_226 = arith.constant 0 : index
    %c0_227 = arith.constant 0 : index
    %414 = vector.load %arg9[%c0_226, %c0_227] : memref<2x128xf32, #tpu.memory_space<vmem>>, vector<2x128xf32>
    %415 = vector.extract_strided_slice %391 {offsets = [0, 0], sizes = [2, 256], strides = [1, 1]} : vector<2x512xf32> to vector<2x256xf32>
    %416 = arith.negf %415 : vector<2x256xf32>
    %417 = math.exp %416 : vector<2x256xf32>
    %cst_228 = arith.constant 1.000000e+00 : f32
    %418 = vector.broadcast %cst_228 : f32 to vector<2x256xf32>
    %419 = arith.addf %418, %417 : vector<2x256xf32>
    %420 = arith.divf %418, %419 : vector<2x256xf32>
    %421 = vector.extract_strided_slice %420 {offsets = [0, 0], sizes = [2, 128], strides = [1, 1]} : vector<2x256xf32> to vector<2x128xf32>
    %422 = vector.extract_strided_slice %420 {offsets = [0, 128], sizes = [2, 128], strides = [1, 1]} : vector<2x256xf32> to vector<2x128xf32>
    %423 = vector.extract_strided_slice %391 {offsets = [0, 256], sizes = [2, 128], strides = [1, 1]} : vector<2x512xf32> to vector<2x128xf32>
    %424 = math.tanh %423 : vector<2x128xf32>
    %425 = vector.extract_strided_slice %391 {offsets = [0, 384], sizes = [2, 128], strides = [1, 1]} : vector<2x512xf32> to vector<2x128xf32>
    %426 = arith.negf %425 : vector<2x128xf32>
    %427 = math.exp %426 : vector<2x128xf32>
    %cst_229 = arith.constant 1.000000e+00 : f32
    %428 = vector.broadcast %cst_229 : f32 to vector<2x128xf32>
    %429 = arith.addf %428, %427 : vector<2x128xf32>
    %430 = arith.divf %428, %429 : vector<2x128xf32>
    %431 = arith.mulf %422, %414 : vector<2x128xf32>
    %432 = arith.mulf %421, %424 : vector<2x128xf32>
    %433 = arith.addf %431, %432 : vector<2x128xf32>
    %434 = math.tanh %433 : vector<2x128xf32>
    %435 = arith.mulf %430, %434 : vector<2x128xf32>
    %c0_230 = arith.constant 0 : index
    %c0_231 = arith.constant 0 : index
    %436 = vector.load %arg6[%c0_230, %c0_231] : memref<2x128xf32, #tpu.memory_space<vmem>>, vector<2x128xf32>
    tpu.vector_store %arg6[%c0_230, %c0_231], %413 {strides = array<i32>} : memref<2x128xf32, #tpu.memory_space<vmem>>, vector<2x128xf32>,
    %c0_232 = arith.constant 0 : index
    %c0_233 = arith.constant 0 : index
    %437 = vector.load %arg7[%c0_232, %c0_233] : memref<2x128xf32, #tpu.memory_space<vmem>>, vector<2x128xf32>
    tpu.vector_store %arg7[%c0_232, %c0_233], %411 {strides = array<i32>} : memref<2x128xf32, #tpu.memory_space<vmem>>, vector<2x128xf32>,
    %c0_234 = arith.constant 0 : index
    %c0_235 = arith.constant 0 : index
    %438 = vector.load %arg8[%c0_234, %c0_235] : memref<2x128xf32, #tpu.memory_space<vmem>>, vector<2x128xf32>
    tpu.vector_store %arg8[%c0_234, %c0_235], %435 {strides = array<i32>} : memref<2x128xf32, #tpu.memory_space<vmem>>, vector<2x128xf32>,
    %c0_236 = arith.constant 0 : index
    %c0_237 = arith.constant 0 : index
    %439 = vector.load %arg9[%c0_236, %c0_237] : memref<2x128xf32, #tpu.memory_space<vmem>>, vector<2x128xf32>
    tpu.vector_store %arg9[%c0_236, %c0_237], %433 {strides = array<i32>} : memref<2x128xf32, #tpu.memory_space<vmem>>, vector<2x128xf32>,
    %440 = vector.shape_cast %413 : vector<2x128xf32> to vector<1x2x128xf32>
    %c6_238 = arith.constant 6 : index
    %c0_239 = arith.constant 0 : index
    %c0_240 = arith.constant 0 : index
    %441 = vector.load %arg5[%c6_238, %c0_239, %c0_240] : memref<8x2x256xf32, #tpu.memory_space<vmem>>, vector<1x2x128xf32>
    tpu.vector_store %arg5[%c6_238, %c0_239, %c0_240], %440 {strides = array<i32>} : memref<8x2x256xf32, #tpu.memory_space<vmem>>, vector<1x2x128xf32>,
    %442 = vector.shape_cast %435 : vector<2x128xf32> to vector<1x2x128xf32>
    %c1_241 = arith.constant 1 : index
    %c0_242 = arith.constant 0 : index
    %c128_243 = arith.constant 128 : index
    %443 = vector.load %arg5[%c1_241, %c0_242, %c128_243] : memref<8x2x256xf32, #tpu.memory_space<vmem>>, vector<1x2x128xf32>
    tpu.vector_store %arg5[%c1_241, %c0_242, %c128_243], %442 {strides = array<i32>} : memref<8x2x256xf32, #tpu.memory_space<vmem>>, vector<1x2x128xf32>,
    %c7_244 = arith.constant 7 : index
    %c0_245 = arith.constant 0 : index
    %c0_246 = arith.constant 0 : index
    %444 = vector.load %arg1[%c7_244, %c0_245, %c0_246] : memref<8x2x512xf32, #tpu.memory_space<vmem>>, vector<1x2x512xf32>
    %445 = vector.shape_cast %444 : vector<1x2x512xf32> to vector<2x512xf32>
    %c0_247 = arith.constant 0 : index
    %c0_248 = arith.constant 0 : index
    %446 = vector.load %arg6[%c0_247, %c0_248] : memref<2x128xf32, #tpu.memory_space<vmem>>, vector<2x128xf32>
    %cst_249 = arith.constant dense<0.000000e+00> : vector<2x512xf32>
    %447 = tpu.matmul %446, %8, %cst_249 {dimension_numbers = #tpu.dot_dimension_numbers<[1], [0], [0], [1], [0, 0, 1, 1], [], []>} : vector<2x128xf32>, vector<128x512xf32>, vector<2x512xf32> -> vector<2x512xf32>
    %448 = arith.addf %445, %447 : vector<2x512xf32>
    %c0_250 = arith.constant 0 : index
    %c0_251 = arith.constant 0 : index
    %c0_252 = arith.constant 0 : index
    %449 = vector.load %arg2[%c0_250, %c0_251, %c0_252] : memref<8x2x512xf32, #tpu.memory_space<vmem>>, vector<1x2x512xf32>
    %450 = vector.shape_cast %449 : vector<1x2x512xf32> to vector<2x512xf32>
    %c0_253 = arith.constant 0 : index
    %c0_254 = arith.constant 0 : index
    %451 = vector.load %arg8[%c0_253, %c0_254] : memref<2x128xf32, #tpu.memory_space<vmem>>, vector<2x128xf32>
    %cst_255 = arith.constant dense<0.000000e+00> : vector<2x512xf32>
    %452 = tpu.matmul %451, %9, %cst_255 {dimension_numbers = #tpu.dot_dimension_numbers<[1], [0], [0], [1], [0, 0, 1, 1], [], []>} : vector<2x128xf32>, vector<128x512xf32>, vector<2x512xf32> -> vector<2x512xf32>
    %453 = arith.addf %450, %452 : vector<2x512xf32>
    %c0_256 = arith.constant 0 : index
    %c0_257 = arith.constant 0 : index
    %454 = vector.load %arg7[%c0_256, %c0_257] : memref<2x128xf32, #tpu.memory_space<vmem>>, vector<2x128xf32>
    %455 = vector.extract_strided_slice %448 {offsets = [0, 0], sizes = [2, 256], strides = [1, 1]} : vector<2x512xf32> to vector<2x256xf32>
    %456 = arith.negf %455 : vector<2x256xf32>
    %457 = math.exp %456 : vector<2x256xf32>
    %cst_258 = arith.constant 1.000000e+00 : f32
    %458 = vector.broadcast %cst_258 : f32 to vector<2x256xf32>
    %459 = arith.addf %458, %457 : vector<2x256xf32>
    %460 = arith.divf %458, %459 : vector<2x256xf32>
    %461 = vector.extract_strided_slice %460 {offsets = [0, 0], sizes = [2, 128], strides = [1, 1]} : vector<2x256xf32> to vector<2x128xf32>
    %462 = vector.extract_strided_slice %460 {offsets = [0, 128], sizes = [2, 128], strides = [1, 1]} : vector<2x256xf32> to vector<2x128xf32>
    %463 = vector.extract_strided_slice %448 {offsets = [0, 256], sizes = [2, 128], strides = [1, 1]} : vector<2x512xf32> to vector<2x128xf32>
    %464 = math.tanh %463 : vector<2x128xf32>
    %465 = vector.extract_strided_slice %448 {offsets = [0, 384], sizes = [2, 128], strides = [1, 1]} : vector<2x512xf32> to vector<2x128xf32>
    %466 = arith.negf %465 : vector<2x128xf32>
    %467 = math.exp %466 : vector<2x128xf32>
    %cst_259 = arith.constant 1.000000e+00 : f32
    %468 = vector.broadcast %cst_259 : f32 to vector<2x128xf32>
    %469 = arith.addf %468, %467 : vector<2x128xf32>
    %470 = arith.divf %468, %469 : vector<2x128xf32>
    %471 = arith.mulf %462, %454 : vector<2x128xf32>
    %472 = arith.mulf %461, %464 : vector<2x128xf32>
    %473 = arith.addf %471, %472 : vector<2x128xf32>
    %474 = math.tanh %473 : vector<2x128xf32>
    %475 = arith.mulf %470, %474 : vector<2x128xf32>
    %c0_260 = arith.constant 0 : index
    %c0_261 = arith.constant 0 : index
    %476 = vector.load %arg9[%c0_260, %c0_261] : memref<2x128xf32, #tpu.memory_space<vmem>>, vector<2x128xf32>
    %477 = vector.extract_strided_slice %453 {offsets = [0, 0], sizes = [2, 256], strides = [1, 1]} : vector<2x512xf32> to vector<2x256xf32>
    %478 = arith.negf %477 : vector<2x256xf32>
    %479 = math.exp %478 : vector<2x256xf32>
    %cst_262 = arith.constant 1.000000e+00 : f32
    %480 = vector.broadcast %cst_262 : f32 to vector<2x256xf32>
    %481 = arith.addf %480, %479 : vector<2x256xf32>
    %482 = arith.divf %480, %481 : vector<2x256xf32>
    %483 = vector.extract_strided_slice %482 {offsets = [0, 0], sizes = [2, 128], strides = [1, 1]} : vector<2x256xf32> to vector<2x128xf32>
    %484 = vector.extract_strided_slice %482 {offsets = [0, 128], sizes = [2, 128], strides = [1, 1]} : vector<2x256xf32> to vector<2x128xf32>
    %485 = vector.extract_strided_slice %453 {offsets = [0, 256], sizes = [2, 128], strides = [1, 1]} : vector<2x512xf32> to vector<2x128xf32>
    %486 = math.tanh %485 : vector<2x128xf32>
    %487 = vector.extract_strided_slice %453 {offsets = [0, 384], sizes = [2, 128], strides = [1, 1]} : vector<2x512xf32> to vector<2x128xf32>
    %488 = arith.negf %487 : vector<2x128xf32>
    %489 = math.exp %488 : vector<2x128xf32>
    %cst_263 = arith.constant 1.000000e+00 : f32
    %490 = vector.broadcast %cst_263 : f32 to vector<2x128xf32>
    %491 = arith.addf %490, %489 : vector<2x128xf32>
    %492 = arith.divf %490, %491 : vector<2x128xf32>
    %493 = arith.mulf %484, %476 : vector<2x128xf32>
    %494 = arith.mulf %483, %486 : vector<2x128xf32>
    %495 = arith.addf %493, %494 : vector<2x128xf32>
    %496 = math.tanh %495 : vector<2x128xf32>
    %497 = arith.mulf %492, %496 : vector<2x128xf32>
    %c0_264 = arith.constant 0 : index
    %c0_265 = arith.constant 0 : index
    %498 = vector.load %arg6[%c0_264, %c0_265] : memref<2x128xf32, #tpu.memory_space<vmem>>, vector<2x128xf32>
    tpu.vector_store %arg6[%c0_264, %c0_265], %475 {strides = array<i32>} : memref<2x128xf32, #tpu.memory_space<vmem>>, vector<2x128xf32>,
    %c0_266 = arith.constant 0 : index
    %c0_267 = arith.constant 0 : index
    %499 = vector.load %arg7[%c0_266, %c0_267] : memref<2x128xf32, #tpu.memory_space<vmem>>, vector<2x128xf32>
    tpu.vector_store %arg7[%c0_266, %c0_267], %473 {strides = array<i32>} : memref<2x128xf32, #tpu.memory_space<vmem>>, vector<2x128xf32>,
    %c0_268 = arith.constant 0 : index
    %c0_269 = arith.constant 0 : index
    %500 = vector.load %arg8[%c0_268, %c0_269] : memref<2x128xf32, #tpu.memory_space<vmem>>, vector<2x128xf32>
    tpu.vector_store %arg8[%c0_268, %c0_269], %497 {strides = array<i32>} : memref<2x128xf32, #tpu.memory_space<vmem>>, vector<2x128xf32>,
    %c0_270 = arith.constant 0 : index
    %c0_271 = arith.constant 0 : index
    %501 = vector.load %arg9[%c0_270, %c0_271] : memref<2x128xf32, #tpu.memory_space<vmem>>, vector<2x128xf32>
    tpu.vector_store %arg9[%c0_270, %c0_271], %495 {strides = array<i32>} : memref<2x128xf32, #tpu.memory_space<vmem>>, vector<2x128xf32>,
    %502 = vector.shape_cast %475 : vector<2x128xf32> to vector<1x2x128xf32>
    %c7_272 = arith.constant 7 : index
    %c0_273 = arith.constant 0 : index
    %c0_274 = arith.constant 0 : index
    %503 = vector.load %arg5[%c7_272, %c0_273, %c0_274] : memref<8x2x256xf32, #tpu.memory_space<vmem>>, vector<1x2x128xf32>
    tpu.vector_store %arg5[%c7_272, %c0_273, %c0_274], %502 {strides = array<i32>} : memref<8x2x256xf32, #tpu.memory_space<vmem>>, vector<1x2x128xf32>,
    %504 = vector.shape_cast %497 : vector<2x128xf32> to vector<1x2x128xf32>
    %c0_275 = arith.constant 0 : index
    %c0_276 = arith.constant 0 : index
    %c128_277 = arith.constant 128 : index
    %505 = vector.load %arg5[%c0_275, %c0_276, %c128_277] : memref<8x2x256xf32, #tpu.memory_space<vmem>>, vector<1x2x128xf32>
    tpu.vector_store %arg5[%c0_275, %c0_276, %c128_277], %504 {strides = array<i32>} : memref<8x2x256xf32, #tpu.memory_space<vmem>>, vector<1x2x128xf32>,
    return
  }
  func.func @transform_0(%arg0: i32) -> (i32, i32, i32) {
    %c0_i32 = arith.constant 0 : i32
    %c0_i32_0 = arith.constant 0 : i32
    %c0_i32_1 = arith.constant 0 : i32
    %c0_i32_2 = arith.constant 0 : i32
    return %c0_i32, %c0_i32_0, %c0_i32_1 : i32, i32, i32
  }
  func.func @transform_1(%arg0: i32) -> (i32, i32, i32) {
    %c0_i32 = arith.constant 0 : i32
    %c0_i32_0 = arith.constant 0 : i32
    %c0_i32_1 = arith.constant 0 : i32
    %c0_i32_2 = arith.constant 0 : i32
    return %c0_i32, %c0_i32_0, %c0_i32_1 : i32, i32, i32
  }
  func.func @transform_2(%arg0: i32) -> (i32, i32) {
    %c0_i32 = arith.constant 0 : i32
    %c0_i32_0 = arith.constant 0 : i32
    %c0_i32_1 = arith.constant 0 : i32
    return %c0_i32, %c0_i32_0 : i32, i32
  }
  func.func @transform_3(%arg0: i32) -> (i32, i32) {
    %c0_i32 = arith.constant 0 : i32
    %c0_i32_0 = arith.constant 0 : i32
    %c0_i32_1 = arith.constant 0 : i32
    return %c0_i32, %c0_i32_0 : i32, i32
  }
  func.func @transform_4(%arg0: i32) -> (i32, i32, i32) {
    %c0_i32 = arith.constant 0 : i32
    %c0_i32_0 = arith.constant 0 : i32
    %c0_i32_1 = arith.constant 0 : i32
    %c0_i32_2 = arith.constant 0 : i32
    return %c0_i32, %c0_i32_0, %c0_i32_1 : i32, i32, i32
  }
}

</mosaic_0001>

<llo_original>
// kernel: tpu_custom_call.1
$region0: #{tpu_custom_call.1}
  #allocation0 [shape = 'u32[]', space=smem, size = 0x4, offset = 0x4, fixed_abs, tag = 'smem constant byte address 0x4 - core index']
  #allocation1 [shape = 'u32[144,128]{1,0:T(1,128)}', space=vmem, size = 0x12000, scoped, tag = 'internal scratch']
  #allocation2 [shape = 'f32[2,128]{1,0:T(2,128)}', space=vmem, size = 0x400, scoped, tag = 'scratch operand']
  #allocation3 [shape = 'f32[2,128]{1,0:T(2,128)}', space=vmem, size = 0x400, scoped, tag = 'scratch operand']
  #allocation4 [shape = 'f32[2,128]{1,0:T(2,128)}', space=vmem, size = 0x400, scoped, tag = 'scratch operand']
  #allocation5 [shape = 'f32[2,128]{1,0:T(2,128)}', space=vmem, size = 0x400, scoped, tag = 'scratch operand']
  %s0 = inlined_call_operand.hbm [shape: f32[8,2,512], index: 0, kind: input, shape index: {}]
  %s1 = inlined_call_operand.hbm [shape: f32[8,2,512], index: 1, kind: input, shape index: {}]
  %s2 = inlined_call_operand.hbm [shape: f32[128,512], index: 2, kind: input, shape index: {}]
  %s3 = inlined_call_operand.hbm [shape: f32[128,512], index: 3, kind: input, shape index: {}]
  %s4 = inlined_call_operand.hbm [shape: f32[8,2,256], index: 4, kind: output, shape index: {}]
  %s5 = sld [smem:[#allocation0]]
  $region42: #{tpu_custom_call.1} parent=0
    _
  %s7 = ssub.s32 1, %s5
  %s8 = scalar_select 0, %s7, %s5
  $region1: #{tpu_custom_call.1} parent=0
    #allocation6 [shape = 'u8[32768]{0}', space=vmem, size = 0x8000, scoped, tag = 'input window, operand 0, single buffered']
    #allocation7 [shape = 's32[1]{0}', space=sflag, size = 0x4, scoped, tag = 'scoped memory for tpu_custom_call.1']
    #allocation8 [shape = 's32[1]{0}', space=sflag, size = 0x4, scoped, tag = 'scoped memory for tpu_custom_call.1']
    #allocation9 [shape = 'u8[32768]{0}', space=vmem, size = 0x8000, scoped, tag = 'input window, operand 1, single buffered']
    #allocation10 [shape = 's32[1]{0}', space=sflag, size = 0x4, scoped, tag = 'scoped memory for tpu_custom_call.1']
    #allocation11 [shape = 'u8[262144]{0}', space=vmem, size = 0x40000, scoped, tag = 'input window, operand 2, single buffered']
    #allocation12 [shape = 'u8[262144]{0}', space=vmem, size = 0x40000, scoped, tag = 'input window, operand 3, single buffered']
    #allocation13 [shape = 's32[1]{0}', space=sflag, size = 0x4, scoped, tag = 'scoped memory for tpu_custom_call.1']
    #allocation14 [shape = 'u8[16384]{0}', space=vmem, size = 0x4000, scoped, tag = 'output window, operand 0, single buffered']
    %9 = vsyncpa [#allocation7], 0
    %10 = vsyncpa [#allocation10], 0
    %11 = vsyncpa [#allocation13], 0
    %12 = vsyncpa [#allocation8], 0
    // Predicated region
    $region2: #{tpu_custom_call.1} parent=1 // pred_check
      _
    $region3: #{tpu_custom_call.1} parent=1 // pred_check_branch
      %14 = sbr.rel (0) target = $region5
    $region4: #{tpu_custom_call.1} parent=1 // pred_region
      %s16 = ssub.s32 1024, 1024
      %17 = vsyncadd [#allocation7], %s16
      %s18 = sshll.u32 [#allocation6], 4
      %s19 = int_to_ptr.vmem [resolvable:$true] %s18
      %24 = dma.hbm_to_vmem [thread:$0]  %s0, 1024, %s19, [#allocation7], 128, 128, 8
    $region5: #{tpu_custom_call.1} parent=1 // pred_fallthru
      _
    // Predicated region
    $region6: #{tpu_custom_call.1} parent=1 // pred_check
      _
    $region7: #{tpu_custom_call.1} parent=1 // pred_check_branch
      %26 = sbr.rel (0) target = $region9
    $region8: #{tpu_custom_call.1} parent=1 // pred_region
      %s28 = ssub.s32 1024, 1024
      %29 = vsyncadd [#allocation10], %s28
      %s30 = sshll.u32 [#allocation9], 4
      %s31 = int_to_ptr.vmem [resolvable:$true] %s30
      %36 = dma.hbm_to_vmem [thread:$0]  %s1, 1024, %s31, [#allocation10], 128, 128, 8
    $region9: #{tpu_custom_call.1} parent=1 // pred_fallthru
      _
    // Predicated region
    $region10: #{tpu_custom_call.1} parent=1 // pred_check
      _
    $region11: #{tpu_custom_call.1} parent=1 // pred_check_branch
      %38 = sbr.rel (0) target = $region13
    $region12: #{tpu_custom_call.1} parent=1 // pred_region
      %s40 = ssub.s32 8192, 8192
      %41 = vsyncadd [#allocation10], %s40
      %s42 = sshll.u32 [#allocation11], 4
      %s43 = int_to_ptr.vmem [resolvable:$true] %s42
      %48 = dma.hbm_to_vmem [thread:$0]  %s2, 8192, %s43, [#allocation10], 512, 512, 32
    $region13: #{tpu_custom_call.1} parent=1 // pred_fallthru
      _
    // Predicated region
    $region14: #{tpu_custom_call.1} parent=1 // pred_check
      _
    $region15: #{tpu_custom_call.1} parent=1 // pred_check_branch
      %50 = sbr.rel (0) target = $region17
    $region16: #{tpu_custom_call.1} parent=1 // pred_region
      %s52 = ssub.s32 8192, 8192
      %53 = vsyncadd [#allocation13], %s52
      %s54 = sshll.u32 [#allocation12], 4
      %s55 = int_to_ptr.vmem [resolvable:$true] %s54
      %60 = dma.hbm_to_vmem [thread:$0]  %s3, 8192, %s55, [#allocation13], 512, 512, 32
    $region17: #{tpu_custom_call.1} parent=1 // pred_fallthru
      _
    // Predicated region
    $region18: #{tpu_custom_call.1} parent=1 // pred_check
      _
    $region19: #{tpu_custom_call.1} parent=1 // pred_check_branch
      %62 = sbr.rel (0) target = $region21
    $region20: #{tpu_custom_call.1} parent=1 // pred_region
      %63 = dma.done [#allocation7], 1024
    $region21: #{tpu_custom_call.1} parent=1 // pred_fallthru
      _
    // Predicated region
    $region22: #{tpu_custom_call.1} parent=1 // pred_check
      _
    $region23: #{tpu_custom_call.1} parent=1 // pred_check_branch
      %65 = sbr.rel (0) target = $region25
    $region24: #{tpu_custom_call.1} parent=1 // pred_region
      %66 = dma.done [#allocation10], 1024
    $region25: #{tpu_custom_call.1} parent=1 // pred_fallthru
      _
    // Predicated region
    $region26: #{tpu_custom_call.1} parent=1 // pred_check
      _
    $region27: #{tpu_custom_call.1} parent=1 // pred_check_branch
      %68 = sbr.rel (0) target = $region29
    $region28: #{tpu_custom_call.1} parent=1 // pred_region
      %69 = dma.done [#allocation10], 8192
    $region29: #{tpu_custom_call.1} parent=1 // pred_fallthru
      _
    // Predicated region
    $region30: #{tpu_custom_call.1} parent=1 // pred_check
      _
    $region31: #{tpu_custom_call.1} parent=1 // pred_check_branch
      %71 = sbr.rel (0) target = $region33
    $region32: #{tpu_custom_call.1} parent=1 // pred_region
      %72 = dma.done [#allocation13], 8192
    $region33: #{tpu_custom_call.1} parent=1 // pred_fallthru
      _
    %73 = vst [vmem:[#allocation2] sm:$0x3] 0.0
    %74 = vst [vmem:[#allocation3] sm:$0x3] 0.0
    %75 = vst [vmem:[#allocation4] sm:$0x3] 0.0
    %76 = vst [vmem:[#allocation5] sm:$0x3] 0.0
    %v77 = vld [vmem:[#allocation11] sm:$0xff]
    %v78 = vld [vmem:[#allocation11 + $0x8] sm:$0xff]
    %v79 = vld [vmem:[#allocation11 + $0x10] sm:$0xff]
    %v80 = vld [vmem:[#allocation11 + $0x18] sm:$0xff]
    %v81 = vld [vmem:[#allocation11 + $0x20] sm:$0xff]
    %v82 = vld [vmem:[#allocation11 + $0x28] sm:$0xff]
    %v83 = vld [vmem:[#allocation11 + $0x30] sm:$0xff]
    %v84 = vld [vmem:[#allocation11 + $0x38] sm:$0xff]
    %v85 = vld [vmem:[#allocation11 + $0x40] sm:$0xff]
    %v86 = vld [vmem:[#allocation11 + $0x48] sm:$0xff]
    %v87 = vld [vmem:[#allocation11 + $0x50] sm:$0xff]
    %v88 = vld [vmem:[#allocation11 + $0x58] sm:$0xff]
    %v89 = vld [vmem:[#allocation11 + $0x60] sm:$0xff]
    %v90 = vld [vmem:[#allocation11 + $0x68] sm:$0xff]
    %v91 = vld [vmem:[#allocation11 + $0x70] sm:$0xff]
    %v92 = vld [vmem:[#allocation11 + $0x78] sm:$0xff]
    %v93 = vld [vmem:[#allocation11 + $0x80] sm:$0xff]
    %v94 = vld [vmem:[#allocation11 + $0x88] sm:$0xff]
    %v95 = vld [vmem:[#allocation11 + $0x90] sm:$0xff]
    %v96 = vld [vmem:[#allocation11 + $0x98] sm:$0xff]
    %v97 = vld [vmem:[#allocation11 + $0xa0] sm:$0xff]
    %v98 = vld [vmem:[#allocation11 + $0xa8] sm:$0xff]
    %v99 = vld [vmem:[#allocation11 + $0xb0] sm:$0xff]
    %v100 = vld [vmem:[#allocation11 + $0xb8] sm:$0xff]
    %v101 = vld [vmem:[#allocation11 + $0xc0] sm:$0xff]
    %v102 = vld [vmem:[#allocation11 + $0xc8] sm:$0xff]
    %v103 = vld [vmem:[#allocation11 + $0xd0] sm:$0xff]
    %v104 = vld [vmem:[#allocation11 + $0xd8] sm:$0xff]
    %v105 = vld [vmem:[#allocation11 + $0xe0] sm:$0xff]
    %v106 = vld [vmem:[#allocation11 + $0xe8] sm:$0xff]
    %v107 = vld [vmem:[#allocation11 + $0xf0] sm:$0xff]
    %v108 = vld [vmem:[#allocation11 + $0xf8] sm:$0xff]
    %v109 = vld [vmem:[#allocation11 + $0x100] sm:$0xff]
    %v110 = vld [vmem:[#allocation11 + $0x108] sm:$0xff]
    %v111 = vld [vmem:[#allocation11 + $0x110] sm:$0xff]
    %v112 = vld [vmem:[#allocation11 + $0x118] sm:$0xff]
    %v113 = vld [vmem:[#allocation11 + $0x120] sm:$0xff]
    %v114 = vld [vmem:[#allocation11 + $0x128] sm:$0xff]
    %v115 = vld [vmem:[#allocation11 + $0x130] sm:$0xff]
    %v116 = vld [vmem:[#allocation11 + $0x138] sm:$0xff]
    %v117 = vld [vmem:[#allocation11 + $0x140] sm:$0xff]
    %v118 = vld [vmem:[#allocation11 + $0x148] sm:$0xff]
    %v119 = vld [vmem:[#allocation11 + $0x150] sm:$0xff]
    %v120 = vld [vmem:[#allocation11 + $0x158] sm:$0xff]
    %v121 = vld [vmem:[#allocation11 + $0x160] sm:$0xff]
    %v122 = vld [vmem:[#allocation11 + $0x168] sm:$0xff]
    %v123 = vld [vmem:[#allocation11 + $0x170] sm:$0xff]
    %v124 = vld [vmem:[#allocation11 + $0x178] sm:$0xff]
    %v125 = vld [vmem:[#allocation11 + $0x180] sm:$0xff]
    %v126 = vld [vmem:[#allocation11 + $0x188] sm:$0xff]
    %v127 = vld [vmem:[#allocation11 + $0x190] sm:$0xff]
    %v128 = vld [vmem:[#allocation11 + $0x198] sm:$0xff]
    %v129 = vld [vmem:[#allocation11 + $0x1a0] sm:$0xff]
    %v130 = vld [vmem:[#allocation11 + $0x1a8] sm:$0xff]
    %v131 = vld [vmem:[#allocation11 + $0x1b0] sm:$0xff]
    %v132 = vld [vmem:[#allocation11 + $0x1b8] sm:$0xff]
    %v133 = vld [vmem:[#allocation11 + $0x1c0] sm:$0xff]
    %v134 = vld [vmem:[#allocation11 + $0x1c8] sm:$0xff]
    %v135 = vld [vmem:[#allocation11 + $0x1d0] sm:$0xff]
    %v136 = vld [vmem:[#allocation11 + $0x1d8] sm:$0xff]
    %v137 = vld [vmem:[#allocation11 + $0x1e0] sm:$0xff]
    %v138 = vld [vmem:[#allocation11 + $0x1e8] sm:$0xff]
    %v139 = vld [vmem:[#allocation11 + $0x1f0] sm:$0xff]
    %v140 = vld [vmem:[#allocation11 + $0x1f8] sm:$0xff]
    %v141 = vld [vmem:[#allocation12] sm:$0xff]
    %v142 = vld [vmem:[#allocation12 + $0x8] sm:$0xff]
    %v143 = vld [vmem:[#allocation12 + $0x10] sm:$0xff]
    %v144 = vld [vmem:[#allocation12 + $0x18] sm:$0xff]
    %v145 = vld [vmem:[#allocation12 + $0x20] sm:$0xff]
    %v146 = vld [vmem:[#allocation12 + $0x28] sm:$0xff]
    %v147 = vld [vmem:[#allocation12 + $0x30] sm:$0xff]
    %v148 = vld [vmem:[#allocation12 + $0x38] sm:$0xff]
    %v149 = vld [vmem:[#allocation12 + $0x40] sm:$0xff]
    %v150 = vld [vmem:[#allocation12 + $0x48] sm:$0xff]
    %v151 = vld [vmem:[#allocation12 + $0x50] sm:$0xff]
    %v152 = vld [vmem:[#allocation12 + $0x58] sm:$0xff]
    %v153 = vld [vmem:[#allocation12 + $0x60] sm:$0xff]
    %v154 = vld [vmem:[#allocation12 + $0x68] sm:$0xff]
    %v155 = vld [vmem:[#allocation12 + $0x70] sm:$0xff]
    %v156 = vld [vmem:[#allocation12 + $0x78] sm:$0xff]
    %v157 = vld [vmem:[#allocation12 + $0x80] sm:$0xff]
    %v158 = vld [vmem:[#allocation12 + $0x88] sm:$0xff]
    %v159 = vld [vmem:[#allocation12 + $0x90] sm:$0xff]
    %v160 = vld [vmem:[#allocation12 + $0x98] sm:$0xff]
    %v161 = vld [vmem:[#allocation12 + $0xa0] sm:$0xff]
    %v162 = vld [vmem:[#allocation12 + $0xa8] sm:$0xff]
    %v163 = vld [vmem:[#allocation12 + $0xb0] sm:$0xff]
    %v164 = vld [vmem:[#allocation12 + $0xb8] sm:$0xff]
    %v165 = vld [vmem:[#allocation12 + $0xc0] sm:$0xff]
    %v166 = vld [vmem:[#allocation12 + $0xc8] sm:$0xff]
    %v167 = vld [vmem:[#allocation12 + $0xd0] sm:$0xff]
    %v168 = vld [vmem:[#allocation12 + $0xd8] sm:$0xff]
    %v169 = vld [vmem:[#allocation12 + $0xe0] sm:$0xff]
    %v170 = vld [vmem:[#allocation12 + $0xe8] sm:$0xff]
    %v171 = vld [vmem:[#allocation12 + $0xf0] sm:$0xff]
    %v172 = vld [vmem:[#allocation12 + $0xf8] sm:$0xff]
    %v173 = vld [vmem:[#allocation12 + $0x100] sm:$0xff]
    %v174 = vld [vmem:[#allocation12 + $0x108] sm:$0xff]
    %v175 = vld [vmem:[#allocation12 + $0x110] sm:$0xff]
    %v176 = vld [vmem:[#allocation12 + $0x118] sm:$0xff]
    %v177 = vld [vmem:[#allocation12 + $0x120] sm:$0xff]
    %v178 = vld [vmem:[#allocation12 + $0x128] sm:$0xff]
    %v179 = vld [vmem:[#allocation12 + $0x130] sm:$0xff]
    %v180 = vld [vmem:[#allocation12 + $0x138] sm:$0xff]
    %v181 = vld [vmem:[#allocation12 + $0x140] sm:$0xff]
    %v182 = vld [vmem:[#allocation12 + $0x148] sm:$0xff]
    %v183 = vld [vmem:[#allocation12 + $0x150] sm:$0xff]
    %v184 = vld [vmem:[#allocation12 + $0x158] sm:$0xff]
    %v185 = vld [vmem:[#allocation12 + $0x160] sm:$0xff]
    %v186 = vld [vmem:[#allocation12 + $0x168] sm:$0xff]
    %v187 = vld [vmem:[#allocation12 + $0x170] sm:$0xff]
    %v188 = vld [vmem:[#allocation12 + $0x178] sm:$0xff]
    %v189 = vld [vmem:[#allocation12 + $0x180] sm:$0xff]
    %v190 = vld [vmem:[#allocation12 + $0x188] sm:$0xff]
    %v191 = vld [vmem:[#allocation12 + $0x190] sm:$0xff]
    %v192 = vld [vmem:[#allocation12 + $0x198] sm:$0xff]
    %v193 = vld [vmem:[#allocation12 + $0x1a0] sm:$0xff]
    %v194 = vld [vmem:[#allocation12 + $0x1a8] sm:$0xff]
    %v195 = vld [vmem:[#allocation12 + $0x1b0] sm:$0xff]
    %v196 = vld [vmem:[#allocation12 + $0x1b8] sm:$0xff]
    %v197 = vld [vmem:[#allocation12 + $0x1c0] sm:$0xff]
    %v198 = vld [vmem:[#allocation12 + $0x1c8] sm:$0xff]
    %v199 = vld [vmem:[#allocation12 + $0x1d0] sm:$0xff]
    %v200 = vld [vmem:[#allocation12 + $0x1d8] sm:$0xff]
    %v201 = vld [vmem:[#allocation12 + $0x1e0] sm:$0xff]
    %v202 = vld [vmem:[#allocation12 + $0x1e8] sm:$0xff]
    %v203 = vld [vmem:[#allocation12 + $0x1f0] sm:$0xff]
    %v204 = vld [vmem:[#allocation12 + $0x1f8] sm:$0xff]
    %v205 = vld [vmem:[#allocation6] sm:$0xff]
    %v206 = vld [vmem:[#allocation2] sm:$0x3]
    %207 = vmatprep.subr.mxu0 %v78
    %208 = vmatpush1.msra.mxu0 %v77
    %209 = vmatprep.subr.mxu0 %v82
    %210 = vmatpush1.msra.mxu0 %v81
    %211 = vmatprep.subr.mxu0 %v86
    %212 = vmatpush1.msra.mxu0 %v85
    %213 = vmatprep.subr.mxu0 %v90
    %214 = vmatpush1.msra.mxu0 %v89
    %215 = vmatprep.subr.mxu0 %v94
    %216 = vmatpush1.msra.mxu0 %v93
    %217 = vmatprep.subr.mxu0 %v98
    %218 = vmatpush1.msra.mxu0 %v97
    %219 = vmatprep.subr.mxu0 %v102
    %220 = vmatpush1.msra.mxu0 %v101
    %221 = vmatprep.subr.mxu0 %v106
    %222 = vmatpush1.msra.mxu0 %v105
    %223 = vmatprep.subr.mxu0 %v110
    %224 = vmatpush1.msra.mxu0 %v109
    %225 = vmatprep.subr.mxu0 %v114
    %226 = vmatpush1.msra.mxu0 %v113
    %227 = vmatprep.subr.mxu0 %v118
    %228 = vmatpush1.msra.mxu0 %v117
    %229 = vmatprep.subr.mxu0 %v122
    %230 = vmatpush1.msra.mxu0 %v121
    %231 = vmatprep.subr.mxu0 %v126
    %232 = vmatpush1.msra.mxu0 %v125
    %233 = vmatprep.subr.mxu0 %v130
    %234 = vmatpush1.msra.mxu0 %v129
    %235 = vmatprep.subr.mxu0 %v134
    %236 = vmatpush1.msra.mxu0 %v133
    %237 = vmatprep.subr.mxu0 %v138
    %238 = vmatpush1.msra.mxu0 %v137
    %239 = vmatprep.subr.mxu0 0.0
    %240 = vmatpush1.msra.mxu0 0.0
    %241 = vmatprep.subr.mxu0 0.0
    %242 = vmatpush1.msra.mxu0 0.0
    %243 = vmatprep.subr.mxu0 0.0
    %244 = vmatpush1.msra.mxu0 0.0
    %245 = vmatprep.subr.mxu0 0.0
    %246 = vmatpush1.msra.mxu0 0.0
    %247 = vmatprep.subr.mxu0 0.0
    %248 = vmatpush1.msra.mxu0 0.0
    %249 = vmatprep.subr.mxu0 0.0
    %250 = vmatpush1.msra.mxu0 0.0
    %251 = vmatprep.subr.mxu0 0.0
    %252 = vmatpush1.msra.mxu0 0.0
    %253 = vmatprep.subr.mxu0 0.0
    %254 = vmatpush1.msra.mxu0 0.0
    %255 = vmatprep.subr.mxu0 0.0
    %256 = vmatpush1.msra.mxu0 0.0
    %257 = vmatprep.subr.mxu0 0.0
    %258 = vmatpush1.msra.mxu0 0.0
    %259 = vmatprep.subr.mxu0 0.0
    %260 = vmatpush1.msra.mxu0 0.0
    %261 = vmatprep.subr.mxu0 0.0
    %262 = vmatpush1.msra.mxu0 0.0
    %263 = vmatprep.subr.mxu0 0.0
    %264 = vmatpush1.msra.mxu0 0.0
    %265 = vmatprep.subr.mxu0 0.0
    %266 = vmatpush1.msra.mxu0 0.0
    %267 = vmatprep.subr.mxu0 0.0
    %268 = vmatpush1.msra.mxu0 0.0
    %269 = vmatprep.subr.mxu0 0.0
    %270 = vmatpush1.msra.mxu0 0.0
    %271 = vmatprep.mubr.f32.mxu0 0.0
    %272 = vmatmul.mubr.f32.gmra.mrb[0].mxu0 %v206
    %v273 = vpop.f32.mrb[0].mxu0
    %v274 = vadd.f32 0.0, %v273
    %v275 = vpop.f32.mrb[0].mxu0
    %v276 = vadd.f32 0.0, %v275
    %277 = vdwg.mxu0
    %278 = vmatprep.subr.mxu0 %v80
    %279 = vmatpush1.msra.mxu0 %v79
    %280 = vmatprep.subr.mxu0 %v84
    %281 = vmatpush1.msra.mxu0 %v83
    %282 = vmatprep.subr.mxu0 %v88
    %283 = vmatpush1.msra.mxu0 %v87
    %284 = vmatprep.subr.mxu0 %v92
    %285 = vmatpush1.msra.mxu0 %v91
    %286 = vmatprep.subr.mxu0 %v96
    %287 = vmatpush1.msra.mxu0 %v95
    %288 = vmatprep.subr.mxu0 %v100
    %289 = vmatpush1.msra.mxu0 %v99
    %290 = vmatprep.subr.mxu0 %v104
    %291 = vmatpush1.msra.mxu0 %v103
    %292 = vmatprep.subr.mxu0 %v108
    %293 = vmatpush1.msra.mxu0 %v107
    %294 = vmatprep.subr.mxu0 %v112
    %295 = vmatpush1.msra.mxu0 %v111
    %296 = vmatprep.subr.mxu0 %v116
    %297 = vmatpush1.msra.mxu0 %v115
    %298 = vmatprep.subr.mxu0 %v120
    %299 = vmatpush1.msra.mxu0 %v119
    %300 = vmatprep.subr.mxu0 %v124
    %301 = vmatpush1.msra.mxu0 %v123
    %302 = vmatprep.subr.mxu0 %v128
    %303 = vmatpush1.msra.mxu0 %v127
    %304 = vmatprep.subr.mxu0 %v132
    %305 = vmatpush1.msra.mxu0 %v131
    %306 = vmatprep.subr.mxu0 %v136
    %307 = vmatpush1.msra.mxu0 %v135
    %308 = vmatprep.subr.mxu0 %v140
    %309 = vmatpush1.msra.mxu0 %v139
    %310 = vmatprep.subr.mxu0 0.0
    %311 = vmatpush1.msra.mxu0 0.0
    %312 = vmatprep.subr.mxu0 0.0
    %313 = vmatpush1.msra.mxu0 0.0
    %314 = vmatprep.subr.mxu0 0.0
    %315 = vmatpush1.msra.mxu0 0.0
    %316 = vmatprep.subr.mxu0 0.0
    %317 = vmatpush1.msra.mxu0 0.0
    %318 = vmatprep.subr.mxu0 0.0
    %319 = vmatpush1.msra.mxu0 0.0
    %320 = vmatprep.subr.mxu0 0.0
    %321 = vmatpush1.msra.mxu0 0.0
    %322 = vmatprep.subr.mxu0 0.0
    %323 = vmatpush1.msra.mxu0 0.0
    %324 = vmatprep.subr.mxu0 0.0
    %325 = vmatpush1.msra.mxu0 0.0
    %326 = vmatprep.subr.mxu0 0.0
    %327 = vmatpush1.msra.mxu0 0.0
    %328 = vmatprep.subr.mxu0 0.0
    %329 = vmatpush1.msra.mxu0 0.0
    %330 = vmatprep.subr.mxu0 0.0
    %331 = vmatpush1.msra.mxu0 0.0
    %332 = vmatprep.subr.mxu0 0.0
    %333 = vmatpush1.msra.mxu0 0.0
    %334 = vmatprep.subr.mxu0 0.0
    %335 = vmatpush1.msra.mxu0 0.0
    %336 = vmatprep.subr.mxu0 0.0
    %337 = vmatpush1.msra.mxu0 0.0
    %338 = vmatprep.subr.mxu0 0.0
    %339 = vmatpush1.msra.mxu0 0.0
    %340 = vmatprep.subr.mxu0 0.0
    %341 = vmatpush1.msra.mxu0 0.0
    %342 = vmatprep.mubr.f32.mxu0 0.0
    %343 = vmatmul.mubr.f32.gmra.mrb[0].mxu0 %v206
    %v344 = vpop.f32.mrb[0].mxu0
    %v345 = vadd.f32 0.0, %v344
    %v346 = vpop.f32.mrb[0].mxu0
    %v347 = vadd.f32 0.0, %v346
    %348 = vdwg.mxu0
    %v353 = vcombine.low %v274, %v276
    %v354 = vcombine.low %v345, %v347
    %v356 = vunpack.c.l.s4 1983009808
    %v357 = vunpack.c.0.s8 %v356
    %v358 = vlaneseq
    %v359 = vshrl.u32 %v358, 7
    %v360 = vsub.s32 %v357, %v359
    %v361 = vrot.slane %v353, %v360
    %v363 = vunpack.c.l.s4 1983009808
    %v364 = vunpack.c.0.s8 %v363
    %v365 = vlaneseq
    %v366 = vshrl.u32 %v365, 7
    %v367 = vsub.s32 %v364, %v366
    %v368 = vrot.slane %v354, %v367
    %v369 = vcombine.low %v361, %v368
    %v371 = vadd.f32 %v205, %v369
    %s372 = scalar_lea.vmem [#allocation9], 56
    %v373 = vld [vmem:[%s372] sm:$0xff]
    %v374 = vld [vmem:[#allocation4] sm:$0x3]
    %375 = vmatprep.subr.mxu0 %v142
    %376 = vmatpush1.msra.mxu0 %v141
    %377 = vmatprep.subr.mxu0 %v146
    %378 = vmatpush1.msra.mxu0 %v145
    %379 = vmatprep.subr.mxu0 %v150
    %380 = vmatpush1.msra.mxu0 %v149
    %381 = vmatprep.subr.mxu0 %v154
    %382 = vmatpush1.msra.mxu0 %v153
    %383 = vmatprep.subr.mxu0 %v158
    %384 = vmatpush1.msra.mxu0 %v157
    %385 = vmatprep.subr.mxu0 %v162
    %386 = vmatpush1.msra.mxu0 %v161
    %387 = vmatprep.subr.mxu0 %v166
    %388 = vmatpush1.msra.mxu0 %v165
    %389 = vmatprep.subr.mxu0 %v170
    %390 = vmatpush1.msra.mxu0 %v169
    %391 = vmatprep.subr.mxu0 %v174
    %392 = vmatpush1.msra.mxu0 %v173
    %393 = vmatprep.subr.mxu0 %v178
    %394 = vmatpush1.msra.mxu0 %v177
    %395 = vmatprep.subr.mxu0 %v182
    %396 = vmatpush1.msra.mxu0 %v181
    %397 = vmatprep.subr.mxu0 %v186
    %398 = vmatpush1.msra.mxu0 %v185
    %399 = vmatprep.subr.mxu0 %v190
    %400 = vmatpush1.msra.mxu0 %v189
    %401 = vmatprep.subr.mxu0 %v194
    %402 = vmatpush1.msra.mxu0 %v193
    %403 = vmatprep.subr.mxu0 %v198
    %404 = vmatpush1.msra.mxu0 %v197
    %405 = vmatprep.subr.mxu0 %v202
    %406 = vmatpush1.msra.mxu0 %v201
    %407 = vmatprep.subr.mxu0 0.0
    %408 = vmatpush1.msra.mxu0 0.0
    %409 = vmatprep.subr.mxu0 0.0
    %410 = vmatpush1.msra.mxu0 0.0
    %411 = vmatprep.subr.mxu0 0.0
    %412 = vmatpush1.msra.mxu0 0.0
    %413 = vmatprep.subr.mxu0 0.0
    %414 = vmatpush1.msra.mxu0 0.0
    %415 = vmatprep.subr.mxu0 0.0
    %416 = vmatpush1.msra.mxu0 0.0
    %417 = vmatprep.subr.mxu0 0.0
    %418 = vmatpush1.msra.mxu0 0.0
    %419 = vmatprep.subr.mxu0 0.0
    %420 = vmatpush1.msra.mxu0 0.0
    %421 = vmatprep.subr.mxu0 0.0
    %422 = vmatpush1.msra.mxu0 0.0
    %423 = vmatprep.subr.mxu0 0.0
    %424 = vmatpush1.msra.mxu0 0.0
    %425 = vmatprep.subr.mxu0 0.0
    %426 = vmatpush1.msra.mxu0 0.0
    %427 = vmatprep.subr.mxu0 0.0
    %428 = vmatpush1.msra.mxu0 0.0
    %429 = vmatprep.subr.mxu0 0.0
    %430 = vmatpush1.msra.mxu0 0.0
    %431 = vmatprep.subr.mxu0 0.0
    %432 = vmatpush1.msra.mxu0 0.0
    %433 = vmatprep.subr.mxu0 0.0
    %434 = vmatpush1.msra.mxu0 0.0
    %435 = vmatprep.subr.mxu0 0.0
    %436 = vmatpush1.msra.mxu0 0.0
    %437 = vmatprep.subr.mxu0 0.0
    %438 = vmatpush1.msra.mxu0 0.0
    %439 = vmatprep.mubr.f32.mxu0 0.0
    %440 = vmatmul.mubr.f32.gmra.mrb[0].mxu0 %v374
    %v441 = vpop.f32.mrb[0].mxu0
    %v442 = vadd.f32 0.0, %v441
    %v443 = vpop.f32.mrb[0].mxu0
    %v444 = vadd.f32 0.0, %v443
    %445 = vdwg.mxu0
    %446 = vmatprep.subr.mxu0 %v144
    %447 = vmatpush1.msra.mxu0 %v143
    %448 = vmatprep.subr.mxu0 %v148
    %449 = vmatpush1.msra.mxu0 %v147
    %450 = vmatprep.subr.mxu0 %v152
    %451 = vmatpush1.msra.mxu0 %v151
    %452 = vmatprep.subr.mxu0 %v156
    %453 = vmatpush1.msra.mxu0 %v155
    %454 = vmatprep.subr.mxu0 %v160
    %455 = vmatpush1.msra.mxu0 %v159
    %456 = vmatprep.subr.mxu0 %v164
    %457 = vmatpush1.msra.mxu0 %v163
    %458 = vmatprep.subr.mxu0 %v168
    %459 = vmatpush1.msra.mxu0 %v167
    %460 = vmatprep.subr.mxu0 %v172
    %461 = vmatpush1.msra.mxu0 %v171
    %462 = vmatprep.subr.mxu0 %v176
    %463 = vmatpush1.msra.mxu0 %v175
    %464 = vmatprep.subr.mxu0 %v180
    %465 = vmatpush1.msra.mxu0 %v179
    %466 = vmatprep.subr.mxu0 %v184
    %467 = vmatpush1.msra.mxu0 %v183
    %468 = vmatprep.subr.mxu0 %v188
    %469 = vmatpush1.msra.mxu0 %v187
    %470 = vmatprep.subr.mxu0 %v192
    %471 = vmatpush1.msra.mxu0 %v191
    %472 = vmatprep.subr.mxu0 %v196
    %473 = vmatpush1.msra.mxu0 %v195
    %474 = vmatprep.subr.mxu0 %v200
    %475 = vmatpush1.msra.mxu0 %v199
    %476 = vmatprep.subr.mxu0 %v204
    %477 = vmatpush1.msra.mxu0 %v203
    %478 = vmatprep.subr.mxu0 0.0
    %479 = vmatpush1.msra.mxu0 0.0
    %480 = vmatprep.subr.mxu0 0.0
    %481 = vmatpush1.msra.mxu0 0.0
    %482 = vmatprep.subr.mxu0 0.0
    %483 = vmatpush1.msra.mxu0 0.0
    %484 = vmatprep.subr.mxu0 0.0
    %485 = vmatpush1.msra.mxu0 0.0
    %486 = vmatprep.subr.mxu0 0.0
    %487 = vmatpush1.msra.mxu0 0.0
    %488 = vmatprep.subr.mxu0 0.0
    %489 = vmatpush1.msra.mxu0 0.0
    %490 = vmatprep.subr.mxu0 0.0
    %491 = vmatpush1.msra.mxu0 0.0
    %492 = vmatprep.subr.mxu0 0.0
    %493 = vmatpush1.msra.mxu0 0.0
    %494 = vmatprep.subr.mxu0 0.0
    %495 = vmatpush1.msra.mxu0 0.0
    %496 = vmatprep.subr.mxu0 0.0
    %497 = vmatpush1.msra.mxu0 0.0
    %498 = vmatprep.subr.mxu0 0.0
    %499 = vmatpush1.msra.mxu0 0.0
    %500 = vmatprep.subr.mxu0 0.0
    %501 = vmatpush1.msra.mxu0 0.0
    %502 = vmatprep.subr.mxu0 0.0
    %503 = vmatpush1.msra.mxu0 0.0
    %504 = vmatprep.subr.mxu0 0.0
    %505 = vmatpush1.msra.mxu0 0.0
    %506 = vmatprep.subr.mxu0 0.0
    %507 = vmatpush1.msra.mxu0 0.0
    %508 = vmatprep.subr.mxu0 0.0
    %509 = vmatpush1.msra.mxu0 0.0
    %510 = vmatprep.mubr.f32.mxu0 0.0
    %511 = vmatmul.mubr.f32.gmra.mrb[0].mxu0 %v374
    %v512 = vpop.f32.mrb[0].mxu0
    %v513 = vadd.f32 0.0, %v512
    %v514 = vpop.f32.mrb[0].mxu0
    %v515 = vadd.f32 0.0, %v514
    %516 = vdwg.mxu0
    %v521 = vcombine.low %v442, %v444
    %v522 = vcombine.low %v513, %v515
    %v524 = vunpack.c.l.s4 1983009808
    %v525 = vunpack.c.0.s8 %v524
    %v526 = vlaneseq
    %v527 = vshrl.u32 %v526, 7
    %v528 = vsub.s32 %v525, %v527
    %v529 = vrot.slane %v521, %v528
    %v531 = vunpack.c.l.s4 1983009808
    %v532 = vunpack.c.0.s8 %v531
    %v533 = vlaneseq
    %v534 = vshrl.u32 %v533, 7
    %v535 = vsub.s32 %v532, %v534
    %v536 = vrot.slane %v522, %v535
    %v537 = vcombine.low %v529, %v536
    %v539 = vadd.f32 %v373, %v537
    %v540 = vld [vmem:[#allocation3] sm:$0x3]
    %v541 = vxor.u32 %v371, 2147483648
    %v542 = vmul.f32 %v541, 1.442695
    %v543 = vpow.pop %v542
    %v544 = vadd.f32 %v543, 1.0
    %v545 = vrcp.pop %v544
    %v546 = vmul.f32 1.0, %v545
    %v548 = vrot.slane %v371, 4
    %v550 = vtanh.pop %v548
    %v551 = vrot.slane %v371, 6
    %v553 = vxor.u32 %v551, 2147483648
    %v554 = vmul.f32 %v553, 1.442695
    %v555 = vpow.pop %v554
    %v556 = vadd.f32 %v555, 1.0
    %v557 = vrcp.pop %v556
    %v558 = vmul.f32 1.0, %v557
    %v560 = vrot.slane %v546, 2
    %v562 = vmul.f32 %v560, %v540
    %v563 = vmul.f32 %v546, %v550
    %v564 = vadd.f32 %v562, %v563
    %v565 = vtanh.pop %v564
    %v566 = vmul.f32 %v558, %v565
    %v567 = vld [vmem:[#allocation5] sm:$0x3]
    %v568 = vxor.u32 %v539, 2147483648
    %v569 = vmul.f32 %v568, 1.442695
    %v570 = vpow.pop %v569
    %v571 = vadd.f32 %v570, 1.0
    %v572 = vrcp.pop %v571
    %v573 = vmul.f32 1.0, %v572
    %v575 = vrot.slane %v539, 4
    %v577 = vtanh.pop %v575
    %v578 = vrot.slane %v539, 6
    %v580 = vxor.u32 %v578, 2147483648
    %v581 = vmul.f32 %v580, 1.442695
    %v582 = vpow.pop %v581
    %v583 = vadd.f32 %v582, 1.0
    %v584 = vrcp.pop %v583
    %v585 = vmul.f32 1.0, %v584
    %v587 = vrot.slane %v573, 2
    %v589 = vmul.f32 %v587, %v567
    %v590 = vmul.f32 %v573, %v577
    %v591 = vadd.f32 %v589, %v590
    %v592 = vtanh.pop %v591
    %v593 = vmul.f32 %v585, %v592
    %594 = vst [vmem:[#allocation2] sm:$0x3] %v566
    %595 = vst [vmem:[#allocation3] sm:$0x3] %v564
    %596 = vst [vmem:[#allocation4] sm:$0x3] %v593
    %597 = vst [vmem:[#allocation5] sm:$0x3] %v591
    %598 = vst [vmem:[#allocation14] sm:$0x3] %v566
    %s599 = scalar_lea.vmem [#allocation14], 28
    %600 = vst [vmem:[%s599 + $0x2] sm:$0x3] %v593
    %s601 = scalar_lea.vmem [#allocation6], 8
    %v602 = vld [vmem:[%s601] sm:$0xff]
    %v603 = vld [vmem:[#allocation2] sm:$0x3]
    %604 = vmatprep.subr.mxu0 %v78
    %605 = vmatpush1.msra.mxu0 %v77
    %606 = vmatprep.subr.mxu0 %v82
    %607 = vmatpush1.msra.mxu0 %v81
    %608 = vmatprep.subr.mxu0 %v86
    %609 = vmatpush1.msra.mxu0 %v85
    %610 = vmatprep.subr.mxu0 %v90
    %611 = vmatpush1.msra.mxu0 %v89
    %612 = vmatprep.subr.mxu0 %v94
    %613 = vmatpush1.msra.mxu0 %v93
    %614 = vmatprep.subr.mxu0 %v98
    %615 = vmatpush1.msra.mxu0 %v97
    %616 = vmatprep.subr.mxu0 %v102
    %617 = vmatpush1.msra.mxu0 %v101
    %618 = vmatprep.subr.mxu0 %v106
    %619 = vmatpush1.msra.mxu0 %v105
    %620 = vmatprep.subr.mxu0 %v110
    %621 = vmatpush1.msra.mxu0 %v109
    %622 = vmatprep.subr.mxu0 %v114
    %623 = vmatpush1.msra.mxu0 %v113
    %624 = vmatprep.subr.mxu0 %v118
    %625 = vmatpush1.msra.mxu0 %v117
    %626 = vmatprep.subr.mxu0 %v122
    %627 = vmatpush1.msra.mxu0 %v121
    %628 = vmatprep.subr.mxu0 %v126
    %629 = vmatpush1.msra.mxu0 %v125
    %630 = vmatprep.subr.mxu0 %v130
    %631 = vmatpush1.msra.mxu0 %v129
    %632 = vmatprep.subr.mxu0 %v134
    %633 = vmatpush1.msra.mxu0 %v133
    %634 = vmatprep.subr.mxu0 %v138
    %635 = vmatpush1.msra.mxu0 %v137
    %636 = vmatprep.subr.mxu0 0.0
    %637 = vmatpush1.msra.mxu0 0.0
    %638 = vmatprep.subr.mxu0 0.0
    %639 = vmatpush1.msra.mxu0 0.0
    %640 = vmatprep.subr.mxu0 0.0
    %641 = vmatpush1.msra.mxu0 0.0
    %642 = vmatprep.subr.mxu0 0.0
    %643 = vmatpush1.msra.mxu0 0.0
    %644 = vmatprep.subr.mxu0 0.0
    %645 = vmatpush1.msra.mxu0 0.0
    %646 = vmatprep.subr.mxu0 0.0
    %647 = vmatpush1.msra.mxu0 0.0
    %648 = vmatprep.subr.mxu0 0.0
    %649 = vmatpush1.msra.mxu0 0.0
    %650 = vmatprep.subr.mxu0 0.0
    %651 = vmatpush1.msra.mxu0 0.0
    %652 = vmatprep.subr.mxu0 0.0
    %653 = vmatpush1.msra.mxu0 0.0
    %654 = vmatprep.subr.mxu0 0.0
    %655 = vmatpush1.msra.mxu0 0.0
    %656 = vmatprep.subr.mxu0 0.0
    %657 = vmatpush1.msra.mxu0 0.0
    %658 = vmatprep.subr.mxu0 0.0
    %659 = vmatpush1.msra.mxu0 0.0
    %660 = vmatprep.subr.mxu0 0.0
    %661 = vmatpush1.msra.mxu0 0.0
    %662 = vmatprep.subr.mxu0 0.0
    %663 = vmatpush1.msra.mxu0 0.0
    %664 = vmatprep.subr.mxu0 0.0
    %665 = vmatpush1.msra.mxu0 0.0
    %666 = vmatprep.subr.mxu0 0.0
    %667 = vmatpush1.msra.mxu0 0.0
    %668 = vmatprep.mubr.f32.mxu0 0.0
    %669 = vmatmul.mubr.f32.gmra.mrb[0].mxu0 %v603
    %v670 = vpop.f32.mrb[0].mxu0
    %v671 = vadd.f32 0.0, %v670
    %v672 = vpop.f32.mrb[0].mxu0
    %v673 = vadd.f32 0.0, %v672
    %674 = vdwg.mxu0
    %675 = vmatprep.subr.mxu0 %v80
    %676 = vmatpush1.msra.mxu0 %v79
    %677 = vmatprep.subr.mxu0 %v84
    %678 = vmatpush1.msra.mxu0 %v83
    %679 = vmatprep.subr.mxu0 %v88
    %680 = vmatpush1.msra.mxu0 %v87
    %681 = vmatprep.subr.mxu0 %v92
    %682 = vmatpush1.msra.mxu0 %v91
    %683 = vmatprep.subr.mxu0 %v96
    %684 = vmatpush1.msra.mxu0 %v95
    %685 = vmatprep.subr.mxu0 %v100
    %686 = vmatpush1.msra.mxu0 %v99
    %687 = vmatprep.subr.mxu0 %v104
    %688 = vmatpush1.msra.mxu0 %v103
    %689 = vmatprep.subr.mxu0 %v108
    %690 = vmatpush1.msra.mxu0 %v107
    %691 = vmatprep.subr.mxu0 %v112
    %692 = vmatpush1.msra.mxu0 %v111
    %693 = vmatprep.subr.mxu0 %v116
    %694 = vmatpush1.msra.mxu0 %v115
    %695 = vmatprep.subr.mxu0 %v120
    %696 = vmatpush1.msra.mxu0 %v119
    %697 = vmatprep.subr.mxu0 %v124
    %698 = vmatpush1.msra.mxu0 %v123
    %699 = vmatprep.subr.mxu0 %v128
    %700 = vmatpush1.msra.mxu0 %v127
    %701 = vmatprep.subr.mxu0 %v132
    %702 = vmatpush1.msra.mxu0 %v131
    %703 = vmatprep.subr.mxu0 %v136
    %704 = vmatpush1.msra.mxu0 %v135
    %705 = vmatprep.subr.mxu0 %v140
    %706 = vmatpush1.msra.mxu0 %v139
    %707 = vmatprep.subr.mxu0 0.0
    %708 = vmatpush1.msra.mxu0 0.0
    %709 = vmatprep.subr.mxu0 0.0
    %710 = vmatpush1.msra.mxu0 0.0
    %711 = vmatprep.subr.mxu0 0.0
    %712 = vmatpush1.msra.mxu0 0.0
    %713 = vmatprep.subr.mxu0 0.0
    %714 = vmatpush1.msra.mxu0 0.0
    %715 = vmatprep.subr.mxu0 0.0
    %716 = vmatpush1.msra.mxu0 0.0
    %717 = vmatprep.subr.mxu0 0.0
    %718 = vmatpush1.msra.mxu0 0.0
    %719 = vmatprep.subr.mxu0 0.0
    %720 = vmatpush1.msra.mxu0 0.0
    %721 = vmatprep.subr.mxu0 0.0
    %722 = vmatpush1.msra.mxu0 0.0
    %723 = vmatprep.subr.mxu0 0.0
    %724 = vmatpush1.msra.mxu0 0.0
    %725 = vmatprep.subr.mxu0 0.0
    %726 = vmatpush1.msra.mxu0 0.0
    %727 = vmatprep.subr.mxu0 0.0
    %728 = vmatpush1.msra.mxu0 0.0
    %729 = vmatprep.subr.mxu0 0.0
    %730 = vmatpush1.msra.mxu0 0.0
    %731 = vmatprep.subr.mxu0 0.0
    %732 = vmatpush1.msra.mxu0 0.0
    %733 = vmatprep.subr.mxu0 0.0
    %734 = vmatpush1.msra.mxu0 0.0
    %735 = vmatprep.subr.mxu0 0.0
    %736 = vmatpush1.msra.mxu0 0.0
    %737 = vmatprep.subr.mxu0 0.0
    %738 = vmatpush1.msra.mxu0 0.0
    %739 = vmatprep.mubr.f32.mxu0 0.0
    %740 = vmatmul.mubr.f32.gmra.mrb[0].mxu0 %v603
    %v741 = vpop.f32.mrb[0].mxu0
    %v742 = vadd.f32 0.0, %v741
    %v743 = vpop.f32.mrb[0].mxu0
    %v744 = vadd.f32 0.0, %v743
    %745 = vdwg.mxu0
    %v750 = vcombine.low %v671, %v673
    %v751 = vcombine.low %v742, %v744
    %v753 = vunpack.c.l.s4 1983009808
    %v754 = vunpack.c.0.s8 %v753
    %v755 = vlaneseq
    %v756 = vshrl.u32 %v755, 7
    %v757 = vsub.s32 %v754, %v756
    %v758 = vrot.slane %v750, %v757
    %v760 = vunpack.c.l.s4 1983009808
    %v761 = vunpack.c.0.s8 %v760
    %v762 = vlaneseq
    %v763 = vshrl.u32 %v762, 7
    %v764 = vsub.s32 %v761, %v763
    %v765 = vrot.slane %v751, %v764
    %v766 = vcombine.low %v758, %v765
    %v768 = vadd.f32 %v602, %v766
    %s769 = scalar_lea.vmem [#allocation9], 48
    %v770 = vld [vmem:[%s769] sm:$0xff]
    %v771 = vld [vmem:[#allocation4] sm:$0x3]
    %772 = vmatprep.subr.mxu0 %v142
    %773 = vmatpush1.msra.mxu0 %v141
    %774 = vmatprep.subr.mxu0 %v146
    %775 = vmatpush1.msra.mxu0 %v145
    %776 = vmatprep.subr.mxu0 %v150
    %777 = vmatpush1.msra.mxu0 %v149
    %778 = vmatprep.subr.mxu0 %v154
    %779 = vmatpush1.msra.mxu0 %v153
    %780 = vmatprep.subr.mxu0 %v158
    %781 = vmatpush1.msra.mxu0 %v157
    %782 = vmatprep.subr.mxu0 %v162
    %783 = vmatpush1.msra.mxu0 %v161
    %784 = vmatprep.subr.mxu0 %v166
    %785 = vmatpush1.msra.mxu0 %v165
    %786 = vmatprep.subr.mxu0 %v170
    %787 = vmatpush1.msra.mxu0 %v169
    %788 = vmatprep.subr.mxu0 %v174
    %789 = vmatpush1.msra.mxu0 %v173
    %790 = vmatprep.subr.mxu0 %v178
    %791 = vmatpush1.msra.mxu0 %v177
    %792 = vmatprep.subr.mxu0 %v182
    %793 = vmatpush1.msra.mxu0 %v181
    %794 = vmatprep.subr.mxu0 %v186
    %795 = vmatpush1.msra.mxu0 %v185
    %796 = vmatprep.subr.mxu0 %v190
    %797 = vmatpush1.msra.mxu0 %v189
    %798 = vmatprep.subr.mxu0 %v194
    %799 = vmatpush1.msra.mxu0 %v193
    %800 = vmatprep.subr.mxu0 %v198
    %801 = vmatpush1.msra.mxu0 %v197
    %802 = vmatprep.subr.mxu0 %v202
    %803 = vmatpush1.msra.mxu0 %v201
    %804 = vmatprep.subr.mxu0 0.0
    %805 = vmatpush1.msra.mxu0 0.0
    %806 = vmatprep.subr.mxu0 0.0
    %807 = vmatpush1.msra.mxu0 0.0
    %808 = vmatprep.subr.mxu0 0.0
    %809 = vmatpush1.msra.mxu0 0.0
    %810 = vmatprep.subr.mxu0 0.0
    %811 = vmatpush1.msra.mxu0 0.0
    %812 = vmatprep.subr.mxu0 0.0
    %813 = vmatpush1.msra.mxu0 0.0
    %814 = vmatprep.subr.mxu0 0.0
    %815 = vmatpush1.msra.mxu0 0.0
    %816 = vmatprep.subr.mxu0 0.0
    %817 = vmatpush1.msra.mxu0 0.0
    %818 = vmatprep.subr.mxu0 0.0
    %819 = vmatpush1.msra.mxu0 0.0
    %820 = vmatprep.subr.mxu0 0.0
    %821 = vmatpush1.msra.mxu0 0.0
    %822 = vmatprep.subr.mxu0 0.0
    %823 = vmatpush1.msra.mxu0 0.0
    %824 = vmatprep.subr.mxu0 0.0
    %825 = vmatpush1.msra.mxu0 0.0
    %826 = vmatprep.subr.mxu0 0.0
    %827 = vmatpush1.msra.mxu0 0.0
    %828 = vmatprep.subr.mxu0 0.0
    %829 = vmatpush1.msra.mxu0 0.0
    %830 = vmatprep.subr.mxu0 0.0
    %831 = vmatpush1.msra.mxu0 0.0
    %832 = vmatprep.subr.mxu0 0.0
    %833 = vmatpush1.msra.mxu0 0.0
    %834 = vmatprep.subr.mxu0 0.0
    %835 = vmatpush1.msra.mxu0 0.0
    %836 = vmatprep.mubr.f32.mxu0 0.0
    %837 = vmatmul.mubr.f32.gmra.mrb[0].mxu0 %v771
    %v838 = vpop.f32.mrb[0].mxu0
    %v839 = vadd.f32 0.0, %v838
    %v840 = vpop.f32.mrb[0].mxu0
    %v841 = vadd.f32 0.0, %v840
    %842 = vdwg.mxu0
    %843 = vmatprep.subr.mxu0 %v144
    %844 = vmatpush1.msra.mxu0 %v143
    %845 = vmatprep.subr.mxu0 %v148
    %846 = vmatpush1.msra.mxu0 %v147
    %847 = vmatprep.subr.mxu0 %v152
    %848 = vmatpush1.msra.mxu0 %v151
    %849 = vmatprep.subr.mxu0 %v156
    %850 = vmatpush1.msra.mxu0 %v155
    %851 = vmatprep.subr.mxu0 %v160
    %852 = vmatpush1.msra.mxu0 %v159
    %853 = vmatprep.subr.mxu0 %v164
    %854 = vmatpush1.msra.mxu0 %v163
    %855 = vmatprep.subr.mxu0 %v168
    %856 = vmatpush1.msra.mxu0 %v167
    %857 = vmatprep.subr.mxu0 %v172
    %858 = vmatpush1.msra.mxu0 %v171
    %859 = vmatprep.subr.mxu0 %v176
    %860 = vmatpush1.msra.mxu0 %v175
    %861 = vmatprep.subr.mxu0 %v180
    %862 = vmatpush1.msra.mxu0 %v179
    %863 = vmatprep.subr.mxu0 %v184
    %864 = vmatpush1.msra.mxu0 %v183
    %865 = vmatprep.subr.mxu0 %v188
    %866 = vmatpush1.msra.mxu0 %v187
    %867 = vmatprep.subr.mxu0 %v192
    %868 = vmatpush1.msra.mxu0 %v191
    %869 = vmatprep.subr.mxu0 %v196
    %870 = vmatpush1.msra.mxu0 %v195
    %871 = vmatprep.subr.mxu0 %v200
    %872 = vmatpush1.msra.mxu0 %v199
    %873 = vmatprep.subr.mxu0 %v204
    %874 = vmatpush1.msra.mxu0 %v203
    %875 = vmatprep.subr.mxu0 0.0
    %876 = vmatpush1.msra.mxu0 0.0
    %877 = vmatprep.subr.mxu0 0.0
    %878 = vmatpush1.msra.mxu0 0.0
    %879 = vmatprep.subr.mxu0 0.0
    %880 = vmatpush1.msra.mxu0 0.0
    %881 = vmatprep.subr.mxu0 0.0
    %882 = vmatpush1.msra.mxu0 0.0
    %883 = vmatprep.subr.mxu0 0.0
    %884 = vmatpush1.msra.mxu0 0.0
    %885 = vmatprep.subr.mxu0 0.0
    %886 = vmatpush1.msra.mxu0 0.0
    %887 = vmatprep.subr.mxu0 0.0
    %888 = vmatpush1.msra.mxu0 0.0
    %889 = vmatprep.subr.mxu0 0.0
    %890 = vmatpush1.msra.mxu0 0.0
    %891 = vmatprep.subr.mxu0 0.0
    %892 = vmatpush1.msra.mxu0 0.0
    %893 = vmatprep.subr.mxu0 0.0
    %894 = vmatpush1.msra.mxu0 0.0
    %895 = vmatprep.subr.mxu0 0.0
    %896 = vmatpush1.msra.mxu0 0.0
    %897 = vmatprep.subr.mxu0 0.0
    %898 = vmatpush1.msra.mxu0 0.0
    %899 = vmatprep.subr.mxu0 0.0
    %900 = vmatpush1.msra.mxu0 0.0
    %901 = vmatprep.subr.mxu0 0.0
    %902 = vmatpush1.msra.mxu0 0.0
    %903 = vmatprep.subr.mxu0 0.0
    %904 = vmatpush1.msra.mxu0 0.0
    %905 = vmatprep.subr.mxu0 0.0
    %906 = vmatpush1.msra.mxu0 0.0
    %907 = vmatprep.mubr.f32.mxu0 0.0
    %908 = vmatmul.mubr.f32.gmra.mrb[0].mxu0 %v771
    %v909 = vpop.f32.mrb[0].mxu0
    %v910 = vadd.f32 0.0, %v909
    %v911 = vpop.f32.mrb[0].mxu0
    %v912 = vadd.f32 0.0, %v911
    %913 = vdwg.mxu0
    %v918 = vcombine.low %v839, %v841
    %v919 = vcombine.low %v910, %v912
    %v921 = vunpack.c.l.s4 1983009808
    %v922 = vunpack.c.0.s8 %v921
    %v923 = vlaneseq
    %v924 = vshrl.u32 %v923, 7
    %v925 = vsub.s32 %v922, %v924
    %v926 = vrot.slane %v918, %v925
    %v928 = vunpack.c.l.s4 1983009808
    %v929 = vunpack.c.0.s8 %v928
    %v930 = vlaneseq
    %v931 = vshrl.u32 %v930, 7
    %v932 = vsub.s32 %v929, %v931
    %v933 = vrot.slane %v919, %v932
    %v934 = vcombine.low %v926, %v933
    %v936 = vadd.f32 %v770, %v934
    %v937 = vld [vmem:[#allocation3] sm:$0x3]
    %v938 = vxor.u32 %v768, 2147483648
    %v939 = vmul.f32 %v938, 1.442695
    %v940 = vpow.pop %v939
    %v941 = vadd.f32 %v940, 1.0
    %v942 = vrcp.pop %v941
    %v943 = vmul.f32 1.0, %v942
    %v945 = vrot.slane %v768, 4
    %v947 = vtanh.pop %v945
    %v948 = vrot.slane %v768, 6
    %v950 = vxor.u32 %v948, 2147483648
    %v951 = vmul.f32 %v950, 1.442695
    %v952 = vpow.pop %v951
    %v953 = vadd.f32 %v952, 1.0
    %v954 = vrcp.pop %v953
    %v955 = vmul.f32 1.0, %v954
    %v957 = vrot.slane %v943, 2
    %v959 = vmul.f32 %v957, %v937
    %v960 = vmul.f32 %v943, %v947
    %v961 = vadd.f32 %v959, %v960
    %v962 = vtanh.pop %v961
    %v963 = vmul.f32 %v955, %v962
    %v964 = vld [vmem:[#allocation5] sm:$0x3]
    %v965 = vxor.u32 %v936, 2147483648
    %v966 = vmul.f32 %v965, 1.442695
    %v967 = vpow.pop %v966
    %v968 = vadd.f32 %v967, 1.0
    %v969 = vrcp.pop %v968
    %v970 = vmul.f32 1.0, %v969
    %v972 = vrot.slane %v936, 4
    %v974 = vtanh.pop %v972
    %v975 = vrot.slane %v936, 6
    %v977 = vxor.u32 %v975, 2147483648
    %v978 = vmul.f32 %v977, 1.442695
    %v979 = vpow.pop %v978
    %v980 = vadd.f32 %v979, 1.0
    %v981 = vrcp.pop %v980
    %v982 = vmul.f32 1.0, %v981
    %v984 = vrot.slane %v970, 2
    %v986 = vmul.f32 %v984, %v964
    %v987 = vmul.f32 %v970, %v974
    %v988 = vadd.f32 %v986, %v987
    %v989 = vtanh.pop %v988
    %v990 = vmul.f32 %v982, %v989
    %991 = vst [vmem:[#allocation2] sm:$0x3] %v963
    %992 = vst [vmem:[#allocation3] sm:$0x3] %v961
    %993 = vst [vmem:[#allocation4] sm:$0x3] %v990
    %994 = vst [vmem:[#allocation5] sm:$0x3] %v988
    %s995 = scalar_lea.vmem [#allocation14], 4
    %996 = vst [vmem:[%s995] sm:$0x3] %v963
    %s997 = scalar_lea.vmem [#allocation14], 24
    %998 = vst [vmem:[%s997 + $0x2] sm:$0x3] %v990
    %s999 = scalar_lea.vmem [#allocation6], 16
    %v1000 = vld [vmem:[%s999] sm:$0xff]
    %v1001 = vld [vmem:[#allocation2] sm:$0x3]
    %1002 = vmatprep.subr.mxu0 %v78
    %1003 = vmatpush1.msra.mxu0 %v77
    %1004 = vmatprep.subr.mxu0 %v82
    %1005 = vmatpush1.msra.mxu0 %v81
    %1006 = vmatprep.subr.mxu0 %v86
    %1007 = vmatpush1.msra.mxu0 %v85
    %1008 = vmatprep.subr.mxu0 %v90
    %1009 = vmatpush1.msra.mxu0 %v89
    %1010 = vmatprep.subr.mxu0 %v94
    %1011 = vmatpush1.msra.mxu0 %v93
    %1012 = vmatprep.subr.mxu0 %v98
    %1013 = vmatpush1.msra.mxu0 %v97
    %1014 = vmatprep.subr.mxu0 %v102
    %1015 = vmatpush1.msra.mxu0 %v101
    %1016 = vmatprep.subr.mxu0 %v106
    %1017 = vmatpush1.msra.mxu0 %v105
    %1018 = vmatprep.subr.mxu0 %v110
    %1019 = vmatpush1.msra.mxu0 %v109
    %1020 = vmatprep.subr.mxu0 %v114
    %1021 = vmatpush1.msra.mxu0 %v113
    %1022 = vmatprep.subr.mxu0 %v118
    %1023 = vmatpush1.msra.mxu0 %v117
    %1024 = vmatprep.subr.mxu0 %v122
    %1025 = vmatpush1.msra.mxu0 %v121
    %1026 = vmatprep.subr.mxu0 %v126
    %1027 = vmatpush1.msra.mxu0 %v125
    %1028 = vmatprep.subr.mxu0 %v130
    %1029 = vmatpush1.msra.mxu0 %v129
    %1030 = vmatprep.subr.mxu0 %v134
    %1031 = vmatpush1.msra.mxu0 %v133
    %1032 = vmatprep.subr.mxu0 %v138
    %1033 = vmatpush1.msra.mxu0 %v137
    %1034 = vmatprep.subr.mxu0 0.0
    %1035 = vmatpush1.msra.mxu0 0.0
    %1036 = vmatprep.subr.mxu0 0.0
    %1037 = vmatpush1.msra.mxu0 0.0
    %1038 = vmatprep.subr.mxu0 0.0
    %1039 = vmatpush1.msra.mxu0 0.0
    %1040 = vmatprep.subr.mxu0 0.0
    %1041 = vmatpush1.msra.mxu0 0.0
    %1042 = vmatprep.subr.mxu0 0.0
    %1043 = vmatpush1.msra.mxu0 0.0
    %1044 = vmatprep.subr.mxu0 0.0
    %1045 = vmatpush1.msra.mxu0 0.0
    %1046 = vmatprep.subr.mxu0 0.0
    %1047 = vmatpush1.msra.mxu0 0.0
    %1048 = vmatprep.subr.mxu0 0.0
    %1049 = vmatpush1.msra.mxu0 0.0
    %1050 = vmatprep.subr.mxu0 0.0
    %1051 = vmatpush1.msra.mxu0 0.0
    %1052 = vmatprep.subr.mxu0 0.0
    %1053 = vmatpush1.msra.mxu0 0.0
    %1054 = vmatprep.subr.mxu0 0.0
    %1055 = vmatpush1.msra.mxu0 0.0
    %1056 = vmatprep.subr.mxu0 0.0
    %1057 = vmatpush1.msra.mxu0 0.0
    %1058 = vmatprep.subr.mxu0 0.0
    %1059 = vmatpush1.msra.mxu0 0.0
    %1060 = vmatprep.subr.mxu0 0.0
    %1061 = vmatpush1.msra.mxu0 0.0
    %1062 = vmatprep.subr.mxu0 0.0
    %1063 = vmatpush1.msra.mxu0 0.0
    %1064 = vmatprep.subr.mxu0 0.0
    %1065 = vmatpush1.msra.mxu0 0.0
    %1066 = vmatprep.mubr.f32.mxu0 0.0
    %1067 = vmatmul.mubr.f32.gmra.mrb[0].mxu0 %v1001
    %v1068 = vpop.f32.mrb[0].mxu0
    %v1069 = vadd.f32 0.0, %v1068
    %v1070 = vpop.f32.mrb[0].mxu0
    %v1071 = vadd.f32 0.0, %v1070
    %1072 = vdwg.mxu0
    %1073 = vmatprep.subr.mxu0 %v80
    %1074 = vmatpush1.msra.mxu0 %v79
    %1075 = vmatprep.subr.mxu0 %v84
    %1076 = vmatpush1.msra.mxu0 %v83
    %1077 = vmatprep.subr.mxu0 %v88
    %1078 = vmatpush1.msra.mxu0 %v87
    %1079 = vmatprep.subr.mxu0 %v92
    %1080 = vmatpush1.msra.mxu0 %v91
    %1081 = vmatprep.subr.mxu0 %v96
    %1082 = vmatpush1.msra.mxu0 %v95
    %1083 = vmatprep.subr.mxu0 %v100
    %1084 = vmatpush1.msra.mxu0 %v99
    %1085 = vmatprep.subr.mxu0 %v104
    %1086 = vmatpush1.msra.mxu0 %v103
    %1087 = vmatprep.subr.mxu0 %v108
    %1088 = vmatpush1.msra.mxu0 %v107
    %1089 = vmatprep.subr.mxu0 %v112
    %1090 = vmatpush1.msra.mxu0 %v111
    %1091 = vmatprep.subr.mxu0 %v116
    %1092 = vmatpush1.msra.mxu0 %v115
    %1093 = vmatprep.subr.mxu0 %v120
    %1094 = vmatpush1.msra.mxu0 %v119
    %1095 = vmatprep.subr.mxu0 %v124
    %1096 = vmatpush1.msra.mxu0 %v123
    %1097 = vmatprep.subr.mxu0 %v128
    %1098 = vmatpush1.msra.mxu0 %v127
    %1099 = vmatprep.subr.mxu0 %v132
    %1100 = vmatpush1.msra.mxu0 %v131
    %1101 = vmatprep.subr.mxu0 %v136
    %1102 = vmatpush1.msra.mxu0 %v135
    %1103 = vmatprep.subr.mxu0 %v140
    %1104 = vmatpush1.msra.mxu0 %v139
    %1105 = vmatprep.subr.mxu0 0.0
    %1106 = vmatpush1.msra.mxu0 0.0
    %1107 = vmatprep.subr.mxu0 0.0
    %1108 = vmatpush1.msra.mxu0 0.0
    %1109 = vmatprep.subr.mxu0 0.0
    %1110 = vmatpush1.msra.mxu0 0.0
    %1111 = vmatprep.subr.mxu0 0.0
    %1112 = vmatpush1.msra.mxu0 0.0
    %1113 = vmatprep.subr.mxu0 0.0
    %1114 = vmatpush1.msra.mxu0 0.0
    %1115 = vmatprep.subr.mxu0 0.0
    %1116 = vmatpush1.msra.mxu0 0.0
    %1117 = vmatprep.subr.mxu0 0.0
    %1118 = vmatpush1.msra.mxu0 0.0
    %1119 = vmatprep.subr.mxu0 0.0
    %1120 = vmatpush1.msra.mxu0 0.0
    %1121 = vmatprep.subr.mxu0 0.0
    %1122 = vmatpush1.msra.mxu0 0.0
    %1123 = vmatprep.subr.mxu0 0.0
    %1124 = vmatpush1.msra.mxu0 0.0
    %1125 = vmatprep.subr.mxu0 0.0
    %1126 = vmatpush1.msra.mxu0 0.0
    %1127 = vmatprep.subr.mxu0 0.0
    %1128 = vmatpush1.msra.mxu0 0.0
    %1129 = vmatprep.subr.mxu0 0.0
    %1130 = vmatpush1.msra.mxu0 0.0
    %1131 = vmatprep.subr.mxu0 0.0
    %1132 = vmatpush1.msra.mxu0 0.0
    %1133 = vmatprep.subr.mxu0 0.0
    %1134 = vmatpush1.msra.mxu0 0.0
    %1135 = vmatprep.subr.mxu0 0.0
    %1136 = vmatpush1.msra.mxu0 0.0
    %1137 = vmatprep.mubr.f32.mxu0 0.0
    %1138 = vmatmul.mubr.f32.gmra.mrb[0].mxu0 %v1001
    %v1139 = vpop.f32.mrb[0].mxu0
    %v1140 = vadd.f32 0.0, %v1139
    %v1141 = vpop.f32.mrb[0].mxu0
    %v1142 = vadd.f32 0.0, %v1141
    %1143 = vdwg.mxu0
    %v1148 = vcombine.low %v1069, %v1071
    %v1149 = vcombine.low %v1140, %v1142
    %v1151 = vunpack.c.l.s4 1983009808
    %v1152 = vunpack.c.0.s8 %v1151
    %v1153 = vlaneseq
    %v1154 = vshrl.u32 %v1153, 7
    %v1155 = vsub.s32 %v1152, %v1154
    %v1156 = vrot.slane %v1148, %v1155
    %v1158 = vunpack.c.l.s4 1983009808
    %v1159 = vunpack.c.0.s8 %v1158
    %v1160 = vlaneseq
    %v1161 = vshrl.u32 %v1160, 7
    %v1162 = vsub.s32 %v1159, %v1161
    %v1163 = vrot.slane %v1149, %v1162
    %v1164 = vcombine.low %v1156, %v1163
    %v1166 = vadd.f32 %v1000, %v1164
    %s1167 = scalar_lea.vmem [#allocation9], 40
    %v1168 = vld [vmem:[%s1167] sm:$0xff]
    %v1169 = vld [vmem:[#allocation4] sm:$0x3]
    %1170 = vmatprep.subr.mxu0 %v142
    %1171 = vmatpush1.msra.mxu0 %v141
    %1172 = vmatprep.subr.mxu0 %v146
    %1173 = vmatpush1.msra.mxu0 %v145
    %1174 = vmatprep.subr.mxu0 %v150
    %1175 = vmatpush1.msra.mxu0 %v149
    %1176 = vmatprep.subr.mxu0 %v154
    %1177 = vmatpush1.msra.mxu0 %v153
    %1178 = vmatprep.subr.mxu0 %v158
    %1179 = vmatpush1.msra.mxu0 %v157
    %1180 = vmatprep.subr.mxu0 %v162
    %1181 = vmatpush1.msra.mxu0 %v161
    %1182 = vmatprep.subr.mxu0 %v166
    %1183 = vmatpush1.msra.mxu0 %v165
    %1184 = vmatprep.subr.mxu0 %v170
    %1185 = vmatpush1.msra.mxu0 %v169
    %1186 = vmatprep.subr.mxu0 %v174
    %1187 = vmatpush1.msra.mxu0 %v173
    %1188 = vmatprep.subr.mxu0 %v178
    %1189 = vmatpush1.msra.mxu0 %v177
    %1190 = vmatprep.subr.mxu0 %v182
    %1191 = vmatpush1.msra.mxu0 %v181
    %1192 = vmatprep.subr.mxu0 %v186
    %1193 = vmatpush1.msra.mxu0 %v185
    %1194 = vmatprep.subr.mxu0 %v190
    %1195 = vmatpush1.msra.mxu0 %v189
    %1196 = vmatprep.subr.mxu0 %v194
    %1197 = vmatpush1.msra.mxu0 %v193
    %1198 = vmatprep.subr.mxu0 %v198
    %1199 = vmatpush1.msra.mxu0 %v197
    %1200 = vmatprep.subr.mxu0 %v202
    %1201 = vmatpush1.msra.mxu0 %v201
    %1202 = vmatprep.subr.mxu0 0.0
    %1203 = vmatpush1.msra.mxu0 0.0
    %1204 = vmatprep.subr.mxu0 0.0
    %1205 = vmatpush1.msra.mxu0 0.0
    %1206 = vmatprep.subr.mxu0 0.0
    %1207 = vmatpush1.msra.mxu0 0.0
    %1208 = vmatprep.subr.mxu0 0.0
    %1209 = vmatpush1.msra.mxu0 0.0
    %1210 = vmatprep.subr.mxu0 0.0
    %1211 = vmatpush1.msra.mxu0 0.0
    %1212 = vmatprep.subr.mxu0 0.0
    %1213 = vmatpush1.msra.mxu0 0.0
    %1214 = vmatprep.subr.mxu0 0.0
    %1215 = vmatpush1.msra.mxu0 0.0
    %1216 = vmatprep.subr.mxu0 0.0
    %1217 = vmatpush1.msra.mxu0 0.0
    %1218 = vmatprep.subr.mxu0 0.0
    %1219 = vmatpush1.msra.mxu0 0.0
    %1220 = vmatprep.subr.mxu0 0.0
    %1221 = vmatpush1.msra.mxu0 0.0
    %1222 = vmatprep.subr.mxu0 0.0
    %1223 = vmatpush1.msra.mxu0 0.0
    %1224 = vmatprep.subr.mxu0 0.0
    %1225 = vmatpush1.msra.mxu0 0.0
    %1226 = vmatprep.subr.mxu0 0.0
    %1227 = vmatpush1.msra.mxu0 0.0
    %1228 = vmatprep.subr.mxu0 0.0
    %1229 = vmatpush1.msra.mxu0 0.0
    %1230 = vmatprep.subr.mxu0 0.0
    %1231 = vmatpush1.msra.mxu0 0.0
    %1232 = vmatprep.subr.mxu0 0.0
    %1233 = vmatpush1.msra.mxu0 0.0
    %1234 = vmatprep.mubr.f32.mxu0 0.0
    %1235 = vmatmul.mubr.f32.gmra.mrb[0].mxu0 %v1169
    %v1236 = vpop.f32.mrb[0].mxu0
    %v1237 = vadd.f32 0.0, %v1236
    %v1238 = vpop.f32.mrb[0].mxu0
    %v1239 = vadd.f32 0.0, %v1238
    %1240 = vdwg.mxu0
    %1241 = vmatprep.subr.mxu0 %v144
    %1242 = vmatpush1.msra.mxu0 %v143
    %1243 = vmatprep.subr.mxu0 %v148
    %1244 = vmatpush1.msra.mxu0 %v147
    %1245 = vmatprep.subr.mxu0 %v152
    %1246 = vmatpush1.msra.mxu0 %v151
    %1247 = vmatprep.subr.mxu0 %v156
    %1248 = vmatpush1.msra.mxu0 %v155
    %1249 = vmatprep.subr.mxu0 %v160
    %1250 = vmatpush1.msra.mxu0 %v159
    %1251 = vmatprep.subr.mxu0 %v164
    %1252 = vmatpush1.msra.mxu0 %v163
    %1253 = vmatprep.subr.mxu0 %v168
    %1254 = vmatpush1.msra.mxu0 %v167
    %1255 = vmatprep.subr.mxu0 %v172
    %1256 = vmatpush1.msra.mxu0 %v171
    %1257 = vmatprep.subr.mxu0 %v176
    %1258 = vmatpush1.msra.mxu0 %v175
    %1259 = vmatprep.subr.mxu0 %v180
    %1260 = vmatpush1.msra.mxu0 %v179
    %1261 = vmatprep.subr.mxu0 %v184
    %1262 = vmatpush1.msra.mxu0 %v183
    %1263 = vmatprep.subr.mxu0 %v188
    %1264 = vmatpush1.msra.mxu0 %v187
    %1265 = vmatprep.subr.mxu0 %v192
    %1266 = vmatpush1.msra.mxu0 %v191
    %1267 = vmatprep.subr.mxu0 %v196
    %1268 = vmatpush1.msra.mxu0 %v195
    %1269 = vmatprep.subr.mxu0 %v200
    %1270 = vmatpush1.msra.mxu0 %v199
    %1271 = vmatprep.subr.mxu0 %v204
    %1272 = vmatpush1.msra.mxu0 %v203
    %1273 = vmatprep.subr.mxu0 0.0
    %1274 = vmatpush1.msra.mxu0 0.0
    %1275 = vmatprep.subr.mxu0 0.0
    %1276 = vmatpush1.msra.mxu0 0.0
    %1277 = vmatprep.subr.mxu0 0.0
    %1278 = vmatpush1.msra.mxu0 0.0
    %1279 = vmatprep.subr.mxu0 0.0
    %1280 = vmatpush1.msra.mxu0 0.0
    %1281 = vmatprep.subr.mxu0 0.0
    %1282 = vmatpush1.msra.mxu0 0.0
    %1283 = vmatprep.subr.mxu0 0.0
    %1284 = vmatpush1.msra.mxu0 0.0
    %1285 = vmatprep.subr.mxu0 0.0
    %1286 = vmatpush1.msra.mxu0 0.0
    %1287 = vmatprep.subr.mxu0 0.0
    %1288 = vmatpush1.msra.mxu0 0.0
    %1289 = vmatprep.subr.mxu0 0.0
    %1290 = vmatpush1.msra.mxu0 0.0
    %1291 = vmatprep.subr.mxu0 0.0
    %1292 = vmatpush1.msra.mxu0 0.0
    %1293 = vmatprep.subr.mxu0 0.0
    %1294 = vmatpush1.msra.mxu0 0.0
    %1295 = vmatprep.subr.mxu0 0.0
    %1296 = vmatpush1.msra.mxu0 0.0
    %1297 = vmatprep.subr.mxu0 0.0
    %1298 = vmatpush1.msra.mxu0 0.0
    %1299 = vmatprep.subr.mxu0 0.0
    %1300 = vmatpush1.msra.mxu0 0.0
    %1301 = vmatprep.subr.mxu0 0.0
    %1302 = vmatpush1.msra.mxu0 0.0
    %1303 = vmatprep.subr.mxu0 0.0
    %1304 = vmatpush1.msra.mxu0 0.0
    %1305 = vmatprep.mubr.f32.mxu0 0.0
    %1306 = vmatmul.mubr.f32.gmra.mrb[0].mxu0 %v1169
    %v1307 = vpop.f32.mrb[0].mxu0
    %v1308 = vadd.f32 0.0, %v1307
    %v1309 = vpop.f32.mrb[0].mxu0
    %v1310 = vadd.f32 0.0, %v1309
    %1311 = vdwg.mxu0
    %v1316 = vcombine.low %v1237, %v1239
    %v1317 = vcombine.low %v1308, %v1310
    %v1319 = vunpack.c.l.s4 1983009808
    %v1320 = vunpack.c.0.s8 %v1319
    %v1321 = vlaneseq
    %v1322 = vshrl.u32 %v1321, 7
    %v1323 = vsub.s32 %v1320, %v1322
    %v1324 = vrot.slane %v1316, %v1323
    %v1326 = vunpack.c.l.s4 1983009808
    %v1327 = vunpack.c.0.s8 %v1326
    %v1328 = vlaneseq
    %v1329 = vshrl.u32 %v1328, 7
    %v1330 = vsub.s32 %v1327, %v1329
    %v1331 = vrot.slane %v1317, %v1330
    %v1332 = vcombine.low %v1324, %v1331
    %v1334 = vadd.f32 %v1168, %v1332
    %v1335 = vld [vmem:[#allocation3] sm:$0x3]
    %v1336 = vxor.u32 %v1166, 2147483648
    %v1337 = vmul.f32 %v1336, 1.442695
    %v1338 = vpow.pop %v1337
    %v1339 = vadd.f32 %v1338, 1.0
    %v1340 = vrcp.pop %v1339
    %v1341 = vmul.f32 1.0, %v1340
    %v1343 = vrot.slane %v1166, 4
    %v1345 = vtanh.pop %v1343
    %v1346 = vrot.slane %v1166, 6
    %v1348 = vxor.u32 %v1346, 2147483648
    %v1349 = vmul.f32 %v1348, 1.442695
    %v1350 = vpow.pop %v1349
    %v1351 = vadd.f32 %v1350, 1.0
    %v1352 = vrcp.pop %v1351
    %v1353 = vmul.f32 1.0, %v1352
    %v1355 = vrot.slane %v1341, 2
    %v1357 = vmul.f32 %v1355, %v1335
    %v1358 = vmul.f32 %v1341, %v1345
    %v1359 = vadd.f32 %v1357, %v1358
    %v1360 = vtanh.pop %v1359
    %v1361 = vmul.f32 %v1353, %v1360
    %v1362 = vld [vmem:[#allocation5] sm:$0x3]
    %v1363 = vxor.u32 %v1334, 2147483648
    %v1364 = vmul.f32 %v1363, 1.442695
    %v1365 = vpow.pop %v1364
    %v1366 = vadd.f32 %v1365, 1.0
    %v1367 = vrcp.pop %v1366
    %v1368 = vmul.f32 1.0, %v1367
    %v1370 = vrot.slane %v1334, 4
    %v1372 = vtanh.pop %v1370
    %v1373 = vrot.slane %v1334, 6
    %v1375 = vxor.u32 %v1373, 2147483648
    %v1376 = vmul.f32 %v1375, 1.442695
    %v1377 = vpow.pop %v1376
    %v1378 = vadd.f32 %v1377, 1.0
    %v1379 = vrcp.pop %v1378
    %v1380 = vmul.f32 1.0, %v1379
    %v1382 = vrot.slane %v1368, 2
    %v1384 = vmul.f32 %v1382, %v1362
    %v1385 = vmul.f32 %v1368, %v1372
    %v1386 = vadd.f32 %v1384, %v1385
    %v1387 = vtanh.pop %v1386
    %v1388 = vmul.f32 %v1380, %v1387
    %1389 = vst [vmem:[#allocation2] sm:$0x3] %v1361
    %1390 = vst [vmem:[#allocation3] sm:$0x3] %v1359
    %1391 = vst [vmem:[#allocation4] sm:$0x3] %v1388
    %1392 = vst [vmem:[#allocation5] sm:$0x3] %v1386
    %s1393 = scalar_lea.vmem [#allocation14], 8
    %1394 = vst [vmem:[%s1393] sm:$0x3] %v1361
    %s1395 = scalar_lea.vmem [#allocation14], 20
    %1396 = vst [vmem:[%s1395 + $0x2] sm:$0x3] %v1388
    %s1397 = scalar_lea.vmem [#allocation6], 24
    %v1398 = vld [vmem:[%s1397] sm:$0xff]
    %v1399 = vld [vmem:[#allocation2] sm:$0x3]
    %1400 = vmatprep.subr.mxu0 %v78
    %1401 = vmatpush1.msra.mxu0 %v77
    %1402 = vmatprep.subr.mxu0 %v82
    %1403 = vmatpush1.msra.mxu0 %v81
    %1404 = vmatprep.subr.mxu0 %v86
    %1405 = vmatpush1.msra.mxu0 %v85
    %1406 = vmatprep.subr.mxu0 %v90
    %1407 = vmatpush1.msra.mxu0 %v89
    %1408 = vmatprep.subr.mxu0 %v94
    %1409 = vmatpush1.msra.mxu0 %v93
    %1410 = vmatprep.subr.mxu0 %v98
    %1411 = vmatpush1.msra.mxu0 %v97
    %1412 = vmatprep.subr.mxu0 %v102
    %1413 = vmatpush1.msra.mxu0 %v101
    %1414 = vmatprep.subr.mxu0 %v106
    %1415 = vmatpush1.msra.mxu0 %v105
    %1416 = vmatprep.subr.mxu0 %v110
    %1417 = vmatpush1.msra.mxu0 %v109
    %1418 = vmatprep.subr.mxu0 %v114
    %1419 = vmatpush1.msra.mxu0 %v113
    %1420 = vmatprep.subr.mxu0 %v118
    %1421 = vmatpush1.msra.mxu0 %v117
    %1422 = vmatprep.subr.mxu0 %v122
    %1423 = vmatpush1.msra.mxu0 %v121
    %1424 = vmatprep.subr.mxu0 %v126
    %1425 = vmatpush1.msra.mxu0 %v125
    %1426 = vmatprep.subr.mxu0 %v130
    %1427 = vmatpush1.msra.mxu0 %v129
    %1428 = vmatprep.subr.mxu0 %v134
    %1429 = vmatpush1.msra.mxu0 %v133
    %1430 = vmatprep.subr.mxu0 %v138
    %1431 = vmatpush1.msra.mxu0 %v137
    %1432 = vmatprep.subr.mxu0 0.0
    %1433 = vmatpush1.msra.mxu0 0.0
    %1434 = vmatprep.subr.mxu0 0.0
    %1435 = vmatpush1.msra.mxu0 0.0
    %1436 = vmatprep.subr.mxu0 0.0
    %1437 = vmatpush1.msra.mxu0 0.0
    %1438 = vmatprep.subr.mxu0 0.0
    %1439 = vmatpush1.msra.mxu0 0.0
    %1440 = vmatprep.subr.mxu0 0.0
    %1441 = vmatpush1.msra.mxu0 0.0
    %1442 = vmatprep.subr.mxu0 0.0
    %1443 = vmatpush1.msra.mxu0 0.0
    %1444 = vmatprep.subr.mxu0 0.0
    %1445 = vmatpush1.msra.mxu0 0.0
    %1446 = vmatprep.subr.mxu0 0.0
    %1447 = vmatpush1.msra.mxu0 0.0
    %1448 = vmatprep.subr.mxu0 0.0
    %1449 = vmatpush1.msra.mxu0 0.0
    %1450 = vmatprep.subr.mxu0 0.0
    %1451 = vmatpush1.msra.mxu0 0.0
    %1452 = vmatprep.subr.mxu0 0.0
    %1453 = vmatpush1.msra.mxu0 0.0
    %1454 = vmatprep.subr.mxu0 0.0
    %1455 = vmatpush1.msra.mxu0 0.0
    %1456 = vmatprep.subr.mxu0 0.0
    %1457 = vmatpush1.msra.mxu0 0.0
    %1458 = vmatprep.subr.mxu0 0.0
    %1459 = vmatpush1.msra.mxu0 0.0
    %1460 = vmatprep.subr.mxu0 0.0
    %1461 = vmatpush1.msra.mxu0 0.0
    %1462 = vmatprep.subr.mxu0 0.0
    %1463 = vmatpush1.msra.mxu0 0.0
    %1464 = vmatprep.mubr.f32.mxu0 0.0
    %1465 = vmatmul.mubr.f32.gmra.mrb[0].mxu0 %v1399
    %v1466 = vpop.f32.mrb[0].mxu0
    %v1467 = vadd.f32 0.0, %v1466
    %v1468 = vpop.f32.mrb[0].mxu0
    %v1469 = vadd.f32 0.0, %v1468
    %1470 = vdwg.mxu0
    %1471 = vmatprep.subr.mxu0 %v80
    %1472 = vmatpush1.msra.mxu0 %v79
    %1473 = vmatprep.subr.mxu0 %v84
    %1474 = vmatpush1.msra.mxu0 %v83
    %1475 = vmatprep.subr.mxu0 %v88
    %1476 = vmatpush1.msra.mxu0 %v87
    %1477 = vmatprep.subr.mxu0 %v92
    %1478 = vmatpush1.msra.mxu0 %v91
    %1479 = vmatprep.subr.mxu0 %v96
    %1480 = vmatpush1.msra.mxu0 %v95
    %1481 = vmatprep.subr.mxu0 %v100
    %1482 = vmatpush1.msra.mxu0 %v99
    %1483 = vmatprep.subr.mxu0 %v104
    %1484 = vmatpush1.msra.mxu0 %v103
    %1485 = vmatprep.subr.mxu0 %v108
    %1486 = vmatpush1.msra.mxu0 %v107
    %1487 = vmatprep.subr.mxu0 %v112
    %1488 = vmatpush1.msra.mxu0 %v111
    %1489 = vmatprep.subr.mxu0 %v116
    %1490 = vmatpush1.msra.mxu0 %v115
    %1491 = vmatprep.subr.mxu0 %v120
    %1492 = vmatpush1.msra.mxu0 %v119
    %1493 = vmatprep.subr.mxu0 %v124
    %1494 = vmatpush1.msra.mxu0 %v123
    %1495 = vmatprep.subr.mxu0 %v128
    %1496 = vmatpush1.msra.mxu0 %v127
    %1497 = vmatprep.subr.mxu0 %v132
    %1498 = vmatpush1.msra.mxu0 %v131
    %1499 = vmatprep.subr.mxu0 %v136
    %1500 = vmatpush1.msra.mxu0 %v135
    %1501 = vmatprep.subr.mxu0 %v140
    %1502 = vmatpush1.msra.mxu0 %v139
    %1503 = vmatprep.subr.mxu0 0.0
    %1504 = vmatpush1.msra.mxu0 0.0
    %1505 = vmatprep.subr.mxu0 0.0
    %1506 = vmatpush1.msra.mxu0 0.0
    %1507 = vmatprep.subr.mxu0 0.0
    %1508 = vmatpush1.msra.mxu0 0.0
    %1509 = vmatprep.subr.mxu0 0.0
    %1510 = vmatpush1.msra.mxu0 0.0
    %1511 = vmatprep.subr.mxu0 0.0
    %1512 = vmatpush1.msra.mxu0 0.0
    %1513 = vmatprep.subr.mxu0 0.0
    %1514 = vmatpush1.msra.mxu0 0.0
    %1515 = vmatprep.subr.mxu0 0.0
    %1516 = vmatpush1.msra.mxu0 0.0
    %1517 = vmatprep.subr.mxu0 0.0
    %1518 = vmatpush1.msra.mxu0 0.0
    %1519 = vmatprep.subr.mxu0 0.0
    %1520 = vmatpush1.msra.mxu0 0.0
    %1521 = vmatprep.subr.mxu0 0.0
    %1522 = vmatpush1.msra.mxu0 0.0
    %1523 = vmatprep.subr.mxu0 0.0
    %1524 = vmatpush1.msra.mxu0 0.0
    %1525 = vmatprep.subr.mxu0 0.0
    %1526 = vmatpush1.msra.mxu0 0.0
    %1527 = vmatprep.subr.mxu0 0.0
    %1528 = vmatpush1.msra.mxu0 0.0
    %1529 = vmatprep.subr.mxu0 0.0
    %1530 = vmatpush1.msra.mxu0 0.0
    %1531 = vmatprep.subr.mxu0 0.0
    %1532 = vmatpush1.msra.mxu0 0.0
    %1533 = vmatprep.subr.mxu0 0.0
    %1534 = vmatpush1.msra.mxu0 0.0
    %1535 = vmatprep.mubr.f32.mxu0 0.0
    %1536 = vmatmul.mubr.f32.gmra.mrb[0].mxu0 %v1399
    %v1537 = vpop.f32.mrb[0].mxu0
    %v1538 = vadd.f32 0.0, %v1537
    %v1539 = vpop.f32.mrb[0].mxu0
    %v1540 = vadd.f32 0.0, %v1539
    %1541 = vdwg.mxu0
    %v1546 = vcombine.low %v1467, %v1469
    %v1547 = vcombine.low %v1538, %v1540
    %v1549 = vunpack.c.l.s4 1983009808
    %v1550 = vunpack.c.0.s8 %v1549
    %v1551 = vlaneseq
    %v1552 = vshrl.u32 %v1551, 7
    %v1553 = vsub.s32 %v1550, %v1552
    %v1554 = vrot.slane %v1546, %v1553
    %v1556 = vunpack.c.l.s4 1983009808
    %v1557 = vunpack.c.0.s8 %v1556
    %v1558 = vlaneseq
    %v1559 = vshrl.u32 %v1558, 7
    %v1560 = vsub.s32 %v1557, %v1559
    %v1561 = vrot.slane %v1547, %v1560
    %v1562 = vcombine.low %v1554, %v1561
    %v1564 = vadd.f32 %v1398, %v1562
    %s1565 = scalar_lea.vmem [#allocation9], 32
    %v1566 = vld [vmem:[%s1565] sm:$0xff]
    %v1567 = vld [vmem:[#allocation4] sm:$0x3]
    %1568 = vmatprep.subr.mxu0 %v142
    %1569 = vmatpush1.msra.mxu0 %v141
    %1570 = vmatprep.subr.mxu0 %v146
    %1571 = vmatpush1.msra.mxu0 %v145
    %1572 = vmatprep.subr.mxu0 %v150
    %1573 = vmatpush1.msra.mxu0 %v149
    %1574 = vmatprep.subr.mxu0 %v154
    %1575 = vmatpush1.msra.mxu0 %v153
    %1576 = vmatprep.subr.mxu0 %v158
    %1577 = vmatpush1.msra.mxu0 %v157
    %1578 = vmatprep.subr.mxu0 %v162
    %1579 = vmatpush1.msra.mxu0 %v161
    %1580 = vmatprep.subr.mxu0 %v166
    %1581 = vmatpush1.msra.mxu0 %v165
    %1582 = vmatprep.subr.mxu0 %v170
    %1583 = vmatpush1.msra.mxu0 %v169
    %1584 = vmatprep.subr.mxu0 %v174
    %1585 = vmatpush1.msra.mxu0 %v173
    %1586 = vmatprep.subr.mxu0 %v178
    %1587 = vmatpush1.msra.mxu0 %v177
    %1588 = vmatprep.subr.mxu0 %v182
    %1589 = vmatpush1.msra.mxu0 %v181
    %1590 = vmatprep.subr.mxu0 %v186
    %1591 = vmatpush1.msra.mxu0 %v185
    %1592 = vmatprep.subr.mxu0 %v190
    %1593 = vmatpush1.msra.mxu0 %v189
    %1594 = vmatprep.subr.mxu0 %v194
    %1595 = vmatpush1.msra.mxu0 %v193
    %1596 = vmatprep.subr.mxu0 %v198
    %1597 = vmatpush1.msra.mxu0 %v197
    %1598 = vmatprep.subr.mxu0 %v202
    %1599 = vmatpush1.msra.mxu0 %v201
    %1600 = vmatprep.subr.mxu0 0.0
    %1601 = vmatpush1.msra.mxu0 0.0
    %1602 = vmatprep.subr.mxu0 0.0
    %1603 = vmatpush1.msra.mxu0 0.0
    %1604 = vmatprep.subr.mxu0 0.0
    %1605 = vmatpush1.msra.mxu0 0.0
    %1606 = vmatprep.subr.mxu0 0.0
    %1607 = vmatpush1.msra.mxu0 0.0
    %1608 = vmatprep.subr.mxu0 0.0
    %1609 = vmatpush1.msra.mxu0 0.0
    %1610 = vmatprep.subr.mxu0 0.0
    %1611 = vmatpush1.msra.mxu0 0.0
    %1612 = vmatprep.subr.mxu0 0.0
    %1613 = vmatpush1.msra.mxu0 0.0
    %1614 = vmatprep.subr.mxu0 0.0
    %1615 = vmatpush1.msra.mxu0 0.0
    %1616 = vmatprep.subr.mxu0 0.0
    %1617 = vmatpush1.msra.mxu0 0.0
    %1618 = vmatprep.subr.mxu0 0.0
    %1619 = vmatpush1.msra.mxu0 0.0
    %1620 = vmatprep.subr.mxu0 0.0
    %1621 = vmatpush1.msra.mxu0 0.0
    %1622 = vmatprep.subr.mxu0 0.0
    %1623 = vmatpush1.msra.mxu0 0.0
    %1624 = vmatprep.subr.mxu0 0.0
    %1625 = vmatpush1.msra.mxu0 0.0
    %1626 = vmatprep.subr.mxu0 0.0
    %1627 = vmatpush1.msra.mxu0 0.0
    %1628 = vmatprep.subr.mxu0 0.0
    %1629 = vmatpush1.msra.mxu0 0.0
    %1630 = vmatprep.subr.mxu0 0.0
    %1631 = vmatpush1.msra.mxu0 0.0
    %1632 = vmatprep.mubr.f32.mxu0 0.0
    %1633 = vmatmul.mubr.f32.gmra.mrb[0].mxu0 %v1567
    %v1634 = vpop.f32.mrb[0].mxu0
    %v1635 = vadd.f32 0.0, %v1634
    %v1636 = vpop.f32.mrb[0].mxu0
    %v1637 = vadd.f32 0.0, %v1636
    %1638 = vdwg.mxu0
    %1639 = vmatprep.subr.mxu0 %v144
    %1640 = vmatpush1.msra.mxu0 %v143
    %1641 = vmatprep.subr.mxu0 %v148
    %1642 = vmatpush1.msra.mxu0 %v147
    %1643 = vmatprep.subr.mxu0 %v152
    %1644 = vmatpush1.msra.mxu0 %v151
    %1645 = vmatprep.subr.mxu0 %v156
    %1646 = vmatpush1.msra.mxu0 %v155
    %1647 = vmatprep.subr.mxu0 %v160
    %1648 = vmatpush1.msra.mxu0 %v159
    %1649 = vmatprep.subr.mxu0 %v164
    %1650 = vmatpush1.msra.mxu0 %v163
    %1651 = vmatprep.subr.mxu0 %v168
    %1652 = vmatpush1.msra.mxu0 %v167
    %1653 = vmatprep.subr.mxu0 %v172
    %1654 = vmatpush1.msra.mxu0 %v171
    %1655 = vmatprep.subr.mxu0 %v176
    %1656 = vmatpush1.msra.mxu0 %v175
    %1657 = vmatprep.subr.mxu0 %v180
    %1658 = vmatpush1.msra.mxu0 %v179
    %1659 = vmatprep.subr.mxu0 %v184
    %1660 = vmatpush1.msra.mxu0 %v183
    %1661 = vmatprep.subr.mxu0 %v188
    %1662 = vmatpush1.msra.mxu0 %v187
    %1663 = vmatprep.subr.mxu0 %v192
    %1664 = vmatpush1.msra.mxu0 %v191
    %1665 = vmatprep.subr.mxu0 %v196
    %1666 = vmatpush1.msra.mxu0 %v195
    %1667 = vmatprep.subr.mxu0 %v200
    %1668 = vmatpush1.msra.mxu0 %v199
    %1669 = vmatprep.subr.mxu0 %v204
    %1670 = vmatpush1.msra.mxu0 %v203
    %1671 = vmatprep.subr.mxu0 0.0
    %1672 = vmatpush1.msra.mxu0 0.0
    %1673 = vmatprep.subr.mxu0 0.0
    %1674 = vmatpush1.msra.mxu0 0.0
    %1675 = vmatprep.subr.mxu0 0.0
    %1676 = vmatpush1.msra.mxu0 0.0
    %1677 = vmatprep.subr.mxu0 0.0
    %1678 = vmatpush1.msra.mxu0 0.0
    %1679 = vmatprep.subr.mxu0 0.0
    %1680 = vmatpush1.msra.mxu0 0.0
    %1681 = vmatprep.subr.mxu0 0.0
    %1682 = vmatpush1.msra.mxu0 0.0
    %1683 = vmatprep.subr.mxu0 0.0
    %1684 = vmatpush1.msra.mxu0 0.0
    %1685 = vmatprep.subr.mxu0 0.0
    %1686 = vmatpush1.msra.mxu0 0.0
    %1687 = vmatprep.subr.mxu0 0.0
    %1688 = vmatpush1.msra.mxu0 0.0
    %1689 = vmatprep.subr.mxu0 0.0
    %1690 = vmatpush1.msra.mxu0 0.0
    %1691 = vmatprep.subr.mxu0 0.0
    %1692 = vmatpush1.msra.mxu0 0.0
    %1693 = vmatprep.subr.mxu0 0.0
    %1694 = vmatpush1.msra.mxu0 0.0
    %1695 = vmatprep.subr.mxu0 0.0
    %1696 = vmatpush1.msra.mxu0 0.0
    %1697 = vmatprep.subr.mxu0 0.0
    %1698 = vmatpush1.msra.mxu0 0.0
    %1699 = vmatprep.subr.mxu0 0.0
    %1700 = vmatpush1.msra.mxu0 0.0
    %1701 = vmatprep.subr.mxu0 0.0
    %1702 = vmatpush1.msra.mxu0 0.0
    %1703 = vmatprep.mubr.f32.mxu0 0.0
    %1704 = vmatmul.mubr.f32.gmra.mrb[0].mxu0 %v1567
    %v1705 = vpop.f32.mrb[0].mxu0
    %v1706 = vadd.f32 0.0, %v1705
    %v1707 = vpop.f32.mrb[0].mxu0
    %v1708 = vadd.f32 0.0, %v1707
    %1709 = vdwg.mxu0
    %v1714 = vcombine.low %v1635, %v1637
    %v1715 = vcombine.low %v1706, %v1708
    %v1717 = vunpack.c.l.s4 1983009808
    %v1718 = vunpack.c.0.s8 %v1717
    %v1719 = vlaneseq
    %v1720 = vshrl.u32 %v1719, 7
    %v1721 = vsub.s32 %v1718, %v1720
    %v1722 = vrot.slane %v1714, %v1721
    %v1724 = vunpack.c.l.s4 1983009808
    %v1725 = vunpack.c.0.s8 %v1724
    %v1726 = vlaneseq
    %v1727 = vshrl.u32 %v1726, 7
    %v1728 = vsub.s32 %v1725, %v1727
    %v1729 = vrot.slane %v1715, %v1728
    %v1730 = vcombine.low %v1722, %v1729
    %v1732 = vadd.f32 %v1566, %v1730
    %v1733 = vld [vmem:[#allocation3] sm:$0x3]
    %v1734 = vxor.u32 %v1564, 2147483648
    %v1735 = vmul.f32 %v1734, 1.442695
    %v1736 = vpow.pop %v1735
    %v1737 = vadd.f32 %v1736, 1.0
    %v1738 = vrcp.pop %v1737
    %v1739 = vmul.f32 1.0, %v1738
    %v1741 = vrot.slane %v1564, 4
    %v1743 = vtanh.pop %v1741
    %v1744 = vrot.slane %v1564, 6
    %v1746 = vxor.u32 %v1744, 2147483648
    %v1747 = vmul.f32 %v1746, 1.442695
    %v1748 = vpow.pop %v1747
    %v1749 = vadd.f32 %v1748, 1.0
    %v1750 = vrcp.pop %v1749
    %v1751 = vmul.f32 1.0, %v1750
    %v1753 = vrot.slane %v1739, 2
    %v1755 = vmul.f32 %v1753, %v1733
    %v1756 = vmul.f32 %v1739, %v1743
    %v1757 = vadd.f32 %v1755, %v1756
    %v1758 = vtanh.pop %v1757
    %v1759 = vmul.f32 %v1751, %v1758
    %v1760 = vld [vmem:[#allocation5] sm:$0x3]
    %v1761 = vxor.u32 %v1732, 2147483648
    %v1762 = vmul.f32 %v1761, 1.442695
    %v1763 = vpow.pop %v1762
    %v1764 = vadd.f32 %v1763, 1.0
    %v1765 = vrcp.pop %v1764
    %v1766 = vmul.f32 1.0, %v1765
    %v1768 = vrot.slane %v1732, 4
    %v1770 = vtanh.pop %v1768
    %v1771 = vrot.slane %v1732, 6
    %v1773 = vxor.u32 %v1771, 2147483648
    %v1774 = vmul.f32 %v1773, 1.442695
    %v1775 = vpow.pop %v1774
    %v1776 = vadd.f32 %v1775, 1.0
    %v1777 = vrcp.pop %v1776
    %v1778 = vmul.f32 1.0, %v1777
    %v1780 = vrot.slane %v1766, 2
    %v1782 = vmul.f32 %v1780, %v1760
    %v1783 = vmul.f32 %v1766, %v1770
    %v1784 = vadd.f32 %v1782, %v1783
    %v1785 = vtanh.pop %v1784
    %v1786 = vmul.f32 %v1778, %v1785
    %1787 = vst [vmem:[#allocation2] sm:$0x3] %v1759
    %1788 = vst [vmem:[#allocation3] sm:$0x3] %v1757
    %1789 = vst [vmem:[#allocation4] sm:$0x3] %v1786
    %1790 = vst [vmem:[#allocation5] sm:$0x3] %v1784
    %s1791 = scalar_lea.vmem [#allocation14], 12
    %1792 = vst [vmem:[%s1791] sm:$0x3] %v1759
    %s1793 = scalar_lea.vmem [#allocation14], 16
    %1794 = vst [vmem:[%s1793 + $0x2] sm:$0x3] %v1786
    %s1795 = scalar_lea.vmem [#allocation6], 32
    %v1796 = vld [vmem:[%s1795] sm:$0xff]
    %v1797 = vld [vmem:[#allocation2] sm:$0x3]
    %1798 = vmatprep.subr.mxu0 %v78
    %1799 = vmatpush1.msra.mxu0 %v77
    %1800 = vmatprep.subr.mxu0 %v82
    %1801 = vmatpush1.msra.mxu0 %v81
    %1802 = vmatprep.subr.mxu0 %v86
    %1803 = vmatpush1.msra.mxu0 %v85
    %1804 = vmatprep.subr.mxu0 %v90
    %1805 = vmatpush1.msra.mxu0 %v89
    %1806 = vmatprep.subr.mxu0 %v94
    %1807 = vmatpush1.msra.mxu0 %v93
    %1808 = vmatprep.subr.mxu0 %v98
    %1809 = vmatpush1.msra.mxu0 %v97
    %1810 = vmatprep.subr.mxu0 %v102
    %1811 = vmatpush1.msra.mxu0 %v101
    %1812 = vmatprep.subr.mxu0 %v106
    %1813 = vmatpush1.msra.mxu0 %v105
    %1814 = vmatprep.subr.mxu0 %v110
    %1815 = vmatpush1.msra.mxu0 %v109
    %1816 = vmatprep.subr.mxu0 %v114
    %1817 = vmatpush1.msra.mxu0 %v113
    %1818 = vmatprep.subr.mxu0 %v118
    %1819 = vmatpush1.msra.mxu0 %v117
    %1820 = vmatprep.subr.mxu0 %v122
    %1821 = vmatpush1.msra.mxu0 %v121
    %1822 = vmatprep.subr.mxu0 %v126
    %1823 = vmatpush1.msra.mxu0 %v125
    %1824 = vmatprep.subr.mxu0 %v130
    %1825 = vmatpush1.msra.mxu0 %v129
    %1826 = vmatprep.subr.mxu0 %v134
    %1827 = vmatpush1.msra.mxu0 %v133
    %1828 = vmatprep.subr.mxu0 %v138
    %1829 = vmatpush1.msra.mxu0 %v137
    %1830 = vmatprep.subr.mxu0 0.0
    %1831 = vmatpush1.msra.mxu0 0.0
    %1832 = vmatprep.subr.mxu0 0.0
    %1833 = vmatpush1.msra.mxu0 0.0
    %1834 = vmatprep.subr.mxu0 0.0
    %1835 = vmatpush1.msra.mxu0 0.0
    %1836 = vmatprep.subr.mxu0 0.0
    %1837 = vmatpush1.msra.mxu0 0.0
    %1838 = vmatprep.subr.mxu0 0.0
    %1839 = vmatpush1.msra.mxu0 0.0
    %1840 = vmatprep.subr.mxu0 0.0
    %1841 = vmatpush1.msra.mxu0 0.0
    %1842 = vmatprep.subr.mxu0 0.0
    %1843 = vmatpush1.msra.mxu0 0.0
    %1844 = vmatprep.subr.mxu0 0.0
    %1845 = vmatpush1.msra.mxu0 0.0
    %1846 = vmatprep.subr.mxu0 0.0
    %1847 = vmatpush1.msra.mxu0 0.0
    %1848 = vmatprep.subr.mxu0 0.0
    %1849 = vmatpush1.msra.mxu0 0.0
    %1850 = vmatprep.subr.mxu0 0.0
    %1851 = vmatpush1.msra.mxu0 0.0
    %1852 = vmatprep.subr.mxu0 0.0
    %1853 = vmatpush1.msra.mxu0 0.0
    %1854 = vmatprep.subr.mxu0 0.0
    %1855 = vmatpush1.msra.mxu0 0.0
    %1856 = vmatprep.subr.mxu0 0.0
    %1857 = vmatpush1.msra.mxu0 0.0
    %1858 = vmatprep.subr.mxu0 0.0
    %1859 = vmatpush1.msra.mxu0 0.0
    %1860 = vmatprep.subr.mxu0 0.0
    %1861 = vmatpush1.msra.mxu0 0.0
    %1862 = vmatprep.mubr.f32.mxu0 0.0
    %1863 = vmatmul.mubr.f32.gmra.mrb[0].mxu0 %v1797
    %v1864 = vpop.f32.mrb[0].mxu0
    %v1865 = vadd.f32 0.0, %v1864
    %v1866 = vpop.f32.mrb[0].mxu0
    %v1867 = vadd.f32 0.0, %v1866
    %1868 = vdwg.mxu0
    %1869 = vmatprep.subr.mxu0 %v80
    %1870 = vmatpush1.msra.mxu0 %v79
    %1871 = vmatprep.subr.mxu0 %v84
    %1872 = vmatpush1.msra.mxu0 %v83
    %1873 = vmatprep.subr.mxu0 %v88
    %1874 = vmatpush1.msra.mxu0 %v87
    %1875 = vmatprep.subr.mxu0 %v92
    %1876 = vmatpush1.msra.mxu0 %v91
    %1877 = vmatprep.subr.mxu0 %v96
    %1878 = vmatpush1.msra.mxu0 %v95
    %1879 = vmatprep.subr.mxu0 %v100
    %1880 = vmatpush1.msra.mxu0 %v99
    %1881 = vmatprep.subr.mxu0 %v104
    %1882 = vmatpush1.msra.mxu0 %v103
    %1883 = vmatprep.subr.mxu0 %v108
    %1884 = vmatpush1.msra.mxu0 %v107
    %1885 = vmatprep.subr.mxu0 %v112
    %1886 = vmatpush1.msra.mxu0 %v111
    %1887 = vmatprep.subr.mxu0 %v116
    %1888 = vmatpush1.msra.mxu0 %v115
    %1889 = vmatprep.subr.mxu0 %v120
    %1890 = vmatpush1.msra.mxu0 %v119
    %1891 = vmatprep.subr.mxu0 %v124
    %1892 = vmatpush1.msra.mxu0 %v123
    %1893 = vmatprep.subr.mxu0 %v128
    %1894 = vmatpush1.msra.mxu0 %v127
    %1895 = vmatprep.subr.mxu0 %v132
    %1896 = vmatpush1.msra.mxu0 %v131
    %1897 = vmatprep.subr.mxu0 %v136
    %1898 = vmatpush1.msra.mxu0 %v135
    %1899 = vmatprep.subr.mxu0 %v140
    %1900 = vmatpush1.msra.mxu0 %v139
    %1901 = vmatprep.subr.mxu0 0.0
    %1902 = vmatpush1.msra.mxu0 0.0
    %1903 = vmatprep.subr.mxu0 0.0
    %1904 = vmatpush1.msra.mxu0 0.0
    %1905 = vmatprep.subr.mxu0 0.0
    %1906 = vmatpush1.msra.mxu0 0.0
    %1907 = vmatprep.subr.mxu0 0.0
    %1908 = vmatpush1.msra.mxu0 0.0
    %1909 = vmatprep.subr.mxu0 0.0
    %1910 = vmatpush1.msra.mxu0 0.0
    %1911 = vmatprep.subr.mxu0 0.0
    %1912 = vmatpush1.msra.mxu0 0.0
    %1913 = vmatprep.subr.mxu0 0.0
    %1914 = vmatpush1.msra.mxu0 0.0
    %1915 = vmatprep.subr.mxu0 0.0
    %1916 = vmatpush1.msra.mxu0 0.0
    %1917 = vmatprep.subr.mxu0 0.0
    %1918 = vmatpush1.msra.mxu0 0.0
    %1919 = vmatprep.subr.mxu0 0.0
    %1920 = vmatpush1.msra.mxu0 0.0
    %1921 = vmatprep.subr.mxu0 0.0
    %1922 = vmatpush1.msra.mxu0 0.0
    %1923 = vmatprep.subr.mxu0 0.0
    %1924 = vmatpush1.msra.mxu0 0.0
    %1925 = vmatprep.subr.mxu0 0.0
    %1926 = vmatpush1.msra.mxu0 0.0
    %1927 = vmatprep.subr.mxu0 0.0
    %1928 = vmatpush1.msra.mxu0 0.0
    %1929 = vmatprep.subr.mxu0 0.0
    %1930 = vmatpush1.msra.mxu0 0.0
    %1931 = vmatprep.subr.mxu0 0.0
    %1932 = vmatpush1.msra.mxu0 0.0
    %1933 = vmatprep.mubr.f32.mxu0 0.0
    %1934 = vmatmul.mubr.f32.gmra.mrb[0].mxu0 %v1797
    %v1935 = vpop.f32.mrb[0].mxu0
    %v1936 = vadd.f32 0.0, %v1935
    %v1937 = vpop.f32.mrb[0].mxu0
    %v1938 = vadd.f32 0.0, %v1937
    %1939 = vdwg.mxu0
    %v1944 = vcombine.low %v1865, %v1867
    %v1945 = vcombine.low %v1936, %v1938
    %v1947 = vunpack.c.l.s4 1983009808
    %v1948 = vunpack.c.0.s8 %v1947
    %v1949 = vlaneseq
    %v1950 = vshrl.u32 %v1949, 7
    %v1951 = vsub.s32 %v1948, %v1950
    %v1952 = vrot.slane %v1944, %v1951
    %v1954 = vunpack.c.l.s4 1983009808
    %v1955 = vunpack.c.0.s8 %v1954
    %v1956 = vlaneseq
    %v1957 = vshrl.u32 %v1956, 7
    %v1958 = vsub.s32 %v1955, %v1957
    %v1959 = vrot.slane %v1945, %v1958
    %v1960 = vcombine.low %v1952, %v1959
    %v1962 = vadd.f32 %v1796, %v1960
    %s1963 = scalar_lea.vmem [#allocation9], 24
    %v1964 = vld [vmem:[%s1963] sm:$0xff]
    %v1965 = vld [vmem:[#allocation4] sm:$0x3]
    %1966 = vmatprep.subr.mxu0 %v142
    %1967 = vmatpush1.msra.mxu0 %v141
    %1968 = vmatprep.subr.mxu0 %v146
    %1969 = vmatpush1.msra.mxu0 %v145
    %1970 = vmatprep.subr.mxu0 %v150
    %1971 = vmatpush1.msra.mxu0 %v149
    %1972 = vmatprep.subr.mxu0 %v154
    %1973 = vmatpush1.msra.mxu0 %v153
    %1974 = vmatprep.subr.mxu0 %v158
    %1975 = vmatpush1.msra.mxu0 %v157
    %1976 = vmatprep.subr.mxu0 %v162
    %1977 = vmatpush1.msra.mxu0 %v161
    %1978 = vmatprep.subr.mxu0 %v166
    %1979 = vmatpush1.msra.mxu0 %v165
    %1980 = vmatprep.subr.mxu0 %v170
    %1981 = vmatpush1.msra.mxu0 %v169
    %1982 = vmatprep.subr.mxu0 %v174
    %1983 = vmatpush1.msra.mxu0 %v173
    %1984 = vmatprep.subr.mxu0 %v178
    %1985 = vmatpush1.msra.mxu0 %v177
    %1986 = vmatprep.subr.mxu0 %v182
    %1987 = vmatpush1.msra.mxu0 %v181
    %1988 = vmatprep.subr.mxu0 %v186
    %1989 = vmatpush1.msra.mxu0 %v185
    %1990 = vmatprep.subr.mxu0 %v190
    %1991 = vmatpush1.msra.mxu0 %v189
    %1992 = vmatprep.subr.mxu0 %v194
    %1993 = vmatpush1.msra.mxu0 %v193
    %1994 = vmatprep.subr.mxu0 %v198
    %1995 = vmatpush1.msra.mxu0 %v197
    %1996 = vmatprep.subr.mxu0 %v202
    %1997 = vmatpush1.msra.mxu0 %v201
    %1998 = vmatprep.subr.mxu0 0.0
    %1999 = vmatpush1.msra.mxu0 0.0
    %2000 = vmatprep.subr.mxu0 0.0
    %2001 = vmatpush1.msra.mxu0 0.0
    %2002 = vmatprep.subr.mxu0 0.0
    %2003 = vmatpush1.msra.mxu0 0.0
    %2004 = vmatprep.subr.mxu0 0.0
    %2005 = vmatpush1.msra.mxu0 0.0
    %2006 = vmatprep.subr.mxu0 0.0
    %2007 = vmatpush1.msra.mxu0 0.0
    %2008 = vmatprep.subr.mxu0 0.0
    %2009 = vmatpush1.msra.mxu0 0.0
    %2010 = vmatprep.subr.mxu0 0.0
    %2011 = vmatpush1.msra.mxu0 0.0
    %2012 = vmatprep.subr.mxu0 0.0
    %2013 = vmatpush1.msra.mxu0 0.0
    %2014 = vmatprep.subr.mxu0 0.0
    %2015 = vmatpush1.msra.mxu0 0.0
    %2016 = vmatprep.subr.mxu0 0.0
    %2017 = vmatpush1.msra.mxu0 0.0
    %2018 = vmatprep.subr.mxu0 0.0
    %2019 = vmatpush1.msra.mxu0 0.0
    %2020 = vmatprep.subr.mxu0 0.0
    %2021 = vmatpush1.msra.mxu0 0.0
    %2022 = vmatprep.subr.mxu0 0.0
    %2023 = vmatpush1.msra.mxu0 0.0
    %2024 = vmatprep.subr.mxu0 0.0
    %2025 = vmatpush1.msra.mxu0 0.0
    %2026 = vmatprep.subr.mxu0 0.0
    %2027 = vmatpush1.msra.mxu0 0.0
    %2028 = vmatprep.subr.mxu0 0.0
    %2029 = vmatpush1.msra.mxu0 0.0
    %2030 = vmatprep.mubr.f32.mxu0 0.0
    %2031 = vmatmul.mubr.f32.gmra.mrb[0].mxu0 %v1965
    %v2032 = vpop.f32.mrb[0].mxu0
    %v2033 = vadd.f32 0.0, %v2032
    %v2034 = vpop.f32.mrb[0].mxu0
    %v2035 = vadd.f32 0.0, %v2034
    %2036 = vdwg.mxu0
    %2037 = vmatprep.subr.mxu0 %v144
    %2038 = vmatpush1.msra.mxu0 %v143
    %2039 = vmatprep.subr.mxu0 %v148
    %2040 = vmatpush1.msra.mxu0 %v147
    %2041 = vmatprep.subr.mxu0 %v152
    %2042 = vmatpush1.msra.mxu0 %v151
    %2043 = vmatprep.subr.mxu0 %v156
    %2044 = vmatpush1.msra.mxu0 %v155
    %2045 = vmatprep.subr.mxu0 %v160
    %2046 = vmatpush1.msra.mxu0 %v159
    %2047 = vmatprep.subr.mxu0 %v164
    %2048 = vmatpush1.msra.mxu0 %v163
    %2049 = vmatprep.subr.mxu0 %v168
    %2050 = vmatpush1.msra.mxu0 %v167
    %2051 = vmatprep.subr.mxu0 %v172
    %2052 = vmatpush1.msra.mxu0 %v171
    %2053 = vmatprep.subr.mxu0 %v176
    %2054 = vmatpush1.msra.mxu0 %v175
    %2055 = vmatprep.subr.mxu0 %v180
    %2056 = vmatpush1.msra.mxu0 %v179
    %2057 = vmatprep.subr.mxu0 %v184
    %2058 = vmatpush1.msra.mxu0 %v183
    %2059 = vmatprep.subr.mxu0 %v188
    %2060 = vmatpush1.msra.mxu0 %v187
    %2061 = vmatprep.subr.mxu0 %v192
    %2062 = vmatpush1.msra.mxu0 %v191
    %2063 = vmatprep.subr.mxu0 %v196
    %2064 = vmatpush1.msra.mxu0 %v195
    %2065 = vmatprep.subr.mxu0 %v200
    %2066 = vmatpush1.msra.mxu0 %v199
    %2067 = vmatprep.subr.mxu0 %v204
    %2068 = vmatpush1.msra.mxu0 %v203
    %2069 = vmatprep.subr.mxu0 0.0
    %2070 = vmatpush1.msra.mxu0 0.0
    %2071 = vmatprep.subr.mxu0 0.0
    %2072 = vmatpush1.msra.mxu0 0.0
    %2073 = vmatprep.subr.mxu0 0.0
    %2074 = vmatpush1.msra.mxu0 0.0
    %2075 = vmatprep.subr.mxu0 0.0
    %2076 = vmatpush1.msra.mxu0 0.0
    %2077 = vmatprep.subr.mxu0 0.0
    %2078 = vmatpush1.msra.mxu0 0.0
    %2079 = vmatprep.subr.mxu0 0.0
    %2080 = vmatpush1.msra.mxu0 0.0
    %2081 = vmatprep.subr.mxu0 0.0
    %2082 = vmatpush1.msra.mxu0 0.0
    %2083 = vmatprep.subr.mxu0 0.0
    %2084 = vmatpush1.msra.mxu0 0.0
    %2085 = vmatprep.subr.mxu0 0.0
    %2086 = vmatpush1.msra.mxu0 0.0
    %2087 = vmatprep.subr.mxu0 0.0
    %2088 = vmatpush1.msra.mxu0 0.0
    %2089 = vmatprep.subr.mxu0 0.0
    %2090 = vmatpush1.msra.mxu0 0.0
    %2091 = vmatprep.subr.mxu0 0.0
    %2092 = vmatpush1.msra.mxu0 0.0
    %2093 = vmatprep.subr.mxu0 0.0
    %2094 = vmatpush1.msra.mxu0 0.0
    %2095 = vmatprep.subr.mxu0 0.0
    %2096 = vmatpush1.msra.mxu0 0.0
    %2097 = vmatprep.subr.mxu0 0.0
    %2098 = vmatpush1.msra.mxu0 0.0
    %2099 = vmatprep.subr.mxu0 0.0
    %2100 = vmatpush1.msra.mxu0 0.0
    %2101 = vmatprep.mubr.f32.mxu0 0.0
    %2102 = vmatmul.mubr.f32.gmra.mrb[0].mxu0 %v1965
    %v2103 = vpop.f32.mrb[0].mxu0
    %v2104 = vadd.f32 0.0, %v2103
    %v2105 = vpop.f32.mrb[0].mxu0
    %v2106 = vadd.f32 0.0, %v2105
    %2107 = vdwg.mxu0
    %v2112 = vcombine.low %v2033, %v2035
    %v2113 = vcombine.low %v2104, %v2106
    %v2115 = vunpack.c.l.s4 1983009808
    %v2116 = vunpack.c.0.s8 %v2115
    %v2117 = vlaneseq
    %v2118 = vshrl.u32 %v2117, 7
    %v2119 = vsub.s32 %v2116, %v2118
    %v2120 = vrot.slane %v2112, %v2119
    %v2122 = vunpack.c.l.s4 1983009808
    %v2123 = vunpack.c.0.s8 %v2122
    %v2124 = vlaneseq
    %v2125 = vshrl.u32 %v2124, 7
    %v2126 = vsub.s32 %v2123, %v2125
    %v2127 = vrot.slane %v2113, %v2126
    %v2128 = vcombine.low %v2120, %v2127
    %v2130 = vadd.f32 %v1964, %v2128
    %v2131 = vld [vmem:[#allocation3] sm:$0x3]
    %v2132 = vxor.u32 %v1962, 2147483648
    %v2133 = vmul.f32 %v2132, 1.442695
    %v2134 = vpow.pop %v2133
    %v2135 = vadd.f32 %v2134, 1.0
    %v2136 = vrcp.pop %v2135
    %v2137 = vmul.f32 1.0, %v2136
    %v2139 = vrot.slane %v1962, 4
    %v2141 = vtanh.pop %v2139
    %v2142 = vrot.slane %v1962, 6
    %v2144 = vxor.u32 %v2142, 2147483648
    %v2145 = vmul.f32 %v2144, 1.442695
    %v2146 = vpow.pop %v2145
    %v2147 = vadd.f32 %v2146, 1.0
    %v2148 = vrcp.pop %v2147
    %v2149 = vmul.f32 1.0, %v2148
    %v2151 = vrot.slane %v2137, 2
    %v2153 = vmul.f32 %v2151, %v2131
    %v2154 = vmul.f32 %v2137, %v2141
    %v2155 = vadd.f32 %v2153, %v2154
    %v2156 = vtanh.pop %v2155
    %v2157 = vmul.f32 %v2149, %v2156
    %v2158 = vld [vmem:[#allocation5] sm:$0x3]
    %v2159 = vxor.u32 %v2130, 2147483648
    %v2160 = vmul.f32 %v2159, 1.442695
    %v2161 = vpow.pop %v2160
    %v2162 = vadd.f32 %v2161, 1.0
    %v2163 = vrcp.pop %v2162
    %v2164 = vmul.f32 1.0, %v2163
    %v2166 = vrot.slane %v2130, 4
    %v2168 = vtanh.pop %v2166
    %v2169 = vrot.slane %v2130, 6
    %v2171 = vxor.u32 %v2169, 2147483648
    %v2172 = vmul.f32 %v2171, 1.442695
    %v2173 = vpow.pop %v2172
    %v2174 = vadd.f32 %v2173, 1.0
    %v2175 = vrcp.pop %v2174
    %v2176 = vmul.f32 1.0, %v2175
    %v2178 = vrot.slane %v2164, 2
    %v2180 = vmul.f32 %v2178, %v2158
    %v2181 = vmul.f32 %v2164, %v2168
    %v2182 = vadd.f32 %v2180, %v2181
    %v2183 = vtanh.pop %v2182
    %v2184 = vmul.f32 %v2176, %v2183
    %2185 = vst [vmem:[#allocation2] sm:$0x3] %v2157
    %2186 = vst [vmem:[#allocation3] sm:$0x3] %v2155
    %2187 = vst [vmem:[#allocation4] sm:$0x3] %v2184
    %2188 = vst [vmem:[#allocation5] sm:$0x3] %v2182
    %2189 = vst [vmem:[%s1793] sm:$0x3] %v2157
    %2190 = vst [vmem:[%s1791 + $0x2] sm:$0x3] %v2184
    %s2191 = scalar_lea.vmem [#allocation6], 40
    %v2192 = vld [vmem:[%s2191] sm:$0xff]
    %v2193 = vld [vmem:[#allocation2] sm:$0x3]
    %2194 = vmatprep.subr.mxu0 %v78
    %2195 = vmatpush1.msra.mxu0 %v77
    %2196 = vmatprep.subr.mxu0 %v82
    %2197 = vmatpush1.msra.mxu0 %v81
    %2198 = vmatprep.subr.mxu0 %v86
    %2199 = vmatpush1.msra.mxu0 %v85
    %2200 = vmatprep.subr.mxu0 %v90
    %2201 = vmatpush1.msra.mxu0 %v89
    %2202 = vmatprep.subr.mxu0 %v94
    %2203 = vmatpush1.msra.mxu0 %v93
    %2204 = vmatprep.subr.mxu0 %v98
    %2205 = vmatpush1.msra.mxu0 %v97
    %2206 = vmatprep.subr.mxu0 %v102
    %2207 = vmatpush1.msra.mxu0 %v101
    %2208 = vmatprep.subr.mxu0 %v106
    %2209 = vmatpush1.msra.mxu0 %v105
    %2210 = vmatprep.subr.mxu0 %v110
    %2211 = vmatpush1.msra.mxu0 %v109
    %2212 = vmatprep.subr.mxu0 %v114
    %2213 = vmatpush1.msra.mxu0 %v113
    %2214 = vmatprep.subr.mxu0 %v118
    %2215 = vmatpush1.msra.mxu0 %v117
    %2216 = vmatprep.subr.mxu0 %v122
    %2217 = vmatpush1.msra.mxu0 %v121
    %2218 = vmatprep.subr.mxu0 %v126
    %2219 = vmatpush1.msra.mxu0 %v125
    %2220 = vmatprep.subr.mxu0 %v130
    %2221 = vmatpush1.msra.mxu0 %v129
    %2222 = vmatprep.subr.mxu0 %v134
    %2223 = vmatpush1.msra.mxu0 %v133
    %2224 = vmatprep.subr.mxu0 %v138
    %2225 = vmatpush1.msra.mxu0 %v137
    %2226 = vmatprep.subr.mxu0 0.0
    %2227 = vmatpush1.msra.mxu0 0.0
    %2228 = vmatprep.subr.mxu0 0.0
    %2229 = vmatpush1.msra.mxu0 0.0
    %2230 = vmatprep.subr.mxu0 0.0
    %2231 = vmatpush1.msra.mxu0 0.0
    %2232 = vmatprep.subr.mxu0 0.0
    %2233 = vmatpush1.msra.mxu0 0.0
    %2234 = vmatprep.subr.mxu0 0.0
    %2235 = vmatpush1.msra.mxu0 0.0
    %2236 = vmatprep.subr.mxu0 0.0
    %2237 = vmatpush1.msra.mxu0 0.0
    %2238 = vmatprep.subr.mxu0 0.0
    %2239 = vmatpush1.msra.mxu0 0.0
    %2240 = vmatprep.subr.mxu0 0.0
    %2241 = vmatpush1.msra.mxu0 0.0
    %2242 = vmatprep.subr.mxu0 0.0
    %2243 = vmatpush1.msra.mxu0 0.0
    %2244 = vmatprep.subr.mxu0 0.0
    %2245 = vmatpush1.msra.mxu0 0.0
    %2246 = vmatprep.subr.mxu0 0.0
    %2247 = vmatpush1.msra.mxu0 0.0
    %2248 = vmatprep.subr.mxu0 0.0
    %2249 = vmatpush1.msra.mxu0 0.0
    %2250 = vmatprep.subr.mxu0 0.0
    %2251 = vmatpush1.msra.mxu0 0.0
    %2252 = vmatprep.subr.mxu0 0.0
    %2253 = vmatpush1.msra.mxu0 0.0
    %2254 = vmatprep.subr.mxu0 0.0
    %2255 = vmatpush1.msra.mxu0 0.0
    %2256 = vmatprep.subr.mxu0 0.0
    %2257 = vmatpush1.msra.mxu0 0.0
    %2258 = vmatprep.mubr.f32.mxu0 0.0
    %2259 = vmatmul.mubr.f32.gmra.mrb[0].mxu0 %v2193
    %v2260 = vpop.f32.mrb[0].mxu0
    %v2261 = vadd.f32 0.0, %v2260
    %v2262 = vpop.f32.mrb[0].mxu0
    %v2263 = vadd.f32 0.0, %v2262
    %2264 = vdwg.mxu0
    %2265 = vmatprep.subr.mxu0 %v80
    %2266 = vmatpush1.msra.mxu0 %v79
    %2267 = vmatprep.subr.mxu0 %v84
    %2268 = vmatpush1.msra.mxu0 %v83
    %2269 = vmatprep.subr.mxu0 %v88
    %2270 = vmatpush1.msra.mxu0 %v87
    %2271 = vmatprep.subr.mxu0 %v92
    %2272 = vmatpush1.msra.mxu0 %v91
    %2273 = vmatprep.subr.mxu0 %v96
    %2274 = vmatpush1.msra.mxu0 %v95
    %2275 = vmatprep.subr.mxu0 %v100
    %2276 = vmatpush1.msra.mxu0 %v99
    %2277 = vmatprep.subr.mxu0 %v104
    %2278 = vmatpush1.msra.mxu0 %v103
    %2279 = vmatprep.subr.mxu0 %v108
    %2280 = vmatpush1.msra.mxu0 %v107
    %2281 = vmatprep.subr.mxu0 %v112
    %2282 = vmatpush1.msra.mxu0 %v111
    %2283 = vmatprep.subr.mxu0 %v116
    %2284 = vmatpush1.msra.mxu0 %v115
    %2285 = vmatprep.subr.mxu0 %v120
    %2286 = vmatpush1.msra.mxu0 %v119
    %2287 = vmatprep.subr.mxu0 %v124
    %2288 = vmatpush1.msra.mxu0 %v123
    %2289 = vmatprep.subr.mxu0 %v128
    %2290 = vmatpush1.msra.mxu0 %v127
    %2291 = vmatprep.subr.mxu0 %v132
    %2292 = vmatpush1.msra.mxu0 %v131
    %2293 = vmatprep.subr.mxu0 %v136
    %2294 = vmatpush1.msra.mxu0 %v135
    %2295 = vmatprep.subr.mxu0 %v140
    %2296 = vmatpush1.msra.mxu0 %v139
    %2297 = vmatprep.subr.mxu0 0.0
    %2298 = vmatpush1.msra.mxu0 0.0
    %2299 = vmatprep.subr.mxu0 0.0
    %2300 = vmatpush1.msra.mxu0 0.0
    %2301 = vmatprep.subr.mxu0 0.0
    %2302 = vmatpush1.msra.mxu0 0.0
    %2303 = vmatprep.subr.mxu0 0.0
    %2304 = vmatpush1.msra.mxu0 0.0
    %2305 = vmatprep.subr.mxu0 0.0
    %2306 = vmatpush1.msra.mxu0 0.0
    %2307 = vmatprep.subr.mxu0 0.0
    %2308 = vmatpush1.msra.mxu0 0.0
    %2309 = vmatprep.subr.mxu0 0.0
    %2310 = vmatpush1.msra.mxu0 0.0
    %2311 = vmatprep.subr.mxu0 0.0
    %2312 = vmatpush1.msra.mxu0 0.0
    %2313 = vmatprep.subr.mxu0 0.0
    %2314 = vmatpush1.msra.mxu0 0.0
    %2315 = vmatprep.subr.mxu0 0.0
    %2316 = vmatpush1.msra.mxu0 0.0
    %2317 = vmatprep.subr.mxu0 0.0
    %2318 = vmatpush1.msra.mxu0 0.0
    %2319 = vmatprep.subr.mxu0 0.0
    %2320 = vmatpush1.msra.mxu0 0.0
    %2321 = vmatprep.subr.mxu0 0.0
    %2322 = vmatpush1.msra.mxu0 0.0
    %2323 = vmatprep.subr.mxu0 0.0
    %2324 = vmatpush1.msra.mxu0 0.0
    %2325 = vmatprep.subr.mxu0 0.0
    %2326 = vmatpush1.msra.mxu0 0.0
    %2327 = vmatprep.subr.mxu0 0.0
    %2328 = vmatpush1.msra.mxu0 0.0
    %2329 = vmatprep.mubr.f32.mxu0 0.0
    %2330 = vmatmul.mubr.f32.gmra.mrb[0].mxu0 %v2193
    %v2331 = vpop.f32.mrb[0].mxu0
    %v2332 = vadd.f32 0.0, %v2331
    %v2333 = vpop.f32.mrb[0].mxu0
    %v2334 = vadd.f32 0.0, %v2333
    %2335 = vdwg.mxu0
    %v2340 = vcombine.low %v2261, %v2263
    %v2341 = vcombine.low %v2332, %v2334
    %v2343 = vunpack.c.l.s4 1983009808
    %v2344 = vunpack.c.0.s8 %v2343
    %v2345 = vlaneseq
    %v2346 = vshrl.u32 %v2345, 7
    %v2347 = vsub.s32 %v2344, %v2346
    %v2348 = vrot.slane %v2340, %v2347
    %v2350 = vunpack.c.l.s4 1983009808
    %v2351 = vunpack.c.0.s8 %v2350
    %v2352 = vlaneseq
    %v2353 = vshrl.u32 %v2352, 7
    %v2354 = vsub.s32 %v2351, %v2353
    %v2355 = vrot.slane %v2341, %v2354
    %v2356 = vcombine.low %v2348, %v2355
    %v2358 = vadd.f32 %v2192, %v2356
    %s2359 = scalar_lea.vmem [#allocation9], 16
    %v2360 = vld [vmem:[%s2359] sm:$0xff]
    %v2361 = vld [vmem:[#allocation4] sm:$0x3]
    %2362 = vmatprep.subr.mxu0 %v142
    %2363 = vmatpush1.msra.mxu0 %v141
    %2364 = vmatprep.subr.mxu0 %v146
    %2365 = vmatpush1.msra.mxu0 %v145
    %2366 = vmatprep.subr.mxu0 %v150
    %2367 = vmatpush1.msra.mxu0 %v149
    %2368 = vmatprep.subr.mxu0 %v154
    %2369 = vmatpush1.msra.mxu0 %v153
    %2370 = vmatprep.subr.mxu0 %v158
    %2371 = vmatpush1.msra.mxu0 %v157
    %2372 = vmatprep.subr.mxu0 %v162
    %2373 = vmatpush1.msra.mxu0 %v161
    %2374 = vmatprep.subr.mxu0 %v166
    %2375 = vmatpush1.msra.mxu0 %v165
    %2376 = vmatprep.subr.mxu0 %v170
    %2377 = vmatpush1.msra.mxu0 %v169
    %2378 = vmatprep.subr.mxu0 %v174
    %2379 = vmatpush1.msra.mxu0 %v173
    %2380 = vmatprep.subr.mxu0 %v178
    %2381 = vmatpush1.msra.mxu0 %v177
    %2382 = vmatprep.subr.mxu0 %v182
    %2383 = vmatpush1.msra.mxu0 %v181
    %2384 = vmatprep.subr.mxu0 %v186
    %2385 = vmatpush1.msra.mxu0 %v185
    %2386 = vmatprep.subr.mxu0 %v190
    %2387 = vmatpush1.msra.mxu0 %v189
    %2388 = vmatprep.subr.mxu0 %v194
    %2389 = vmatpush1.msra.mxu0 %v193
    %2390 = vmatprep.subr.mxu0 %v198
    %2391 = vmatpush1.msra.mxu0 %v197
    %2392 = vmatprep.subr.mxu0 %v202
    %2393 = vmatpush1.msra.mxu0 %v201
    %2394 = vmatprep.subr.mxu0 0.0
    %2395 = vmatpush1.msra.mxu0 0.0
    %2396 = vmatprep.subr.mxu0 0.0
    %2397 = vmatpush1.msra.mxu0 0.0
    %2398 = vmatprep.subr.mxu0 0.0
    %2399 = vmatpush1.msra.mxu0 0.0
    %2400 = vmatprep.subr.mxu0 0.0
    %2401 = vmatpush1.msra.mxu0 0.0
    %2402 = vmatprep.subr.mxu0 0.0
    %2403 = vmatpush1.msra.mxu0 0.0
    %2404 = vmatprep.subr.mxu0 0.0
    %2405 = vmatpush1.msra.mxu0 0.0
    %2406 = vmatprep.subr.mxu0 0.0
    %2407 = vmatpush1.msra.mxu0 0.0
    %2408 = vmatprep.subr.mxu0 0.0
    %2409 = vmatpush1.msra.mxu0 0.0
    %2410 = vmatprep.subr.mxu0 0.0
    %2411 = vmatpush1.msra.mxu0 0.0
    %2412 = vmatprep.subr.mxu0 0.0
    %2413 = vmatpush1.msra.mxu0 0.0
    %2414 = vmatprep.subr.mxu0 0.0
    %2415 = vmatpush1.msra.mxu0 0.0
    %2416 = vmatprep.subr.mxu0 0.0
    %2417 = vmatpush1.msra.mxu0 0.0
    %2418 = vmatprep.subr.mxu0 0.0
    %2419 = vmatpush1.msra.mxu0 0.0
    %2420 = vmatprep.subr.mxu0 0.0
    %2421 = vmatpush1.msra.mxu0 0.0
    %2422 = vmatprep.subr.mxu0 0.0
    %2423 = vmatpush1.msra.mxu0 0.0
    %2424 = vmatprep.subr.mxu0 0.0
    %2425 = vmatpush1.msra.mxu0 0.0
    %2426 = vmatprep.mubr.f32.mxu0 0.0
    %2427 = vmatmul.mubr.f32.gmra.mrb[0].mxu0 %v2361
    %v2428 = vpop.f32.mrb[0].mxu0
    %v2429 = vadd.f32 0.0, %v2428
    %v2430 = vpop.f32.mrb[0].mxu0
    %v2431 = vadd.f32 0.0, %v2430
    %2432 = vdwg.mxu0
    %2433 = vmatprep.subr.mxu0 %v144
    %2434 = vmatpush1.msra.mxu0 %v143
    %2435 = vmatprep.subr.mxu0 %v148
    %2436 = vmatpush1.msra.mxu0 %v147
    %2437 = vmatprep.subr.mxu0 %v152
    %2438 = vmatpush1.msra.mxu0 %v151
    %2439 = vmatprep.subr.mxu0 %v156
    %2440 = vmatpush1.msra.mxu0 %v155
    %2441 = vmatprep.subr.mxu0 %v160
    %2442 = vmatpush1.msra.mxu0 %v159
    %2443 = vmatprep.subr.mxu0 %v164
    %2444 = vmatpush1.msra.mxu0 %v163
    %2445 = vmatprep.subr.mxu0 %v168
    %2446 = vmatpush1.msra.mxu0 %v167
    %2447 = vmatprep.subr.mxu0 %v172
    %2448 = vmatpush1.msra.mxu0 %v171
    %2449 = vmatprep.subr.mxu0 %v176
    %2450 = vmatpush1.msra.mxu0 %v175
    %2451 = vmatprep.subr.mxu0 %v180
    %2452 = vmatpush1.msra.mxu0 %v179
    %2453 = vmatprep.subr.mxu0 %v184
    %2454 = vmatpush1.msra.mxu0 %v183
    %2455 = vmatprep.subr.mxu0 %v188
    %2456 = vmatpush1.msra.mxu0 %v187
    %2457 = vmatprep.subr.mxu0 %v192
    %2458 = vmatpush1.msra.mxu0 %v191
    %2459 = vmatprep.subr.mxu0 %v196
    %2460 = vmatpush1.msra.mxu0 %v195
    %2461 = vmatprep.subr.mxu0 %v200
    %2462 = vmatpush1.msra.mxu0 %v199
    %2463 = vmatprep.subr.mxu0 %v204
    %2464 = vmatpush1.msra.mxu0 %v203
    %2465 = vmatprep.subr.mxu0 0.0
    %2466 = vmatpush1.msra.mxu0 0.0
    %2467 = vmatprep.subr.mxu0 0.0
    %2468 = vmatpush1.msra.mxu0 0.0
    %2469 = vmatprep.subr.mxu0 0.0
    %2470 = vmatpush1.msra.mxu0 0.0
    %2471 = vmatprep.subr.mxu0 0.0
    %2472 = vmatpush1.msra.mxu0 0.0
    %2473 = vmatprep.subr.mxu0 0.0
    %2474 = vmatpush1.msra.mxu0 0.0
    %2475 = vmatprep.subr.mxu0 0.0
    %2476 = vmatpush1.msra.mxu0 0.0
    %2477 = vmatprep.subr.mxu0 0.0
    %2478 = vmatpush1.msra.mxu0 0.0
    %2479 = vmatprep.subr.mxu0 0.0
    %2480 = vmatpush1.msra.mxu0 0.0
    %2481 = vmatprep.subr.mxu0 0.0
    %2482 = vmatpush1.msra.mxu0 0.0
    %2483 = vmatprep.subr.mxu0 0.0
    %2484 = vmatpush1.msra.mxu0 0.0
    %2485 = vmatprep.subr.mxu0 0.0
    %2486 = vmatpush1.msra.mxu0 0.0
    %2487 = vmatprep.subr.mxu0 0.0
    %2488 = vmatpush1.msra.mxu0 0.0
    %2489 = vmatprep.subr.mxu0 0.0
    %2490 = vmatpush1.msra.mxu0 0.0
    %2491 = vmatprep.subr.mxu0 0.0
    %2492 = vmatpush1.msra.mxu0 0.0
    %2493 = vmatprep.subr.mxu0 0.0
    %2494 = vmatpush1.msra.mxu0 0.0
    %2495 = vmatprep.subr.mxu0 0.0
    %2496 = vmatpush1.msra.mxu0 0.0
    %2497 = vmatprep.mubr.f32.mxu0 0.0
    %2498 = vmatmul.mubr.f32.gmra.mrb[0].mxu0 %v2361
    %v2499 = vpop.f32.mrb[0].mxu0
    %v2500 = vadd.f32 0.0, %v2499
    %v2501 = vpop.f32.mrb[0].mxu0
    %v2502 = vadd.f32 0.0, %v2501
    %2503 = vdwg.mxu0
    %v2508 = vcombine.low %v2429, %v2431
    %v2509 = vcombine.low %v2500, %v2502
    %v2511 = vunpack.c.l.s4 1983009808
    %v2512 = vunpack.c.0.s8 %v2511
    %v2513 = vlaneseq
    %v2514 = vshrl.u32 %v2513, 7
    %v2515 = vsub.s32 %v2512, %v2514
    %v2516 = vrot.slane %v2508, %v2515
    %v2518 = vunpack.c.l.s4 1983009808
    %v2519 = vunpack.c.0.s8 %v2518
    %v2520 = vlaneseq
    %v2521 = vshrl.u32 %v2520, 7
    %v2522 = vsub.s32 %v2519, %v2521
    %v2523 = vrot.slane %v2509, %v2522
    %v2524 = vcombine.low %v2516, %v2523
    %v2526 = vadd.f32 %v2360, %v2524
    %v2527 = vld [vmem:[#allocation3] sm:$0x3]
    %v2528 = vxor.u32 %v2358, 2147483648
    %v2529 = vmul.f32 %v2528, 1.442695
    %v2530 = vpow.pop %v2529
    %v2531 = vadd.f32 %v2530, 1.0
    %v2532 = vrcp.pop %v2531
    %v2533 = vmul.f32 1.0, %v2532
    %v2535 = vrot.slane %v2358, 4
    %v2537 = vtanh.pop %v2535
    %v2538 = vrot.slane %v2358, 6
    %v2540 = vxor.u32 %v2538, 2147483648
    %v2541 = vmul.f32 %v2540, 1.442695
    %v2542 = vpow.pop %v2541
    %v2543 = vadd.f32 %v2542, 1.0
    %v2544 = vrcp.pop %v2543
    %v2545 = vmul.f32 1.0, %v2544
    %v2547 = vrot.slane %v2533, 2
    %v2549 = vmul.f32 %v2547, %v2527
    %v2550 = vmul.f32 %v2533, %v2537
    %v2551 = vadd.f32 %v2549, %v2550
    %v2552 = vtanh.pop %v2551
    %v2553 = vmul.f32 %v2545, %v2552
    %v2554 = vld [vmem:[#allocation5] sm:$0x3]
    %v2555 = vxor.u32 %v2526, 2147483648
    %v2556 = vmul.f32 %v2555, 1.442695
    %v2557 = vpow.pop %v2556
    %v2558 = vadd.f32 %v2557, 1.0
    %v2559 = vrcp.pop %v2558
    %v2560 = vmul.f32 1.0, %v2559
    %v2562 = vrot.slane %v2526, 4
    %v2564 = vtanh.pop %v2562
    %v2565 = vrot.slane %v2526, 6
    %v2567 = vxor.u32 %v2565, 2147483648
    %v2568 = vmul.f32 %v2567, 1.442695
    %v2569 = vpow.pop %v2568
    %v2570 = vadd.f32 %v2569, 1.0
    %v2571 = vrcp.pop %v2570
    %v2572 = vmul.f32 1.0, %v2571
    %v2574 = vrot.slane %v2560, 2
    %v2576 = vmul.f32 %v2574, %v2554
    %v2577 = vmul.f32 %v2560, %v2564
    %v2578 = vadd.f32 %v2576, %v2577
    %v2579 = vtanh.pop %v2578
    %v2580 = vmul.f32 %v2572, %v2579
    %2581 = vst [vmem:[#allocation2] sm:$0x3] %v2553
    %2582 = vst [vmem:[#allocation3] sm:$0x3] %v2551
    %2583 = vst [vmem:[#allocation4] sm:$0x3] %v2580
    %2584 = vst [vmem:[#allocation5] sm:$0x3] %v2578
    %2585 = vst [vmem:[%s1395] sm:$0x3] %v2553
    %2586 = vst [vmem:[%s1393 + $0x2] sm:$0x3] %v2580
    %s2587 = scalar_lea.vmem [#allocation6], 48
    %v2588 = vld [vmem:[%s2587] sm:$0xff]
    %v2589 = vld [vmem:[#allocation2] sm:$0x3]
    %2590 = vmatprep.subr.mxu0 %v78
    %2591 = vmatpush1.msra.mxu0 %v77
    %2592 = vmatprep.subr.mxu0 %v82
    %2593 = vmatpush1.msra.mxu0 %v81
    %2594 = vmatprep.subr.mxu0 %v86
    %2595 = vmatpush1.msra.mxu0 %v85
    %2596 = vmatprep.subr.mxu0 %v90
    %2597 = vmatpush1.msra.mxu0 %v89
    %2598 = vmatprep.subr.mxu0 %v94
    %2599 = vmatpush1.msra.mxu0 %v93
    %2600 = vmatprep.subr.mxu0 %v98
    %2601 = vmatpush1.msra.mxu0 %v97
    %2602 = vmatprep.subr.mxu0 %v102
    %2603 = vmatpush1.msra.mxu0 %v101
    %2604 = vmatprep.subr.mxu0 %v106
    %2605 = vmatpush1.msra.mxu0 %v105
    %2606 = vmatprep.subr.mxu0 %v110
    %2607 = vmatpush1.msra.mxu0 %v109
    %2608 = vmatprep.subr.mxu0 %v114
    %2609 = vmatpush1.msra.mxu0 %v113
    %2610 = vmatprep.subr.mxu0 %v118
    %2611 = vmatpush1.msra.mxu0 %v117
    %2612 = vmatprep.subr.mxu0 %v122
    %2613 = vmatpush1.msra.mxu0 %v121
    %2614 = vmatprep.subr.mxu0 %v126
    %2615 = vmatpush1.msra.mxu0 %v125
    %2616 = vmatprep.subr.mxu0 %v130
    %2617 = vmatpush1.msra.mxu0 %v129
    %2618 = vmatprep.subr.mxu0 %v134
    %2619 = vmatpush1.msra.mxu0 %v133
    %2620 = vmatprep.subr.mxu0 %v138
    %2621 = vmatpush1.msra.mxu0 %v137
    %2622 = vmatprep.subr.mxu0 0.0
    %2623 = vmatpush1.msra.mxu0 0.0
    %2624 = vmatprep.subr.mxu0 0.0
    %2625 = vmatpush1.msra.mxu0 0.0
    %2626 = vmatprep.subr.mxu0 0.0
    %2627 = vmatpush1.msra.mxu0 0.0
    %2628 = vmatprep.subr.mxu0 0.0
    %2629 = vmatpush1.msra.mxu0 0.0
    %2630 = vmatprep.subr.mxu0 0.0
    %2631 = vmatpush1.msra.mxu0 0.0
    %2632 = vmatprep.subr.mxu0 0.0
    %2633 = vmatpush1.msra.mxu0 0.0
    %2634 = vmatprep.subr.mxu0 0.0
    %2635 = vmatpush1.msra.mxu0 0.0
    %2636 = vmatprep.subr.mxu0 0.0
    %2637 = vmatpush1.msra.mxu0 0.0
    %2638 = vmatprep.subr.mxu0 0.0
    %2639 = vmatpush1.msra.mxu0 0.0
    %2640 = vmatprep.subr.mxu0 0.0
    %2641 = vmatpush1.msra.mxu0 0.0
    %2642 = vmatprep.subr.mxu0 0.0
    %2643 = vmatpush1.msra.mxu0 0.0
    %2644 = vmatprep.subr.mxu0 0.0
    %2645 = vmatpush1.msra.mxu0 0.0
    %2646 = vmatprep.subr.mxu0 0.0
    %2647 = vmatpush1.msra.mxu0 0.0
    %2648 = vmatprep.subr.mxu0 0.0
    %2649 = vmatpush1.msra.mxu0 0.0
    %2650 = vmatprep.subr.mxu0 0.0
    %2651 = vmatpush1.msra.mxu0 0.0
    %2652 = vmatprep.subr.mxu0 0.0
    %2653 = vmatpush1.msra.mxu0 0.0
    %2654 = vmatprep.mubr.f32.mxu0 0.0
    %2655 = vmatmul.mubr.f32.gmra.mrb[0].mxu0 %v2589
    %v2656 = vpop.f32.mrb[0].mxu0
    %v2657 = vadd.f32 0.0, %v2656
    %v2658 = vpop.f32.mrb[0].mxu0
    %v2659 = vadd.f32 0.0, %v2658
    %2660 = vdwg.mxu0
    %2661 = vmatprep.subr.mxu0 %v80
    %2662 = vmatpush1.msra.mxu0 %v79
    %2663 = vmatprep.subr.mxu0 %v84
    %2664 = vmatpush1.msra.mxu0 %v83
    %2665 = vmatprep.subr.mxu0 %v88
    %2666 = vmatpush1.msra.mxu0 %v87
    %2667 = vmatprep.subr.mxu0 %v92
    %2668 = vmatpush1.msra.mxu0 %v91
    %2669 = vmatprep.subr.mxu0 %v96
    %2670 = vmatpush1.msra.mxu0 %v95
    %2671 = vmatprep.subr.mxu0 %v100
    %2672 = vmatpush1.msra.mxu0 %v99
    %2673 = vmatprep.subr.mxu0 %v104
    %2674 = vmatpush1.msra.mxu0 %v103
    %2675 = vmatprep.subr.mxu0 %v108
    %2676 = vmatpush1.msra.mxu0 %v107
    %2677 = vmatprep.subr.mxu0 %v112
    %2678 = vmatpush1.msra.mxu0 %v111
    %2679 = vmatprep.subr.mxu0 %v116
    %2680 = vmatpush1.msra.mxu0 %v115
    %2681 = vmatprep.subr.mxu0 %v120
    %2682 = vmatpush1.msra.mxu0 %v119
    %2683 = vmatprep.subr.mxu0 %v124
    %2684 = vmatpush1.msra.mxu0 %v123
    %2685 = vmatprep.subr.mxu0 %v128
    %2686 = vmatpush1.msra.mxu0 %v127
    %2687 = vmatprep.subr.mxu0 %v132
    %2688 = vmatpush1.msra.mxu0 %v131
    %2689 = vmatprep.subr.mxu0 %v136
    %2690 = vmatpush1.msra.mxu0 %v135
    %2691 = vmatprep.subr.mxu0 %v140
    %2692 = vmatpush1.msra.mxu0 %v139
    %2693 = vmatprep.subr.mxu0 0.0
    %2694 = vmatpush1.msra.mxu0 0.0
    %2695 = vmatprep.subr.mxu0 0.0
    %2696 = vmatpush1.msra.mxu0 0.0
    %2697 = vmatprep.subr.mxu0 0.0
    %2698 = vmatpush1.msra.mxu0 0.0
    %2699 = vmatprep.subr.mxu0 0.0
    %2700 = vmatpush1.msra.mxu0 0.0
    %2701 = vmatprep.subr.mxu0 0.0
    %2702 = vmatpush1.msra.mxu0 0.0
    %2703 = vmatprep.subr.mxu0 0.0
    %2704 = vmatpush1.msra.mxu0 0.0
    %2705 = vmatprep.subr.mxu0 0.0
    %2706 = vmatpush1.msra.mxu0 0.0
    %2707 = vmatprep.subr.mxu0 0.0
    %2708 = vmatpush1.msra.mxu0 0.0
    %2709 = vmatprep.subr.mxu0 0.0
    %2710 = vmatpush1.msra.mxu0 0.0
    %2711 = vmatprep.subr.mxu0 0.0
    %2712 = vmatpush1.msra.mxu0 0.0
    %2713 = vmatprep.subr.mxu0 0.0
    %2714 = vmatpush1.msra.mxu0 0.0
    %2715 = vmatprep.subr.mxu0 0.0
    %2716 = vmatpush1.msra.mxu0 0.0
    %2717 = vmatprep.subr.mxu0 0.0
    %2718 = vmatpush1.msra.mxu0 0.0
    %2719 = vmatprep.subr.mxu0 0.0
    %2720 = vmatpush1.msra.mxu0 0.0
    %2721 = vmatprep.subr.mxu0 0.0
    %2722 = vmatpush1.msra.mxu0 0.0
    %2723 = vmatprep.subr.mxu0 0.0
    %2724 = vmatpush1.msra.mxu0 0.0
    %2725 = vmatprep.mubr.f32.mxu0 0.0
    %2726 = vmatmul.mubr.f32.gmra.mrb[0].mxu0 %v2589
    %v2727 = vpop.f32.mrb[0].mxu0
    %v2728 = vadd.f32 0.0, %v2727
    %v2729 = vpop.f32.mrb[0].mxu0
    %v2730 = vadd.f32 0.0, %v2729
    %2731 = vdwg.mxu0
    %v2736 = vcombine.low %v2657, %v2659
    %v2737 = vcombine.low %v2728, %v2730
    %v2739 = vunpack.c.l.s4 1983009808
    %v2740 = vunpack.c.0.s8 %v2739
    %v2741 = vlaneseq
    %v2742 = vshrl.u32 %v2741, 7
    %v2743 = vsub.s32 %v2740, %v2742
    %v2744 = vrot.slane %v2736, %v2743
    %v2746 = vunpack.c.l.s4 1983009808
    %v2747 = vunpack.c.0.s8 %v2746
    %v2748 = vlaneseq
    %v2749 = vshrl.u32 %v2748, 7
    %v2750 = vsub.s32 %v2747, %v2749
    %v2751 = vrot.slane %v2737, %v2750
    %v2752 = vcombine.low %v2744, %v2751
    %v2754 = vadd.f32 %v2588, %v2752
    %s2755 = scalar_lea.vmem [#allocation9], 8
    %v2756 = vld [vmem:[%s2755] sm:$0xff]
    %v2757 = vld [vmem:[#allocation4] sm:$0x3]
    %2758 = vmatprep.subr.mxu0 %v142
    %2759 = vmatpush1.msra.mxu0 %v141
    %2760 = vmatprep.subr.mxu0 %v146
    %2761 = vmatpush1.msra.mxu0 %v145
    %2762 = vmatprep.subr.mxu0 %v150
    %2763 = vmatpush1.msra.mxu0 %v149
    %2764 = vmatprep.subr.mxu0 %v154
    %2765 = vmatpush1.msra.mxu0 %v153
    %2766 = vmatprep.subr.mxu0 %v158
    %2767 = vmatpush1.msra.mxu0 %v157
    %2768 = vmatprep.subr.mxu0 %v162
    %2769 = vmatpush1.msra.mxu0 %v161
    %2770 = vmatprep.subr.mxu0 %v166
    %2771 = vmatpush1.msra.mxu0 %v165
    %2772 = vmatprep.subr.mxu0 %v170
    %2773 = vmatpush1.msra.mxu0 %v169
    %2774 = vmatprep.subr.mxu0 %v174
    %2775 = vmatpush1.msra.mxu0 %v173
    %2776 = vmatprep.subr.mxu0 %v178
    %2777 = vmatpush1.msra.mxu0 %v177
    %2778 = vmatprep.subr.mxu0 %v182
    %2779 = vmatpush1.msra.mxu0 %v181
    %2780 = vmatprep.subr.mxu0 %v186
    %2781 = vmatpush1.msra.mxu0 %v185
    %2782 = vmatprep.subr.mxu0 %v190
    %2783 = vmatpush1.msra.mxu0 %v189
    %2784 = vmatprep.subr.mxu0 %v194
    %2785 = vmatpush1.msra.mxu0 %v193
    %2786 = vmatprep.subr.mxu0 %v198
    %2787 = vmatpush1.msra.mxu0 %v197
    %2788 = vmatprep.subr.mxu0 %v202
    %2789 = vmatpush1.msra.mxu0 %v201
    %2790 = vmatprep.subr.mxu0 0.0
    %2791 = vmatpush1.msra.mxu0 0.0
    %2792 = vmatprep.subr.mxu0 0.0
    %2793 = vmatpush1.msra.mxu0 0.0
    %2794 = vmatprep.subr.mxu0 0.0
    %2795 = vmatpush1.msra.mxu0 0.0
    %2796 = vmatprep.subr.mxu0 0.0
    %2797 = vmatpush1.msra.mxu0 0.0
    %2798 = vmatprep.subr.mxu0 0.0
    %2799 = vmatpush1.msra.mxu0 0.0
    %2800 = vmatprep.subr.mxu0 0.0
    %2801 = vmatpush1.msra.mxu0 0.0
    %2802 = vmatprep.subr.mxu0 0.0
    %2803 = vmatpush1.msra.mxu0 0.0
    %2804 = vmatprep.subr.mxu0 0.0
    %2805 = vmatpush1.msra.mxu0 0.0
    %2806 = vmatprep.subr.mxu0 0.0
    %2807 = vmatpush1.msra.mxu0 0.0
    %2808 = vmatprep.subr.mxu0 0.0
    %2809 = vmatpush1.msra.mxu0 0.0
    %2810 = vmatprep.subr.mxu0 0.0
    %2811 = vmatpush1.msra.mxu0 0.0
    %2812 = vmatprep.subr.mxu0 0.0
    %2813 = vmatpush1.msra.mxu0 0.0
    %2814 = vmatprep.subr.mxu0 0.0
    %2815 = vmatpush1.msra.mxu0 0.0
    %2816 = vmatprep.subr.mxu0 0.0
    %2817 = vmatpush1.msra.mxu0 0.0
    %2818 = vmatprep.subr.mxu0 0.0
    %2819 = vmatpush1.msra.mxu0 0.0
    %2820 = vmatprep.subr.mxu0 0.0
    %2821 = vmatpush1.msra.mxu0 0.0
    %2822 = vmatprep.mubr.f32.mxu0 0.0
    %2823 = vmatmul.mubr.f32.gmra.mrb[0].mxu0 %v2757
    %v2824 = vpop.f32.mrb[0].mxu0
    %v2825 = vadd.f32 0.0, %v2824
    %v2826 = vpop.f32.mrb[0].mxu0
    %v2827 = vadd.f32 0.0, %v2826
    %2828 = vdwg.mxu0
    %2829 = vmatprep.subr.mxu0 %v144
    %2830 = vmatpush1.msra.mxu0 %v143
    %2831 = vmatprep.subr.mxu0 %v148
    %2832 = vmatpush1.msra.mxu0 %v147
    %2833 = vmatprep.subr.mxu0 %v152
    %2834 = vmatpush1.msra.mxu0 %v151
    %2835 = vmatprep.subr.mxu0 %v156
    %2836 = vmatpush1.msra.mxu0 %v155
    %2837 = vmatprep.subr.mxu0 %v160
    %2838 = vmatpush1.msra.mxu0 %v159
    %2839 = vmatprep.subr.mxu0 %v164
    %2840 = vmatpush1.msra.mxu0 %v163
    %2841 = vmatprep.subr.mxu0 %v168
    %2842 = vmatpush1.msra.mxu0 %v167
    %2843 = vmatprep.subr.mxu0 %v172
    %2844 = vmatpush1.msra.mxu0 %v171
    %2845 = vmatprep.subr.mxu0 %v176
    %2846 = vmatpush1.msra.mxu0 %v175
    %2847 = vmatprep.subr.mxu0 %v180
    %2848 = vmatpush1.msra.mxu0 %v179
    %2849 = vmatprep.subr.mxu0 %v184
    %2850 = vmatpush1.msra.mxu0 %v183
    %2851 = vmatprep.subr.mxu0 %v188
    %2852 = vmatpush1.msra.mxu0 %v187
    %2853 = vmatprep.subr.mxu0 %v192
    %2854 = vmatpush1.msra.mxu0 %v191
    %2855 = vmatprep.subr.mxu0 %v196
    %2856 = vmatpush1.msra.mxu0 %v195
    %2857 = vmatprep.subr.mxu0 %v200
    %2858 = vmatpush1.msra.mxu0 %v199
    %2859 = vmatprep.subr.mxu0 %v204
    %2860 = vmatpush1.msra.mxu0 %v203
    %2861 = vmatprep.subr.mxu0 0.0
    %2862 = vmatpush1.msra.mxu0 0.0
    %2863 = vmatprep.subr.mxu0 0.0
    %2864 = vmatpush1.msra.mxu0 0.0
    %2865 = vmatprep.subr.mxu0 0.0
    %2866 = vmatpush1.msra.mxu0 0.0
    %2867 = vmatprep.subr.mxu0 0.0
    %2868 = vmatpush1.msra.mxu0 0.0
    %2869 = vmatprep.subr.mxu0 0.0
    %2870 = vmatpush1.msra.mxu0 0.0
    %2871 = vmatprep.subr.mxu0 0.0
    %2872 = vmatpush1.msra.mxu0 0.0
    %2873 = vmatprep.subr.mxu0 0.0
    %2874 = vmatpush1.msra.mxu0 0.0
    %2875 = vmatprep.subr.mxu0 0.0
    %2876 = vmatpush1.msra.mxu0 0.0
    %2877 = vmatprep.subr.mxu0 0.0
    %2878 = vmatpush1.msra.mxu0 0.0
    %2879 = vmatprep.subr.mxu0 0.0
    %2880 = vmatpush1.msra.mxu0 0.0
    %2881 = vmatprep.subr.mxu0 0.0
    %2882 = vmatpush1.msra.mxu0 0.0
    %2883 = vmatprep.subr.mxu0 0.0
    %2884 = vmatpush1.msra.mxu0 0.0
    %2885 = vmatprep.subr.mxu0 0.0
    %2886 = vmatpush1.msra.mxu0 0.0
    %2887 = vmatprep.subr.mxu0 0.0
    %2888 = vmatpush1.msra.mxu0 0.0
    %2889 = vmatprep.subr.mxu0 0.0
    %2890 = vmatpush1.msra.mxu0 0.0
    %2891 = vmatprep.subr.mxu0 0.0
    %2892 = vmatpush1.msra.mxu0 0.0
    %2893 = vmatprep.mubr.f32.mxu0 0.0
    %2894 = vmatmul.mubr.f32.gmra.mrb[0].mxu0 %v2757
    %v2895 = vpop.f32.mrb[0].mxu0
    %v2896 = vadd.f32 0.0, %v2895
    %v2897 = vpop.f32.mrb[0].mxu0
    %v2898 = vadd.f32 0.0, %v2897
    %2899 = vdwg.mxu0
    %v2904 = vcombine.low %v2825, %v2827
    %v2905 = vcombine.low %v2896, %v2898
    %v2907 = vunpack.c.l.s4 1983009808
    %v2908 = vunpack.c.0.s8 %v2907
    %v2909 = vlaneseq
    %v2910 = vshrl.u32 %v2909, 7
    %v2911 = vsub.s32 %v2908, %v2910
    %v2912 = vrot.slane %v2904, %v2911
    %v2914 = vunpack.c.l.s4 1983009808
    %v2915 = vunpack.c.0.s8 %v2914
    %v2916 = vlaneseq
    %v2917 = vshrl.u32 %v2916, 7
    %v2918 = vsub.s32 %v2915, %v2917
    %v2919 = vrot.slane %v2905, %v2918
    %v2920 = vcombine.low %v2912, %v2919
    %v2922 = vadd.f32 %v2756, %v2920
    %v2923 = vld [vmem:[#allocation3] sm:$0x3]
    %v2924 = vxor.u32 %v2754, 2147483648
    %v2925 = vmul.f32 %v2924, 1.442695
    %v2926 = vpow.pop %v2925
    %v2927 = vadd.f32 %v2926, 1.0
    %v2928 = vrcp.pop %v2927
    %v2929 = vmul.f32 1.0, %v2928
    %v2931 = vrot.slane %v2754, 4
    %v2933 = vtanh.pop %v2931
    %v2934 = vrot.slane %v2754, 6
    %v2936 = vxor.u32 %v2934, 2147483648
    %v2937 = vmul.f32 %v2936, 1.442695
    %v2938 = vpow.pop %v2937
    %v2939 = vadd.f32 %v2938, 1.0
    %v2940 = vrcp.pop %v2939
    %v2941 = vmul.f32 1.0, %v2940
    %v2943 = vrot.slane %v2929, 2
    %v2945 = vmul.f32 %v2943, %v2923
    %v2946 = vmul.f32 %v2929, %v2933
    %v2947 = vadd.f32 %v2945, %v2946
    %v2948 = vtanh.pop %v2947
    %v2949 = vmul.f32 %v2941, %v2948
    %v2950 = vld [vmem:[#allocation5] sm:$0x3]
    %v2951 = vxor.u32 %v2922, 2147483648
    %v2952 = vmul.f32 %v2951, 1.442695
    %v2953 = vpow.pop %v2952
    %v2954 = vadd.f32 %v2953, 1.0
    %v2955 = vrcp.pop %v2954
    %v2956 = vmul.f32 1.0, %v2955
    %v2958 = vrot.slane %v2922, 4
    %v2960 = vtanh.pop %v2958
    %v2961 = vrot.slane %v2922, 6
    %v2963 = vxor.u32 %v2961, 2147483648
    %v2964 = vmul.f32 %v2963, 1.442695
    %v2965 = vpow.pop %v2964
    %v2966 = vadd.f32 %v2965, 1.0
    %v2967 = vrcp.pop %v2966
    %v2968 = vmul.f32 1.0, %v2967
    %v2970 = vrot.slane %v2956, 2
    %v2972 = vmul.f32 %v2970, %v2950
    %v2973 = vmul.f32 %v2956, %v2960
    %v2974 = vadd.f32 %v2972, %v2973
    %v2975 = vtanh.pop %v2974
    %v2976 = vmul.f32 %v2968, %v2975
    %2977 = vst [vmem:[#allocation2] sm:$0x3] %v2949
    %2978 = vst [vmem:[#allocation3] sm:$0x3] %v2947
    %2979 = vst [vmem:[#allocation4] sm:$0x3] %v2976
    %2980 = vst [vmem:[#allocation5] sm:$0x3] %v2974
    %2981 = vst [vmem:[%s997] sm:$0x3] %v2949
    %2982 = vst [vmem:[%s995 + $0x2] sm:$0x3] %v2976
    %s2983 = scalar_lea.vmem [#allocation6], 56
    %v2984 = vld [vmem:[%s2983] sm:$0xff]
    %v2985 = vld [vmem:[#allocation2] sm:$0x3]
    %2986 = vmatprep.subr.mxu0 %v78
    %2987 = vmatpush1.msra.mxu0 %v77
    %2988 = vmatprep.subr.mxu0 %v82
    %2989 = vmatpush1.msra.mxu0 %v81
    %2990 = vmatprep.subr.mxu0 %v86
    %2991 = vmatpush1.msra.mxu0 %v85
    %2992 = vmatprep.subr.mxu0 %v90
    %2993 = vmatpush1.msra.mxu0 %v89
    %2994 = vmatprep.subr.mxu0 %v94
    %2995 = vmatpush1.msra.mxu0 %v93
    %2996 = vmatprep.subr.mxu0 %v98
    %2997 = vmatpush1.msra.mxu0 %v97
    %2998 = vmatprep.subr.mxu0 %v102
    %2999 = vmatpush1.msra.mxu0 %v101
    %3000 = vmatprep.subr.mxu0 %v106
    %3001 = vmatpush1.msra.mxu0 %v105
    %3002 = vmatprep.subr.mxu0 %v110
    %3003 = vmatpush1.msra.mxu0 %v109
    %3004 = vmatprep.subr.mxu0 %v114
    %3005 = vmatpush1.msra.mxu0 %v113
    %3006 = vmatprep.subr.mxu0 %v118
    %3007 = vmatpush1.msra.mxu0 %v117
    %3008 = vmatprep.subr.mxu0 %v122
    %3009 = vmatpush1.msra.mxu0 %v121
    %3010 = vmatprep.subr.mxu0 %v126
    %3011 = vmatpush1.msra.mxu0 %v125
    %3012 = vmatprep.subr.mxu0 %v130
    %3013 = vmatpush1.msra.mxu0 %v129
    %3014 = vmatprep.subr.mxu0 %v134
    %3015 = vmatpush1.msra.mxu0 %v133
    %3016 = vmatprep.subr.mxu0 %v138
    %3017 = vmatpush1.msra.mxu0 %v137
    %3018 = vmatprep.subr.mxu0 0.0
    %3019 = vmatpush1.msra.mxu0 0.0
    %3020 = vmatprep.subr.mxu0 0.0
    %3021 = vmatpush1.msra.mxu0 0.0
    %3022 = vmatprep.subr.mxu0 0.0
    %3023 = vmatpush1.msra.mxu0 0.0
    %3024 = vmatprep.subr.mxu0 0.0
    %3025 = vmatpush1.msra.mxu0 0.0
    %3026 = vmatprep.subr.mxu0 0.0
    %3027 = vmatpush1.msra.mxu0 0.0
    %3028 = vmatprep.subr.mxu0 0.0
    %3029 = vmatpush1.msra.mxu0 0.0
    %3030 = vmatprep.subr.mxu0 0.0
    %3031 = vmatpush1.msra.mxu0 0.0
    %3032 = vmatprep.subr.mxu0 0.0
    %3033 = vmatpush1.msra.mxu0 0.0
    %3034 = vmatprep.subr.mxu0 0.0
    %3035 = vmatpush1.msra.mxu0 0.0
    %3036 = vmatprep.subr.mxu0 0.0
    %3037 = vmatpush1.msra.mxu0 0.0
    %3038 = vmatprep.subr.mxu0 0.0
    %3039 = vmatpush1.msra.mxu0 0.0
    %3040 = vmatprep.subr.mxu0 0.0
    %3041 = vmatpush1.msra.mxu0 0.0
    %3042 = vmatprep.subr.mxu0 0.0
    %3043 = vmatpush1.msra.mxu0 0.0
    %3044 = vmatprep.subr.mxu0 0.0
    %3045 = vmatpush1.msra.mxu0 0.0
    %3046 = vmatprep.subr.mxu0 0.0
    %3047 = vmatpush1.msra.mxu0 0.0
    %3048 = vmatprep.subr.mxu0 0.0
    %3049 = vmatpush1.msra.mxu0 0.0
    %3050 = vmatprep.mubr.f32.mxu0 0.0
    %3051 = vmatmul.mubr.f32.gmra.mrb[0].mxu0 %v2985
    %v3052 = vpop.f32.mrb[0].mxu0
    %v3053 = vadd.f32 0.0, %v3052
    %v3054 = vpop.f32.mrb[0].mxu0
    %v3055 = vadd.f32 0.0, %v3054
    %3056 = vdwg.mxu0
    %3057 = vmatprep.subr.mxu0 %v80
    %3058 = vmatpush1.msra.mxu0 %v79
    %3059 = vmatprep.subr.mxu0 %v84
    %3060 = vmatpush1.msra.mxu0 %v83
    %3061 = vmatprep.subr.mxu0 %v88
    %3062 = vmatpush1.msra.mxu0 %v87
    %3063 = vmatprep.subr.mxu0 %v92
    %3064 = vmatpush1.msra.mxu0 %v91
    %3065 = vmatprep.subr.mxu0 %v96
    %3066 = vmatpush1.msra.mxu0 %v95
    %3067 = vmatprep.subr.mxu0 %v100
    %3068 = vmatpush1.msra.mxu0 %v99
    %3069 = vmatprep.subr.mxu0 %v104
    %3070 = vmatpush1.msra.mxu0 %v103
    %3071 = vmatprep.subr.mxu0 %v108
    %3072 = vmatpush1.msra.mxu0 %v107
    %3073 = vmatprep.subr.mxu0 %v112
    %3074 = vmatpush1.msra.mxu0 %v111
    %3075 = vmatprep.subr.mxu0 %v116
    %3076 = vmatpush1.msra.mxu0 %v115
    %3077 = vmatprep.subr.mxu0 %v120
    %3078 = vmatpush1.msra.mxu0 %v119
    %3079 = vmatprep.subr.mxu0 %v124
    %3080 = vmatpush1.msra.mxu0 %v123
    %3081 = vmatprep.subr.mxu0 %v128
    %3082 = vmatpush1.msra.mxu0 %v127
    %3083 = vmatprep.subr.mxu0 %v132
    %3084 = vmatpush1.msra.mxu0 %v131
    %3085 = vmatprep.subr.mxu0 %v136
    %3086 = vmatpush1.msra.mxu0 %v135
    %3087 = vmatprep.subr.mxu0 %v140
    %3088 = vmatpush1.msra.mxu0 %v139
    %3089 = vmatprep.subr.mxu0 0.0
    %3090 = vmatpush1.msra.mxu0 0.0
    %3091 = vmatprep.subr.mxu0 0.0
    %3092 = vmatpush1.msra.mxu0 0.0
    %3093 = vmatprep.subr.mxu0 0.0
    %3094 = vmatpush1.msra.mxu0 0.0
    %3095 = vmatprep.subr.mxu0 0.0
    %3096 = vmatpush1.msra.mxu0 0.0
    %3097 = vmatprep.subr.mxu0 0.0
    %3098 = vmatpush1.msra.mxu0 0.0
    %3099 = vmatprep.subr.mxu0 0.0
    %3100 = vmatpush1.msra.mxu0 0.0
    %3101 = vmatprep.subr.mxu0 0.0
    %3102 = vmatpush1.msra.mxu0 0.0
    %3103 = vmatprep.subr.mxu0 0.0
    %3104 = vmatpush1.msra.mxu0 0.0
    %3105 = vmatprep.subr.mxu0 0.0
    %3106 = vmatpush1.msra.mxu0 0.0
    %3107 = vmatprep.subr.mxu0 0.0
    %3108 = vmatpush1.msra.mxu0 0.0
    %3109 = vmatprep.subr.mxu0 0.0
    %3110 = vmatpush1.msra.mxu0 0.0
    %3111 = vmatprep.subr.mxu0 0.0
    %3112 = vmatpush1.msra.mxu0 0.0
    %3113 = vmatprep.subr.mxu0 0.0
    %3114 = vmatpush1.msra.mxu0 0.0
    %3115 = vmatprep.subr.mxu0 0.0
    %3116 = vmatpush1.msra.mxu0 0.0
    %3117 = vmatprep.subr.mxu0 0.0
    %3118 = vmatpush1.msra.mxu0 0.0
    %3119 = vmatprep.subr.mxu0 0.0
    %3120 = vmatpush1.msra.mxu0 0.0
    %3121 = vmatprep.mubr.f32.mxu0 0.0
    %3122 = vmatmul.mubr.f32.gmra.mrb[0].mxu0 %v2985
    %v3123 = vpop.f32.mrb[0].mxu0
    %v3124 = vadd.f32 0.0, %v3123
    %v3125 = vpop.f32.mrb[0].mxu0
    %v3126 = vadd.f32 0.0, %v3125
    %3127 = vdwg.mxu0
    %v3132 = vcombine.low %v3053, %v3055
    %v3133 = vcombine.low %v3124, %v3126
    %v3135 = vunpack.c.l.s4 1983009808
    %v3136 = vunpack.c.0.s8 %v3135
    %v3137 = vlaneseq
    %v3138 = vshrl.u32 %v3137, 7
    %v3139 = vsub.s32 %v3136, %v3138
    %v3140 = vrot.slane %v3132, %v3139
    %v3142 = vunpack.c.l.s4 1983009808
    %v3143 = vunpack.c.0.s8 %v3142
    %v3144 = vlaneseq
    %v3145 = vshrl.u32 %v3144, 7
    %v3146 = vsub.s32 %v3143, %v3145
    %v3147 = vrot.slane %v3133, %v3146
    %v3148 = vcombine.low %v3140, %v3147
    %v3150 = vadd.f32 %v2984, %v3148
    %v3151 = vld [vmem:[#allocation9] sm:$0xff]
    %v3152 = vld [vmem:[#allocation4] sm:$0x3]
    %3153 = vmatprep.subr.mxu0 %v142
    %3154 = vmatpush1.msra.mxu0 %v141
    %3155 = vmatprep.subr.mxu0 %v146
    %3156 = vmatpush1.msra.mxu0 %v145
    %3157 = vmatprep.subr.mxu0 %v150
    %3158 = vmatpush1.msra.mxu0 %v149
    %3159 = vmatprep.subr.mxu0 %v154
    %3160 = vmatpush1.msra.mxu0 %v153
    %3161 = vmatprep.subr.mxu0 %v158
    %3162 = vmatpush1.msra.mxu0 %v157
    %3163 = vmatprep.subr.mxu0 %v162
    %3164 = vmatpush1.msra.mxu0 %v161
    %3165 = vmatprep.subr.mxu0 %v166
    %3166 = vmatpush1.msra.mxu0 %v165
    %3167 = vmatprep.subr.mxu0 %v170
    %3168 = vmatpush1.msra.mxu0 %v169
    %3169 = vmatprep.subr.mxu0 %v174
    %3170 = vmatpush1.msra.mxu0 %v173
    %3171 = vmatprep.subr.mxu0 %v178
    %3172 = vmatpush1.msra.mxu0 %v177
    %3173 = vmatprep.subr.mxu0 %v182
    %3174 = vmatpush1.msra.mxu0 %v181
    %3175 = vmatprep.subr.mxu0 %v186
    %3176 = vmatpush1.msra.mxu0 %v185
    %3177 = vmatprep.subr.mxu0 %v190
    %3178 = vmatpush1.msra.mxu0 %v189
    %3179 = vmatprep.subr.mxu0 %v194
    %3180 = vmatpush1.msra.mxu0 %v193
    %3181 = vmatprep.subr.mxu0 %v198
    %3182 = vmatpush1.msra.mxu0 %v197
    %3183 = vmatprep.subr.mxu0 %v202
    %3184 = vmatpush1.msra.mxu0 %v201
    %3185 = vmatprep.subr.mxu0 0.0
    %3186 = vmatpush1.msra.mxu0 0.0
    %3187 = vmatprep.subr.mxu0 0.0
    %3188 = vmatpush1.msra.mxu0 0.0
    %3189 = vmatprep.subr.mxu0 0.0
    %3190 = vmatpush1.msra.mxu0 0.0
    %3191 = vmatprep.subr.mxu0 0.0
    %3192 = vmatpush1.msra.mxu0 0.0
    %3193 = vmatprep.subr.mxu0 0.0
    %3194 = vmatpush1.msra.mxu0 0.0
    %3195 = vmatprep.subr.mxu0 0.0
    %3196 = vmatpush1.msra.mxu0 0.0
    %3197 = vmatprep.subr.mxu0 0.0
    %3198 = vmatpush1.msra.mxu0 0.0
    %3199 = vmatprep.subr.mxu0 0.0
    %3200 = vmatpush1.msra.mxu0 0.0
    %3201 = vmatprep.subr.mxu0 0.0
    %3202 = vmatpush1.msra.mxu0 0.0
    %3203 = vmatprep.subr.mxu0 0.0
    %3204 = vmatpush1.msra.mxu0 0.0
    %3205 = vmatprep.subr.mxu0 0.0
    %3206 = vmatpush1.msra.mxu0 0.0
    %3207 = vmatprep.subr.mxu0 0.0
    %3208 = vmatpush1.msra.mxu0 0.0
    %3209 = vmatprep.subr.mxu0 0.0
    %3210 = vmatpush1.msra.mxu0 0.0
    %3211 = vmatprep.subr.mxu0 0.0
    %3212 = vmatpush1.msra.mxu0 0.0
    %3213 = vmatprep.subr.mxu0 0.0
    %3214 = vmatpush1.msra.mxu0 0.0
    %3215 = vmatprep.subr.mxu0 0.0
    %3216 = vmatpush1.msra.mxu0 0.0
    %3217 = vmatprep.mubr.f32.mxu0 0.0
    %3218 = vmatmul.mubr.f32.gmra.mrb[0].mxu0 %v3152
    %v3219 = vpop.f32.mrb[0].mxu0
    %v3220 = vadd.f32 0.0, %v3219
    %v3221 = vpop.f32.mrb[0].mxu0
    %v3222 = vadd.f32 0.0, %v3221
    %3223 = vdwg.mxu0
    %3224 = vmatprep.subr.mxu0 %v144
    %3225 = vmatpush1.msra.mxu0 %v143
    %3226 = vmatprep.subr.mxu0 %v148
    %3227 = vmatpush1.msra.mxu0 %v147
    %3228 = vmatprep.subr.mxu0 %v152
    %3229 = vmatpush1.msra.mxu0 %v151
    %3230 = vmatprep.subr.mxu0 %v156
    %3231 = vmatpush1.msra.mxu0 %v155
    %3232 = vmatprep.subr.mxu0 %v160
    %3233 = vmatpush1.msra.mxu0 %v159
    %3234 = vmatprep.subr.mxu0 %v164
    %3235 = vmatpush1.msra.mxu0 %v163
    %3236 = vmatprep.subr.mxu0 %v168
    %3237 = vmatpush1.msra.mxu0 %v167
    %3238 = vmatprep.subr.mxu0 %v172
    %3239 = vmatpush1.msra.mxu0 %v171
    %3240 = vmatprep.subr.mxu0 %v176
    %3241 = vmatpush1.msra.mxu0 %v175
    %3242 = vmatprep.subr.mxu0 %v180
    %3243 = vmatpush1.msra.mxu0 %v179
    %3244 = vmatprep.subr.mxu0 %v184
    %3245 = vmatpush1.msra.mxu0 %v183
    %3246 = vmatprep.subr.mxu0 %v188
    %3247 = vmatpush1.msra.mxu0 %v187
    %3248 = vmatprep.subr.mxu0 %v192
    %3249 = vmatpush1.msra.mxu0 %v191
    %3250 = vmatprep.subr.mxu0 %v196
    %3251 = vmatpush1.msra.mxu0 %v195
    %3252 = vmatprep.subr.mxu0 %v200
    %3253 = vmatpush1.msra.mxu0 %v199
    %3254 = vmatprep.subr.mxu0 %v204
    %3255 = vmatpush1.msra.mxu0 %v203
    %3256 = vmatprep.subr.mxu0 0.0
    %3257 = vmatpush1.msra.mxu0 0.0
    %3258 = vmatprep.subr.mxu0 0.0
    %3259 = vmatpush1.msra.mxu0 0.0
    %3260 = vmatprep.subr.mxu0 0.0
    %3261 = vmatpush1.msra.mxu0 0.0
    %3262 = vmatprep.subr.mxu0 0.0
    %3263 = vmatpush1.msra.mxu0 0.0
    %3264 = vmatprep.subr.mxu0 0.0
    %3265 = vmatpush1.msra.mxu0 0.0
    %3266 = vmatprep.subr.mxu0 0.0
    %3267 = vmatpush1.msra.mxu0 0.0
    %3268 = vmatprep.subr.mxu0 0.0
    %3269 = vmatpush1.msra.mxu0 0.0
    %3270 = vmatprep.subr.mxu0 0.0
    %3271 = vmatpush1.msra.mxu0 0.0
    %3272 = vmatprep.subr.mxu0 0.0
    %3273 = vmatpush1.msra.mxu0 0.0
    %3274 = vmatprep.subr.mxu0 0.0
    %3275 = vmatpush1.msra.mxu0 0.0
    %3276 = vmatprep.subr.mxu0 0.0
    %3277 = vmatpush1.msra.mxu0 0.0
    %3278 = vmatprep.subr.mxu0 0.0
    %3279 = vmatpush1.msra.mxu0 0.0
    %3280 = vmatprep.subr.mxu0 0.0
    %3281 = vmatpush1.msra.mxu0 0.0
    %3282 = vmatprep.subr.mxu0 0.0
    %3283 = vmatpush1.msra.mxu0 0.0
    %3284 = vmatprep.subr.mxu0 0.0
    %3285 = vmatpush1.msra.mxu0 0.0
    %3286 = vmatprep.subr.mxu0 0.0
    %3287 = vmatpush1.msra.mxu0 0.0
    %3288 = vmatprep.mubr.f32.mxu0 0.0
    %3289 = vmatmul.mubr.f32.gmra.mrb[0].mxu0 %v3152
    %v3290 = vpop.f32.mrb[0].mxu0
    %v3291 = vadd.f32 0.0, %v3290
    %v3292 = vpop.f32.mrb[0].mxu0
    %v3293 = vadd.f32 0.0, %v3292
    %3294 = vdwg.mxu0
    %v3299 = vcombine.low %v3220, %v3222
    %v3300 = vcombine.low %v3291, %v3293
    %v3302 = vunpack.c.l.s4 1983009808
    %v3303 = vunpack.c.0.s8 %v3302
    %v3304 = vlaneseq
    %v3305 = vshrl.u32 %v3304, 7
    %v3306 = vsub.s32 %v3303, %v3305
    %v3307 = vrot.slane %v3299, %v3306
    %v3309 = vunpack.c.l.s4 1983009808
    %v3310 = vunpack.c.0.s8 %v3309
    %v3311 = vlaneseq
    %v3312 = vshrl.u32 %v3311, 7
    %v3313 = vsub.s32 %v3310, %v3312
    %v3314 = vrot.slane %v3300, %v3313
    %v3315 = vcombine.low %v3307, %v3314
    %v3317 = vadd.f32 %v3151, %v3315
    %v3318 = vld [vmem:[#allocation3] sm:$0x3]
    %v3319 = vxor.u32 %v3150, 2147483648
    %v3320 = vmul.f32 %v3319, 1.442695
    %v3321 = vpow.pop %v3320
    %v3322 = vadd.f32 %v3321, 1.0
    %v3323 = vrcp.pop %v3322
    %v3324 = vmul.f32 1.0, %v3323
    %v3326 = vrot.slane %v3150, 4
    %v3328 = vtanh.pop %v3326
    %v3329 = vrot.slane %v3150, 6
    %v3331 = vxor.u32 %v3329, 2147483648
    %v3332 = vmul.f32 %v3331, 1.442695
    %v3333 = vpow.pop %v3332
    %v3334 = vadd.f32 %v3333, 1.0
    %v3335 = vrcp.pop %v3334
    %v3336 = vmul.f32 1.0, %v3335
    %v3338 = vrot.slane %v3324, 2
    %v3340 = vmul.f32 %v3338, %v3318
    %v3341 = vmul.f32 %v3324, %v3328
    %v3342 = vadd.f32 %v3340, %v3341
    %v3343 = vtanh.pop %v3342
    %v3344 = vmul.f32 %v3336, %v3343
    %v3345 = vld [vmem:[#allocation5] sm:$0x3]
    %v3346 = vxor.u32 %v3317, 2147483648
    %v3347 = vmul.f32 %v3346, 1.442695
    %v3348 = vpow.pop %v3347
    %v3349 = vadd.f32 %v3348, 1.0
    %v3350 = vrcp.pop %v3349
    %v3351 = vmul.f32 1.0, %v3350
    %v3353 = vrot.slane %v3317, 4
    %v3355 = vtanh.pop %v3353
    %v3356 = vrot.slane %v3317, 6
    %v3358 = vxor.u32 %v3356, 2147483648
    %v3359 = vmul.f32 %v3358, 1.442695
    %v3360 = vpow.pop %v3359
    %v3361 = vadd.f32 %v3360, 1.0
    %v3362 = vrcp.pop %v3361
    %v3363 = vmul.f32 1.0, %v3362
    %v3365 = vrot.slane %v3351, 2
    %v3367 = vmul.f32 %v3365, %v3345
    %v3368 = vmul.f32 %v3351, %v3355
    %v3369 = vadd.f32 %v3367, %v3368
    %v3370 = vtanh.pop %v3369
    %v3371 = vmul.f32 %v3363, %v3370
    %3372 = vst [vmem:[#allocation2] sm:$0x3] %v3344
    %3373 = vst [vmem:[#allocation3] sm:$0x3] %v3342
    %3374 = vst [vmem:[#allocation4] sm:$0x3] %v3371
    %3375 = vst [vmem:[#allocation5] sm:$0x3] %v3369
    %3376 = vst [vmem:[%s599] sm:$0x3] %v3344
    %3377 = vst [vmem:[#allocation14 + $0x2] sm:$0x3] %v3371
    // Predicated region
    $region34: #{tpu_custom_call.1} parent=1 // pred_check
      _
    $region35: #{tpu_custom_call.1} parent=1 // pred_check_branch
      %3379 = sbr.rel (0) target = $region37
    $region36: #{tpu_custom_call.1} parent=1 // pred_region
      %s3381 = ssub.s32 512, 512
      %3382 = vsyncadd [#allocation8], %s3381
      %s3383 = sshll.u32 [#allocation14], 4
      %s3384 = int_to_ptr.vmem [resolvable:$true] %s3383
      %3389 = dma.vmem_to_hbm [thread:$0]  %s3384, 512, %s4, [#allocation8], 64, 64, 4
    $region37: #{tpu_custom_call.1} parent=1 // pred_fallthru
      _
    // Predicated region
    $region38: #{tpu_custom_call.1} parent=1 // pred_check
      _
    $region39: #{tpu_custom_call.1} parent=1 // pred_check_branch
      %3391 = sbr.rel (0) target = $region41
    $region40: #{tpu_custom_call.1} parent=1 // pred_region
      %3392 = dma.done [#allocation8], 512
    $region41: #{tpu_custom_call.1} parent=1 // pred_fallthru
      _
    %3393 = vsyncpa [#allocation7], 1
    %3394 = vsyncpa [#allocation10], 1
    %3395 = vsyncpa [#allocation13], 1
    %3396 = vsyncpa [#allocation8], 1

</llo_original>
